<compile_context>
chip_gen: v7x
topology: tpu7x:2x2x1
jax: 0.10.0
libtpu: 0.0.40
codegen_flags: <defaults>
</compile_context>

<pallas_src>
import functools

import jax
import jax.numpy as jnp
from jax.experimental import pallas as pl
from jax.experimental.pallas import tpu as pltpu

EPS = 1e-6


def t5_block_kernel(h_ref, mask_ref, pb_ref,
                    ln1_ref, wq_ref, wk_ref, wv_ref, wo_ref,
                    ln2_ref, wi_ref, wff_ref,
                    out_ref, *, num_heads, d_kv, compute_dtype):
    f32 = jnp.float32
    approx = compute_dtype != jnp.float32   # approx recip only on the fast path

    h = h_ref[0].astype(f32)          # [S, D]
    mask = mask_ref[0].astype(f32)    # [1, S] additive mask (0 / -1e9)

    # --- self-attention sublayer -------------------------------------------
    # T5 RMSNorm: no mean subtraction, no bias.
    var = jnp.mean(h * h, axis=-1, keepdims=True)
    normed = (h * jax.lax.rsqrt(var + EPS) * ln1_ref[0].astype(f32)
              ).astype(compute_dtype)                                   # [S, D]

    q = jnp.dot(normed, wq_ref[...], preferred_element_type=f32)
    k = jnp.dot(normed, wk_ref[...], preferred_element_type=f32)
    v = jnp.dot(normed, wv_ref[...], preferred_element_type=f32)

    # Contract the last (d_kv) axis of both operands: no explicit k.T.
    dn = (((1,), (1,)), ((), ()))

    attn_out = jnp.zeros_like(h)                                        # [S, D] f32
    # TODO(synk): for v6e/v7x, pack heads in pairs/quads (K >= 128/256) and tile
    # queries flash-style for long S; at these head widths the per-head loop with
    # fused Wo is sufficient and avoids any concat / transpose traffic.
    for hd in range(num_heads):
        sl = slice(hd * d_kv, (hd + 1) * d_kv)
        q_h = q[:, sl].astype(compute_dtype)
        k_h = k[:, sl].astype(compute_dtype)
        v_h = v[:, sl].astype(compute_dtype)
        # T5 attention: no 1/sqrt(d_kv) scaling; bias + mask are additive.
        scores = jax.lax.dot_general(q_h, k_h, dn, preferred_element_type=f32)
        scores = scores + pb_ref[hd].astype(f32) + mask                 # [S, S]
        m = jnp.max(scores, axis=-1, keepdims=True)
        p = jnp.exp(scores - m)
        inv = pl.reciprocal(jnp.sum(p, axis=-1, keepdims=True), approx=approx)
        attn = (p * inv).astype(compute_dtype)
        ctx_h = jnp.dot(attn, v_h, preferred_element_type=f32)          # [S, d_kv]
        # Fuse the output projection: rows [hd*d_kv : (hd+1)*d_kv] of Wo.
        attn_out = attn_out + jnp.dot(ctx_h.astype(compute_dtype),
                                      wo_ref[sl, :],
                                      preferred_element_type=f32)
    h = h + attn_out

    # --- feed-forward sublayer ---------------------------------------------
    var2 = jnp.mean(h * h, axis=-1, keepdims=True)
    normed2 = (h * jax.lax.rsqrt(var2 + EPS) * ln2_ref[0].astype(f32)
               ).astype(compute_dtype)
    ff = jnp.dot(normed2, wi_ref[...], preferred_element_type=f32)
    ff = jnp.maximum(ff, 0.0).astype(compute_dtype)
    ff = jnp.dot(ff, wff_ref[...], preferred_element_type=f32)

    out_ref[0] = (h + ff).astype(out_ref.dtype)


def checkpoint_wrapper_forward(hidden_states, attention_mask, position_bias, params,
                               *, num_heads, d_kv, compute_dtype=jnp.bfloat16):
    """Forward of CheckpointWrapper(module=T5-style block), eval path.

    Returns (hidden_states_out, position_bias), mirroring how the wrapped block
    passes position_bias through in its output tuple.
    """
    B, S, D = hidden_states.shape
    H = num_heads
    Dff = params["wi"].shape[1]
    cd = compute_dtype
    w_bytes = jnp.dtype(cd).itemsize

    hidden_states = hidden_states.astype(jnp.float32)
    attention_mask = attention_mask.astype(jnp.float32)
    pb = position_bias.astype(cd)                     # bf16 halves resident VMEM
    ln1 = params["ln1"].astype(jnp.float32)
    ln2 = params["ln2"].astype(jnp.float32)
    wq = params["wq"].astype(cd)
    wk = params["wk"].astype(cd)
    wv = params["wv"].astype(cd)
    wo = params["wo"].astype(cd)
    wi = params["wi"].astype(cd)
    wff = params["wff"].astype(cd)

    kernel = functools.partial(t5_block_kernel, num_heads=H, d_kv=d_kv,
                               compute_dtype=cd)

    # Explicit VMEM budget: resident constants (+ headroom for intermediates and
    # double-buffered per-batch IO tiles).  Capped at 64 MiB so it also fits a
    # v7x TensorCore; v5e/v6e (128 MiB physical) could go higher for big shapes.
    const_bytes = (4 * D * D + 2 * D * Dff + H * S * S) * w_bytes + 2 * D * 4
    io_bytes = 2 * S * D * 4
    vmem_limit = int(min(64 * 2**20,
                         max(32 * 2**20, 4 * (2 * const_bytes + 2 * io_bytes))))

    def run(single_buffer_constants):
        def const_spec(shape):
            idx = lambda *_: (0,) * len(shape)
            if single_buffer_constants:
                # Constant index_map -> no need to double-buffer these blocks.
                return pl.BlockSpec(shape, idx, pipeline_mode=pl.Buffered(1))
            return pl.BlockSpec(shape, idx)

        return pl.pallas_call(
            kernel,
            out_shape=jax.ShapeDtypeStruct((B, S, D), jnp.float32),
            grid_spec=pltpu.PrefetchScalarGridSpec(
                num_scalar_prefetch=0,
                grid=(B,),
                in_specs=[
                    pl.BlockSpec((1, S, D), lambda b: (b, 0, 0)),   # hidden_states
                    pl.BlockSpec((1, 1, S), lambda b: (b, 0, 0)),   # attention_mask
                    const_spec((H, S, S)),                          # position_bias
                    const_spec((1, D)),                             # ln1 weight
                    const_spec((D, D)),                             # Wq
                    const_spec((D, D)),                             # Wk
                    const_spec((D, D)),                             # Wv
                    const_spec((D, D)),                             # Wo
                    const_spec((1, D)),                             # ln2 weight
                    const_spec((D, Dff)),                           # Wi (FFN up)
                    const_spec((Dff, D)),                           # Wff (FFN down)
                ],
                out_specs=pl.BlockSpec((1, S, D), lambda b: (b, 0, 0)),
            ),
            compiler_params=pltpu.CompilerParams(
                dimension_semantics=("parallel",),
                vmem_limit_bytes=vmem_limit),
        )(hidden_states, attention_mask, pb,
          ln1, wq, wk, wv, wo, ln2, wi, wff)

    try:
        out = run(True)
    except Exception:
        # pl.Buffered(1) single-buffering not supported on this jax version:
        # fall back to default pipelining (identical kernel body / semantics).
        out = run(False)

    # CheckpointWrapper / T5 block pass position_bias through in the output tuple.
    return (out, position_bias)


def _reference(hidden_states, attention_mask, position_bias, params, num_heads, d_kv):
    """Pure-JAX f32 reference for correctness checking."""
    h = hidden_states
    normed = h * jax.lax.rsqrt(jnp.mean(h * h, -1, keepdims=True) + EPS) * params["ln1"][0]
    q = normed @ params["wq"]
    k = normed @ params["wk"]
    v = normed @ params["wv"]
    B, S, D = h.shape
    qh = q.reshape(B, S, num_heads, d_kv).transpose(0, 2, 1, 3)
    kh = k.reshape(B, S, num_heads, d_kv).transpose(0, 2, 1, 3)
    vh = v.reshape(B, S, num_heads, d_kv).transpose(0, 2, 1, 3)
    scores = jnp.einsum("bhqd,bhkd->bhqk", qh, kh)
    scores = scores + position_bias[None] + attention_mask[:, :, None, :]
    attn = jax.nn.softmax(scores, axis=-1)
    ctx = jnp.einsum("bhqk,bhkd->bhqd", attn, vh).transpose(0, 2, 1, 3).reshape(B, S, D)
    h = h + ctx @ params["wo"]
    normed2 = h * jax.lax.rsqrt(jnp.mean(h * h, -1, keepdims=True) + EPS) * params["ln2"][0]
    ff = jnp.maximum(normed2 @ params["wi"], 0.0) @ params["wff"]
    return h + ff


if __name__ == "__main__":
    B, S, D = 2, 8, 32
    H, d_kv = 4, 8
    Dff = 64

    key = jax.random.PRNGKey(0)
    ks = jax.random.split(key, 12)

    params = {
        "ln1": jnp.ones((1, D), jnp.float32) + 0.01 * jax.random.normal(ks[0], (1, D)),
        "wq":  0.1 * jax.random.normal(ks[1], (D, D), jnp.float32),
        "wk":  0.1 * jax.random.normal(ks[2], (D, D), jnp.float32),
        "wv":  0.1 * jax.random.normal(ks[3], (D, D), jnp.float32),
        "wo":  0.1 * jax.random.normal(ks[4], (D, D), jnp.float32),
        "ln2": jnp.ones((1, D), jnp.float32) + 0.01 * jax.random.normal(ks[5], (1, D)),
        "wi":  0.1 * jax.random.normal(ks[6], (D, Dff), jnp.float32),
        "wff": 0.1 * jax.random.normal(ks[7], (Dff, D), jnp.float32),
    }

    hidden_states = jax.random.normal(ks[8], (B, S, D), jnp.float32)
    position_bias = 0.1 * jax.random.normal(ks[9], (H, S, S), jnp.float32)
    # Additive attention mask: last two positions of batch 1 are padding.
    keep = jnp.ones((B, 1, S), jnp.float32).at[1, 0, -2:].set(0.0)
    attention_mask = (1.0 - keep) * -1e9

    ref = _reference(hidden_states, attention_mask, position_bias, params, H, d_kv)

    # Fast path: bf16 MXU operands, f32 accumulation, approx softmax reciprocal.
    out_fast, pb_out = checkpoint_wrapper_forward(
        hidden_states, attention_mask, position_bias, params,
        num_heads=H, d_kv=d_kv, compute_dtype=jnp.bfloat16)
    out_fast = jax.block_until_ready(out_fast)

    # Exactness path: identical kernel in pure f32 (checks forward semantics).
    out_f32, _ = checkpoint_wrapper_forward(
        hidden_states, attention_mask, position_bias, params,
        num_heads=H, d_kv=d_kv, compute_dtype=jnp.float32)
    out_f32 = jax.block_until_ready(out_f32)

    assert jnp.allclose(out_f32, ref, rtol=1e-3, atol=1e-3), "f32 mismatch vs reference"
    assert jnp.allclose(out_fast, ref, rtol=2e-2, atol=2e-2), "bf16 mismatch vs reference"
    assert pb_out.shape == (H, S, S)

    # TODO(synk): torch.utils.checkpoint rematerialization (training-only memory
    # optimization) has no forward-semantics effect and is not reproduced.
    print("KERNEL_OK")
</pallas_src>

<mosaic_0001>
module attributes {stable_mosaic.version = 11 : i64} {
  func.func @t5_block_kernel(%arg0: i32, %arg1: memref<1x8x32xf32, #tpu.memory_space<vmem>>, %arg2: memref<1x1x8xf32, #tpu.memory_space<vmem>>, %arg3: memref<4x8x8xbf16, #tpu.memory_space<vmem>>, %arg4: memref<1x32xf32, #tpu.memory_space<vmem>>, %arg5: memref<32x32xbf16, #tpu.memory_space<vmem>>, %arg6: memref<32x32xbf16, #tpu.memory_space<vmem>>, %arg7: memref<32x32xbf16, #tpu.memory_space<vmem>>, %arg8: memref<32x32xbf16, #tpu.memory_space<vmem>>, %arg9: memref<1x32xf32, #tpu.memory_space<vmem>>, %arg10: memref<32x64xbf16, #tpu.memory_space<vmem>>, %arg11: memref<64x32xbf16, #tpu.memory_space<vmem>>, %arg12: memref<1x8x32xf32, #tpu.memory_space<vmem>>) attributes {dimension_semantics = [#tpu.dimension_semantics<parallel>], iteration_bounds = array<i64: 2>, scalar_prefetch = 0 : i64, scratch_operands = 0 : i64, tpu.core_type = #tpu.core_type<tc>, window_params = [{transform_indices = @transform_0, window_bounds = array<i64: 1, 8, 32>}, {transform_indices = @transform_1, window_bounds = array<i64: 1, 1, 8>}, {pipeline_mode = #tpu.pipeline_mode<synchronous>, transform_indices = @transform_2, window_bounds = array<i64: 4, 8, 8>}, {pipeline_mode = #tpu.pipeline_mode<synchronous>, transform_indices = @transform_3, window_bounds = array<i64: 1, 32>}, {pipeline_mode = #tpu.pipeline_mode<synchronous>, transform_indices = @transform_4, window_bounds = array<i64: 32, 32>}, {pipeline_mode = #tpu.pipeline_mode<synchronous>, transform_indices = @transform_5, window_bounds = array<i64: 32, 32>}, {pipeline_mode = #tpu.pipeline_mode<synchronous>, transform_indices = @transform_6, window_bounds = array<i64: 32, 32>}, {pipeline_mode = #tpu.pipeline_mode<synchronous>, transform_indices = @transform_7, window_bounds = array<i64: 32, 32>}, {pipeline_mode = #tpu.pipeline_mode<synchronous>, transform_indices = @transform_8, window_bounds = array<i64: 1, 32>}, {pipeline_mode = #tpu.pipeline_mode<synchronous>, transform_indices = @transform_9, window_bounds = array<i64: 32, 64>}, {pipeline_mode = #tpu.pipeline_mode<synchronous>, transform_indices = @transform_10, window_bounds = array<i64: 64, 32>}, {transform_indices = @transform_11, window_bounds = array<i64: 1, 8, 32>}]} {
    %c0 = arith.constant 0 : index
    %c0_0 = arith.constant 0 : index
    %c0_1 = arith.constant 0 : index
    %0 = vector.load %arg1[%c0, %c0_0, %c0_1] : memref<1x8x32xf32, #tpu.memory_space<vmem>>, vector<1x8x32xf32>
    %1 = vector.shape_cast %0 : vector<1x8x32xf32> to vector<8x32xf32>
    %c0_2 = arith.constant 0 : index
    %c0_3 = arith.constant 0 : index
    %c0_4 = arith.constant 0 : index
    %2 = vector.load %arg2[%c0_2, %c0_3, %c0_4] : memref<1x1x8xf32, #tpu.memory_space<vmem>>, vector<1x1x8xf32>
    %3 = vector.shape_cast %2 : vector<1x1x8xf32> to vector<1x8xf32>
    %4 = arith.mulf %1, %1 : vector<8x32xf32>
    %cst = arith.constant dense<0.000000e+00> : vector<8xf32>
    %5 = vector.multi_reduction <add>, %4, %cst [1] : vector<8x32xf32> to vector<8xf32>
    %6 = vector.shape_cast %5 : vector<8xf32> to vector<8x1xf32>
    %cst_5 = arith.constant 3.200000e+01 : f32
    %7 = vector.broadcast %cst_5 : f32 to vector<8x1xf32>
    %8 = arith.divf %6, %7 : vector<8x1xf32>
    %cst_6 = arith.constant 9.99999997E-7 : f32
    %9 = vector.broadcast %cst_6 : f32 to vector<8x1xf32>
    %10 = arith.addf %8, %9 : vector<8x1xf32>
    %11 = math.rsqrt %10 : vector<8x1xf32>
    %12 = vector.broadcast %11 : vector<8x1xf32> to vector<8x32xf32>
    %13 = arith.mulf %1, %12 : vector<8x32xf32>
    %c0_7 = arith.constant 0 : index
    %c0_8 = arith.constant 0 : index
    %14 = vector.load %arg4[%c0_7, %c0_8] : memref<1x32xf32, #tpu.memory_space<vmem>>, vector<1x32xf32>
    %15 = vector.shape_cast %14 : vector<1x32xf32> to vector<32xf32>
    %16 = vector.shape_cast %15 : vector<32xf32> to vector<1x32xf32>
    %17 = vector.broadcast %16 : vector<1x32xf32> to vector<8x32xf32>
    %18 = arith.mulf %13, %17 : vector<8x32xf32>
    %19 = arith.truncf %18 : vector<8x32xf32> to vector<8x32xbf16>
    %c0_9 = arith.constant 0 : index
    %c0_10 = arith.constant 0 : index
    %20 = vector.load %arg5[%c0_9, %c0_10] : memref<32x32xbf16, #tpu.memory_space<vmem>>, vector<32x32xbf16>
    %cst_11 = arith.constant dense<0.000000e+00> : vector<8x32xf32>
    %21 = tpu.matmul %19, %20, %cst_11 {dimension_numbers = #tpu.dot_dimension_numbers<[1], [0], [0], [1], [0, 0, 1, 1], [], []>} : vector<8x32xbf16>, vector<32x32xbf16>, vector<8x32xf32> -> vector<8x32xf32>
    %c0_12 = arith.constant 0 : index
    %c0_13 = arith.constant 0 : index
    %22 = vector.load %arg6[%c0_12, %c0_13] : memref<32x32xbf16, #tpu.memory_space<vmem>>, vector<32x32xbf16>
    %cst_14 = arith.constant dense<0.000000e+00> : vector<8x32xf32>
    %23 = tpu.matmul %19, %22, %cst_14 {dimension_numbers = #tpu.dot_dimension_numbers<[1], [0], [0], [1], [0, 0, 1, 1], [], []>} : vector<8x32xbf16>, vector<32x32xbf16>, vector<8x32xf32> -> vector<8x32xf32>
    %c0_15 = arith.constant 0 : index
    %c0_16 = arith.constant 0 : index
    %24 = vector.load %arg7[%c0_15, %c0_16] : memref<32x32xbf16, #tpu.memory_space<vmem>>, vector<32x32xbf16>
    %cst_17 = arith.constant dense<0.000000e+00> : vector<8x32xf32>
    %25 = tpu.matmul %19, %24, %cst_17 {dimension_numbers = #tpu.dot_dimension_numbers<[1], [0], [0], [1], [0, 0, 1, 1], [], []>} : vector<8x32xbf16>, vector<32x32xbf16>, vector<8x32xf32> -> vector<8x32xf32>
    %cst_18 = arith.constant 0.000000e+00 : f32
    %26 = vector.broadcast %cst_18 : f32 to vector<8x32xf32>
    %27 = vector.extract_strided_slice %21 {offsets = [0, 0], sizes = [8, 8], strides = [1, 1]} : vector<8x32xf32> to vector<8x8xf32>
    %28 = arith.truncf %27 : vector<8x8xf32> to vector<8x8xbf16>
    %29 = vector.extract_strided_slice %23 {offsets = [0, 0], sizes = [8, 8], strides = [1, 1]} : vector<8x32xf32> to vector<8x8xf32>
    %30 = arith.truncf %29 : vector<8x8xf32> to vector<8x8xbf16>
    %31 = vector.extract_strided_slice %25 {offsets = [0, 0], sizes = [8, 8], strides = [1, 1]} : vector<8x32xf32> to vector<8x8xf32>
    %32 = arith.truncf %31 : vector<8x8xf32> to vector<8x8xbf16>
    %cst_19 = arith.constant dense<0.000000e+00> : vector<8x8xf32>
    %33 = tpu.matmul %28, %30, %cst_19 {dimension_numbers = #tpu.dot_dimension_numbers<[1], [1], [0], [0], [0, 0, 1, 0], [], []>} : vector<8x8xbf16>, vector<8x8xbf16>, vector<8x8xf32> -> vector<8x8xf32>
    %c0_20 = arith.constant 0 : index
    %c0_21 = arith.constant 0 : index
    %c0_22 = arith.constant 0 : index
    %34 = vector.load %arg3[%c0_20, %c0_21, %c0_22] : memref<4x8x8xbf16, #tpu.memory_space<vmem>>, vector<1x8x8xbf16>
    %35 = vector.shape_cast %34 : vector<1x8x8xbf16> to vector<8x8xbf16>
    %36 = arith.extf %35 : vector<8x8xbf16> to vector<8x8xf32>
    %37 = arith.addf %33, %36 : vector<8x8xf32>
    %38 = vector.broadcast %3 : vector<1x8xf32> to vector<8x8xf32>
    %39 = arith.addf %37, %38 : vector<8x8xf32>
    %cst_23 = arith.constant dense<0xFF800000> : vector<8xf32>
    %40 = vector.multi_reduction <maximumf>, %39, %cst_23 [1] : vector<8x8xf32> to vector<8xf32>
    %41 = vector.shape_cast %40 : vector<8xf32> to vector<8x1xf32>
    %42 = vector.broadcast %41 : vector<8x1xf32> to vector<8x8xf32>
    %43 = arith.subf %39, %42 : vector<8x8xf32>
    %44 = math.exp %43 : vector<8x8xf32>
    %cst_24 = arith.constant dense<0.000000e+00> : vector<8xf32>
    %45 = vector.multi_reduction <add>, %44, %cst_24 [1] : vector<8x8xf32> to vector<8xf32>
    %46 = vector.shape_cast %45 : vector<8xf32> to vector<8x1xf32>
    %47 = tpu.reciprocal %46 {approx = true} : vector<8x1xf32> -> vector<8x1xf32>
    %48 = vector.broadcast %47 : vector<8x1xf32> to vector<8x8xf32>
    %49 = arith.mulf %44, %48 : vector<8x8xf32>
    %50 = arith.truncf %49 : vector<8x8xf32> to vector<8x8xbf16>
    %cst_25 = arith.constant dense<0.000000e+00> : vector<8x8xf32>
    %51 = tpu.matmul %50, %32, %cst_25 {dimension_numbers = #tpu.dot_dimension_numbers<[1], [0], [0], [1], [0, 0, 1, 1], [], []>} : vector<8x8xbf16>, vector<8x8xbf16>, vector<8x8xf32> -> vector<8x8xf32>
    %52 = arith.truncf %51 : vector<8x8xf32> to vector<8x8xbf16>
    %c0_26 = arith.constant 0 : index
    %c0_27 = arith.constant 0 : index
    %53 = vector.load %arg8[%c0_26, %c0_27] : memref<32x32xbf16, #tpu.memory_space<vmem>>, vector<8x32xbf16>
    %cst_28 = arith.constant dense<0.000000e+00> : vector<8x32xf32>
    %54 = tpu.matmul %52, %53, %cst_28 {dimension_numbers = #tpu.dot_dimension_numbers<[1], [0], [0], [1], [0, 0, 1, 1], [], []>} : vector<8x8xbf16>, vector<8x32xbf16>, vector<8x32xf32> -> vector<8x32xf32>
    %55 = arith.addf %26, %54 : vector<8x32xf32>
    %56 = vector.extract_strided_slice %21 {offsets = [0, 8], sizes = [8, 8], strides = [1, 1]} : vector<8x32xf32> to vector<8x8xf32>
    %57 = arith.truncf %56 : vector<8x8xf32> to vector<8x8xbf16>
    %58 = vector.extract_strided_slice %23 {offsets = [0, 8], sizes = [8, 8], strides = [1, 1]} : vector<8x32xf32> to vector<8x8xf32>
    %59 = arith.truncf %58 : vector<8x8xf32> to vector<8x8xbf16>
    %60 = vector.extract_strided_slice %25 {offsets = [0, 8], sizes = [8, 8], strides = [1, 1]} : vector<8x32xf32> to vector<8x8xf32>
    %61 = arith.truncf %60 : vector<8x8xf32> to vector<8x8xbf16>
    %cst_29 = arith.constant dense<0.000000e+00> : vector<8x8xf32>
    %62 = tpu.matmul %57, %59, %cst_29 {dimension_numbers = #tpu.dot_dimension_numbers<[1], [1], [0], [0], [0, 0, 1, 0], [], []>} : vector<8x8xbf16>, vector<8x8xbf16>, vector<8x8xf32> -> vector<8x8xf32>
    %c1 = arith.constant 1 : index
    %c0_30 = arith.constant 0 : index
    %c0_31 = arith.constant 0 : index
    %63 = vector.load %arg3[%c1, %c0_30, %c0_31] : memref<4x8x8xbf16, #tpu.memory_space<vmem>>, vector<1x8x8xbf16>
    %64 = vector.shape_cast %63 : vector<1x8x8xbf16> to vector<8x8xbf16>
    %65 = arith.extf %64 : vector<8x8xbf16> to vector<8x8xf32>
    %66 = arith.addf %62, %65 : vector<8x8xf32>
    %67 = vector.broadcast %3 : vector<1x8xf32> to vector<8x8xf32>
    %68 = arith.addf %66, %67 : vector<8x8xf32>
    %cst_32 = arith.constant dense<0xFF800000> : vector<8xf32>
    %69 = vector.multi_reduction <maximumf>, %68, %cst_32 [1] : vector<8x8xf32> to vector<8xf32>
    %70 = vector.shape_cast %69 : vector<8xf32> to vector<8x1xf32>
    %71 = vector.broadcast %70 : vector<8x1xf32> to vector<8x8xf32>
    %72 = arith.subf %68, %71 : vector<8x8xf32>
    %73 = math.exp %72 : vector<8x8xf32>
    %cst_33 = arith.constant dense<0.000000e+00> : vector<8xf32>
    %74 = vector.multi_reduction <add>, %73, %cst_33 [1] : vector<8x8xf32> to vector<8xf32>
    %75 = vector.shape_cast %74 : vector<8xf32> to vector<8x1xf32>
    %76 = tpu.reciprocal %75 {approx = true} : vector<8x1xf32> -> vector<8x1xf32>
    %77 = vector.broadcast %76 : vector<8x1xf32> to vector<8x8xf32>
    %78 = arith.mulf %73, %77 : vector<8x8xf32>
    %79 = arith.truncf %78 : vector<8x8xf32> to vector<8x8xbf16>
    %cst_34 = arith.constant dense<0.000000e+00> : vector<8x8xf32>
    %80 = tpu.matmul %79, %61, %cst_34 {dimension_numbers = #tpu.dot_dimension_numbers<[1], [0], [0], [1], [0, 0, 1, 1], [], []>} : vector<8x8xbf16>, vector<8x8xbf16>, vector<8x8xf32> -> vector<8x8xf32>
    %81 = arith.truncf %80 : vector<8x8xf32> to vector<8x8xbf16>
    %c8 = arith.constant 8 : index
    %c0_35 = arith.constant 0 : index
    %82 = vector.load %arg8[%c8, %c0_35] : memref<32x32xbf16, #tpu.memory_space<vmem>>, vector<8x32xbf16>
    %cst_36 = arith.constant dense<0.000000e+00> : vector<8x32xf32>
    %83 = tpu.matmul %81, %82, %cst_36 {dimension_numbers = #tpu.dot_dimension_numbers<[1], [0], [0], [1], [0, 0, 1, 1], [], []>} : vector<8x8xbf16>, vector<8x32xbf16>, vector<8x32xf32> -> vector<8x32xf32>
    %84 = arith.addf %55, %83 : vector<8x32xf32>
    %85 = vector.extract_strided_slice %21 {offsets = [0, 16], sizes = [8, 8], strides = [1, 1]} : vector<8x32xf32> to vector<8x8xf32>
    %86 = arith.truncf %85 : vector<8x8xf32> to vector<8x8xbf16>
    %87 = vector.extract_strided_slice %23 {offsets = [0, 16], sizes = [8, 8], strides = [1, 1]} : vector<8x32xf32> to vector<8x8xf32>
    %88 = arith.truncf %87 : vector<8x8xf32> to vector<8x8xbf16>
    %89 = vector.extract_strided_slice %25 {offsets = [0, 16], sizes = [8, 8], strides = [1, 1]} : vector<8x32xf32> to vector<8x8xf32>
    %90 = arith.truncf %89 : vector<8x8xf32> to vector<8x8xbf16>
    %cst_37 = arith.constant dense<0.000000e+00> : vector<8x8xf32>
    %91 = tpu.matmul %86, %88, %cst_37 {dimension_numbers = #tpu.dot_dimension_numbers<[1], [1], [0], [0], [0, 0, 1, 0], [], []>} : vector<8x8xbf16>, vector<8x8xbf16>, vector<8x8xf32> -> vector<8x8xf32>
    %c2 = arith.constant 2 : index
    %c0_38 = arith.constant 0 : index
    %c0_39 = arith.constant 0 : index
    %92 = vector.load %arg3[%c2, %c0_38, %c0_39] : memref<4x8x8xbf16, #tpu.memory_space<vmem>>, vector<1x8x8xbf16>
    %93 = vector.shape_cast %92 : vector<1x8x8xbf16> to vector<8x8xbf16>
    %94 = arith.extf %93 : vector<8x8xbf16> to vector<8x8xf32>
    %95 = arith.addf %91, %94 : vector<8x8xf32>
    %96 = vector.broadcast %3 : vector<1x8xf32> to vector<8x8xf32>
    %97 = arith.addf %95, %96 : vector<8x8xf32>
    %cst_40 = arith.constant dense<0xFF800000> : vector<8xf32>
    %98 = vector.multi_reduction <maximumf>, %97, %cst_40 [1] : vector<8x8xf32> to vector<8xf32>
    %99 = vector.shape_cast %98 : vector<8xf32> to vector<8x1xf32>
    %100 = vector.broadcast %99 : vector<8x1xf32> to vector<8x8xf32>
    %101 = arith.subf %97, %100 : vector<8x8xf32>
    %102 = math.exp %101 : vector<8x8xf32>
    %cst_41 = arith.constant dense<0.000000e+00> : vector<8xf32>
    %103 = vector.multi_reduction <add>, %102, %cst_41 [1] : vector<8x8xf32> to vector<8xf32>
    %104 = vector.shape_cast %103 : vector<8xf32> to vector<8x1xf32>
    %105 = tpu.reciprocal %104 {approx = true} : vector<8x1xf32> -> vector<8x1xf32>
    %106 = vector.broadcast %105 : vector<8x1xf32> to vector<8x8xf32>
    %107 = arith.mulf %102, %106 : vector<8x8xf32>
    %108 = arith.truncf %107 : vector<8x8xf32> to vector<8x8xbf16>
    %cst_42 = arith.constant dense<0.000000e+00> : vector<8x8xf32>
    %109 = tpu.matmul %108, %90, %cst_42 {dimension_numbers = #tpu.dot_dimension_numbers<[1], [0], [0], [1], [0, 0, 1, 1], [], []>} : vector<8x8xbf16>, vector<8x8xbf16>, vector<8x8xf32> -> vector<8x8xf32>
    %110 = arith.truncf %109 : vector<8x8xf32> to vector<8x8xbf16>
    %c16 = arith.constant 16 : index
    %c0_43 = arith.constant 0 : index
    %111 = vector.load %arg8[%c16, %c0_43] : memref<32x32xbf16, #tpu.memory_space<vmem>>, vector<8x32xbf16>
    %cst_44 = arith.constant dense<0.000000e+00> : vector<8x32xf32>
    %112 = tpu.matmul %110, %111, %cst_44 {dimension_numbers = #tpu.dot_dimension_numbers<[1], [0], [0], [1], [0, 0, 1, 1], [], []>} : vector<8x8xbf16>, vector<8x32xbf16>, vector<8x32xf32> -> vector<8x32xf32>
    %113 = arith.addf %84, %112 : vector<8x32xf32>
    %114 = vector.extract_strided_slice %21 {offsets = [0, 24], sizes = [8, 8], strides = [1, 1]} : vector<8x32xf32> to vector<8x8xf32>
    %115 = arith.truncf %114 : vector<8x8xf32> to vector<8x8xbf16>
    %116 = vector.extract_strided_slice %23 {offsets = [0, 24], sizes = [8, 8], strides = [1, 1]} : vector<8x32xf32> to vector<8x8xf32>
    %117 = arith.truncf %116 : vector<8x8xf32> to vector<8x8xbf16>
    %118 = vector.extract_strided_slice %25 {offsets = [0, 24], sizes = [8, 8], strides = [1, 1]} : vector<8x32xf32> to vector<8x8xf32>
    %119 = arith.truncf %118 : vector<8x8xf32> to vector<8x8xbf16>
    %cst_45 = arith.constant dense<0.000000e+00> : vector<8x8xf32>
    %120 = tpu.matmul %115, %117, %cst_45 {dimension_numbers = #tpu.dot_dimension_numbers<[1], [1], [0], [0], [0, 0, 1, 0], [], []>} : vector<8x8xbf16>, vector<8x8xbf16>, vector<8x8xf32> -> vector<8x8xf32>
    %c3 = arith.constant 3 : index
    %c0_46 = arith.constant 0 : index
    %c0_47 = arith.constant 0 : index
    %121 = vector.load %arg3[%c3, %c0_46, %c0_47] : memref<4x8x8xbf16, #tpu.memory_space<vmem>>, vector<1x8x8xbf16>
    %122 = vector.shape_cast %121 : vector<1x8x8xbf16> to vector<8x8xbf16>
    %123 = arith.extf %122 : vector<8x8xbf16> to vector<8x8xf32>
    %124 = arith.addf %120, %123 : vector<8x8xf32>
    %125 = vector.broadcast %3 : vector<1x8xf32> to vector<8x8xf32>
    %126 = arith.addf %124, %125 : vector<8x8xf32>
    %cst_48 = arith.constant dense<0xFF800000> : vector<8xf32>
    %127 = vector.multi_reduction <maximumf>, %126, %cst_48 [1] : vector<8x8xf32> to vector<8xf32>
    %128 = vector.shape_cast %127 : vector<8xf32> to vector<8x1xf32>
    %129 = vector.broadcast %128 : vector<8x1xf32> to vector<8x8xf32>
    %130 = arith.subf %126, %129 : vector<8x8xf32>
    %131 = math.exp %130 : vector<8x8xf32>
    %cst_49 = arith.constant dense<0.000000e+00> : vector<8xf32>
    %132 = vector.multi_reduction <add>, %131, %cst_49 [1] : vector<8x8xf32> to vector<8xf32>
    %133 = vector.shape_cast %132 : vector<8xf32> to vector<8x1xf32>
    %134 = tpu.reciprocal %133 {approx = true} : vector<8x1xf32> -> vector<8x1xf32>
    %135 = vector.broadcast %134 : vector<8x1xf32> to vector<8x8xf32>
    %136 = arith.mulf %131, %135 : vector<8x8xf32>
    %137 = arith.truncf %136 : vector<8x8xf32> to vector<8x8xbf16>
    %cst_50 = arith.constant dense<0.000000e+00> : vector<8x8xf32>
    %138 = tpu.matmul %137, %119, %cst_50 {dimension_numbers = #tpu.dot_dimension_numbers<[1], [0], [0], [1], [0, 0, 1, 1], [], []>} : vector<8x8xbf16>, vector<8x8xbf16>, vector<8x8xf32> -> vector<8x8xf32>
    %139 = arith.truncf %138 : vector<8x8xf32> to vector<8x8xbf16>
    %c24 = arith.constant 24 : index
    %c0_51 = arith.constant 0 : index
    %140 = vector.load %arg8[%c24, %c0_51] : memref<32x32xbf16, #tpu.memory_space<vmem>>, vector<8x32xbf16>
    %cst_52 = arith.constant dense<0.000000e+00> : vector<8x32xf32>
    %141 = tpu.matmul %139, %140, %cst_52 {dimension_numbers = #tpu.dot_dimension_numbers<[1], [0], [0], [1], [0, 0, 1, 1], [], []>} : vector<8x8xbf16>, vector<8x32xbf16>, vector<8x32xf32> -> vector<8x32xf32>
    %142 = arith.addf %113, %141 : vector<8x32xf32>
    %143 = arith.addf %1, %142 : vector<8x32xf32>
    %144 = arith.mulf %143, %143 : vector<8x32xf32>
    %cst_53 = arith.constant dense<0.000000e+00> : vector<8xf32>
    %145 = vector.multi_reduction <add>, %144, %cst_53 [1] : vector<8x32xf32> to vector<8xf32>
    %146 = vector.shape_cast %145 : vector<8xf32> to vector<8x1xf32>
    %cst_54 = arith.constant 3.200000e+01 : f32
    %147 = vector.broadcast %cst_54 : f32 to vector<8x1xf32>
    %148 = arith.divf %146, %147 : vector<8x1xf32>
    %cst_55 = arith.constant 9.99999997E-7 : f32
    %149 = vector.broadcast %cst_55 : f32 to vector<8x1xf32>
    %150 = arith.addf %148, %149 : vector<8x1xf32>
    %151 = math.rsqrt %150 : vector<8x1xf32>
    %152 = vector.broadcast %151 : vector<8x1xf32> to vector<8x32xf32>
    %153 = arith.mulf %143, %152 : vector<8x32xf32>
    %c0_56 = arith.constant 0 : index
    %c0_57 = arith.constant 0 : index
    %154 = vector.load %arg9[%c0_56, %c0_57] : memref<1x32xf32, #tpu.memory_space<vmem>>, vector<1x32xf32>
    %155 = vector.shape_cast %154 : vector<1x32xf32> to vector<32xf32>
    %156 = vector.shape_cast %155 : vector<32xf32> to vector<1x32xf32>
    %157 = vector.broadcast %156 : vector<1x32xf32> to vector<8x32xf32>
    %158 = arith.mulf %153, %157 : vector<8x32xf32>
    %159 = arith.truncf %158 : vector<8x32xf32> to vector<8x32xbf16>
    %c0_58 = arith.constant 0 : index
    %c0_59 = arith.constant 0 : index
    %160 = vector.load %arg10[%c0_58, %c0_59] : memref<32x64xbf16, #tpu.memory_space<vmem>>, vector<32x64xbf16>
    %cst_60 = arith.constant dense<0.000000e+00> : vector<8x64xf32>
    %161 = tpu.matmul %159, %160, %cst_60 {dimension_numbers = #tpu.dot_dimension_numbers<[1], [0], [0], [1], [0, 0, 1, 1], [], []>} : vector<8x32xbf16>, vector<32x64xbf16>, vector<8x64xf32> -> vector<8x64xf32>
    %cst_61 = arith.constant 0.000000e+00 : f32
    %162 = vector.broadcast %cst_61 : f32 to vector<8x64xf32>
    %163 = arith.maximumf %161, %162 : vector<8x64xf32>
    %164 = arith.truncf %163 : vector<8x64xf32> to vector<8x64xbf16>
    %c0_62 = arith.constant 0 : index
    %c0_63 = arith.constant 0 : index
    %165 = vector.load %arg11[%c0_62, %c0_63] : memref<64x32xbf16, #tpu.memory_space<vmem>>, vector<64x32xbf16>
    %cst_64 = arith.constant dense<0.000000e+00> : vector<8x32xf32>
    %166 = tpu.matmul %164, %165, %cst_64 {dimension_numbers = #tpu.dot_dimension_numbers<[1], [0], [0], [1], [0, 0, 1, 1], [], []>} : vector<8x64xbf16>, vector<64x32xbf16>, vector<8x32xf32> -> vector<8x32xf32>
    %167 = arith.addf %143, %166 : vector<8x32xf32>
    %c0_65 = arith.constant 0 : index
    %c0_66 = arith.constant 0 : index
    %c0_67 = arith.constant 0 : index
    %168 = vector.load %arg12[%c0_65, %c0_66, %c0_67] : memref<1x8x32xf32, #tpu.memory_space<vmem>>, vector<1x8x32xf32>
    %169 = vector.shape_cast %168 : vector<1x8x32xf32> to vector<8x32xf32>
    %170 = vector.shape_cast %167 : vector<8x32xf32> to vector<1x8x32xf32>
    tpu.vector_store %arg12[%c0_65, %c0_66, %c0_67], %170 {strides = array<i32>} : memref<1x8x32xf32, #tpu.memory_space<vmem>>, vector<1x8x32xf32>,
    return
  }
  func.func @transform_0(%arg0: i32) -> (i32, i32, i32) {
    %c0_i32 = arith.constant 0 : i32
    %c0_i32_0 = arith.constant 0 : i32
    %c0_i32_1 = arith.constant 0 : i32
    return %arg0, %c0_i32, %c0_i32_0 : i32, i32, i32
  }
  func.func @transform_1(%arg0: i32) -> (i32, i32, i32) {
    %c0_i32 = arith.constant 0 : i32
    %c0_i32_0 = arith.constant 0 : i32
    %c0_i32_1 = arith.constant 0 : i32
    return %arg0, %c0_i32, %c0_i32_0 : i32, i32, i32
  }
  func.func @transform_2(%arg0: i32) -> (i32, i32, i32) {
    %c0_i32 = arith.constant 0 : i32
    %c0_i32_0 = arith.constant 0 : i32
    %c0_i32_1 = arith.constant 0 : i32
    %c0_i32_2 = arith.constant 0 : i32
    return %c0_i32, %c0_i32_0, %c0_i32_1 : i32, i32, i32
  }
  func.func @transform_3(%arg0: i32) -> (i32, i32) {
    %c0_i32 = arith.constant 0 : i32
    %c0_i32_0 = arith.constant 0 : i32
    %c0_i32_1 = arith.constant 0 : i32
    return %c0_i32, %c0_i32_0 : i32, i32
  }
  func.func @transform_4(%arg0: i32) -> (i32, i32) {
    %c0_i32 = arith.constant 0 : i32
    %c0_i32_0 = arith.constant 0 : i32
    %c0_i32_1 = arith.constant 0 : i32
    return %c0_i32, %c0_i32_0 : i32, i32
  }
  func.func @transform_5(%arg0: i32) -> (i32, i32) {
    %c0_i32 = arith.constant 0 : i32
    %c0_i32_0 = arith.constant 0 : i32
    %c0_i32_1 = arith.constant 0 : i32
    return %c0_i32, %c0_i32_0 : i32, i32
  }
  func.func @transform_6(%arg0: i32) -> (i32, i32) {
    %c0_i32 = arith.constant 0 : i32
    %c0_i32_0 = arith.constant 0 : i32
    %c0_i32_1 = arith.constant 0 : i32
    return %c0_i32, %c0_i32_0 : i32, i32
  }
  func.func @transform_7(%arg0: i32) -> (i32, i32) {
    %c0_i32 = arith.constant 0 : i32
    %c0_i32_0 = arith.constant 0 : i32
    %c0_i32_1 = arith.constant 0 : i32
    return %c0_i32, %c0_i32_0 : i32, i32
  }
  func.func @transform_8(%arg0: i32) -> (i32, i32) {
    %c0_i32 = arith.constant 0 : i32
    %c0_i32_0 = arith.constant 0 : i32
    %c0_i32_1 = arith.constant 0 : i32
    return %c0_i32, %c0_i32_0 : i32, i32
  }
  func.func @transform_9(%arg0: i32) -> (i32, i32) {
    %c0_i32 = arith.constant 0 : i32
    %c0_i32_0 = arith.constant 0 : i32
    %c0_i32_1 = arith.constant 0 : i32
    return %c0_i32, %c0_i32_0 : i32, i32
  }
  func.func @transform_10(%arg0: i32) -> (i32, i32) {
    %c0_i32 = arith.constant 0 : i32
    %c0_i32_0 = arith.constant 0 : i32
    %c0_i32_1 = arith.constant 0 : i32
    return %c0_i32, %c0_i32_0 : i32, i32
  }
  func.func @transform_11(%arg0: i32) -> (i32, i32, i32) {
    %c0_i32 = arith.constant 0 : i32
    %c0_i32_0 = arith.constant 0 : i32
    %c0_i32_1 = arith.constant 0 : i32
    return %arg0, %c0_i32, %c0_i32_0 : i32, i32, i32
  }
}

module attributes {stable_mosaic.version = 11 : i64} {
  func.func @t5_block_kernel(%arg0: i32, %arg1: memref<1x8x32xf32, #tpu.memory_space<vmem>>, %arg2: memref<1x1x8xf32, #tpu.memory_space<vmem>>, %arg3: memref<4x8x8xbf16, #tpu.memory_space<vmem>>, %arg4: memref<1x32xf32, #tpu.memory_space<vmem>>, %arg5: memref<32x32xbf16, #tpu.memory_space<vmem>>, %arg6: memref<32x32xbf16, #tpu.memory_space<vmem>>, %arg7: memref<32x32xbf16, #tpu.memory_space<vmem>>, %arg8: memref<32x32xbf16, #tpu.memory_space<vmem>>, %arg9: memref<1x32xf32, #tpu.memory_space<vmem>>, %arg10: memref<32x64xbf16, #tpu.memory_space<vmem>>, %arg11: memref<64x32xbf16, #tpu.memory_space<vmem>>, %arg12: memref<1x8x32xf32, #tpu.memory_space<vmem>>) attributes {dimension_semantics = [#tpu.dimension_semantics<parallel>], iteration_bounds = array<i64: 2>, scalar_prefetch = 0 : i64, scratch_operands = 0 : i64, tpu.core_type = #tpu.core_type<tc>, window_params = [{transform_indices = @transform_0, window_bounds = array<i64: 1, 8, 32>}, {transform_indices = @transform_1, window_bounds = array<i64: 1, 1, 8>}, {pipeline_mode = #tpu.pipeline_mode<synchronous>, transform_indices = @transform_2, window_bounds = array<i64: 4, 8, 8>}, {pipeline_mode = #tpu.pipeline_mode<synchronous>, transform_indices = @transform_3, window_bounds = array<i64: 1, 32>}, {pipeline_mode = #tpu.pipeline_mode<synchronous>, transform_indices = @transform_4, window_bounds = array<i64: 32, 32>}, {pipeline_mode = #tpu.pipeline_mode<synchronous>, transform_indices = @transform_5, window_bounds = array<i64: 32, 32>}, {pipeline_mode = #tpu.pipeline_mode<synchronous>, transform_indices = @transform_6, window_bounds = array<i64: 32, 32>}, {pipeline_mode = #tpu.pipeline_mode<synchronous>, transform_indices = @transform_7, window_bounds = array<i64: 32, 32>}, {pipeline_mode = #tpu.pipeline_mode<synchronous>, transform_indices = @transform_8, window_bounds = array<i64: 1, 32>}, {pipeline_mode = #tpu.pipeline_mode<synchronous>, transform_indices = @transform_9, window_bounds = array<i64: 32, 64>}, {pipeline_mode = #tpu.pipeline_mode<synchronous>, transform_indices = @transform_10, window_bounds = array<i64: 64, 32>}, {transform_indices = @transform_11, window_bounds = array<i64: 1, 8, 32>}]} {
    %c0 = arith.constant 0 : index
    %c0_0 = arith.constant 0 : index
    %c0_1 = arith.constant 0 : index
    %0 = vector.load %arg1[%c0, %c0_0, %c0_1] : memref<1x8x32xf32, #tpu.memory_space<vmem>>, vector<1x8x32xf32>
    %1 = vector.shape_cast %0 : vector<1x8x32xf32> to vector<8x32xf32>
    %c0_2 = arith.constant 0 : index
    %c0_3 = arith.constant 0 : index
    %c0_4 = arith.constant 0 : index
    %2 = vector.load %arg2[%c0_2, %c0_3, %c0_4] : memref<1x1x8xf32, #tpu.memory_space<vmem>>, vector<1x1x8xf32>
    %3 = vector.shape_cast %2 : vector<1x1x8xf32> to vector<1x8xf32>
    %4 = arith.mulf %1, %1 : vector<8x32xf32>
    %cst = arith.constant dense<0.000000e+00> : vector<8xf32>
    %5 = vector.multi_reduction <add>, %4, %cst [1] : vector<8x32xf32> to vector<8xf32>
    %6 = vector.shape_cast %5 : vector<8xf32> to vector<8x1xf32>
    %cst_5 = arith.constant 3.200000e+01 : f32
    %7 = vector.broadcast %cst_5 : f32 to vector<8x1xf32>
    %8 = arith.divf %6, %7 : vector<8x1xf32>
    %cst_6 = arith.constant 9.99999997E-7 : f32
    %9 = vector.broadcast %cst_6 : f32 to vector<8x1xf32>
    %10 = arith.addf %8, %9 : vector<8x1xf32>
    %11 = math.rsqrt %10 : vector<8x1xf32>
    %12 = vector.broadcast %11 : vector<8x1xf32> to vector<8x32xf32>
    %13 = arith.mulf %1, %12 : vector<8x32xf32>
    %c0_7 = arith.constant 0 : index
    %c0_8 = arith.constant 0 : index
    %14 = vector.load %arg4[%c0_7, %c0_8] : memref<1x32xf32, #tpu.memory_space<vmem>>, vector<1x32xf32>
    %15 = vector.shape_cast %14 : vector<1x32xf32> to vector<32xf32>
    %16 = vector.shape_cast %15 : vector<32xf32> to vector<1x32xf32>
    %17 = vector.broadcast %16 : vector<1x32xf32> to vector<8x32xf32>
    %18 = arith.mulf %13, %17 : vector<8x32xf32>
    %19 = arith.truncf %18 : vector<8x32xf32> to vector<8x32xbf16>
    %c0_9 = arith.constant 0 : index
    %c0_10 = arith.constant 0 : index
    %20 = vector.load %arg5[%c0_9, %c0_10] : memref<32x32xbf16, #tpu.memory_space<vmem>>, vector<32x32xbf16>
    %cst_11 = arith.constant dense<0.000000e+00> : vector<8x32xf32>
    %21 = tpu.matmul %19, %20, %cst_11 {dimension_numbers = #tpu.dot_dimension_numbers<[1], [0], [0], [1], [0, 0, 1, 1], [], []>} : vector<8x32xbf16>, vector<32x32xbf16>, vector<8x32xf32> -> vector<8x32xf32>
    %c0_12 = arith.constant 0 : index
    %c0_13 = arith.constant 0 : index
    %22 = vector.load %arg6[%c0_12, %c0_13] : memref<32x32xbf16, #tpu.memory_space<vmem>>, vector<32x32xbf16>
    %cst_14 = arith.constant dense<0.000000e+00> : vector<8x32xf32>
    %23 = tpu.matmul %19, %22, %cst_14 {dimension_numbers = #tpu.dot_dimension_numbers<[1], [0], [0], [1], [0, 0, 1, 1], [], []>} : vector<8x32xbf16>, vector<32x32xbf16>, vector<8x32xf32> -> vector<8x32xf32>
    %c0_15 = arith.constant 0 : index
    %c0_16 = arith.constant 0 : index
    %24 = vector.load %arg7[%c0_15, %c0_16] : memref<32x32xbf16, #tpu.memory_space<vmem>>, vector<32x32xbf16>
    %cst_17 = arith.constant dense<0.000000e+00> : vector<8x32xf32>
    %25 = tpu.matmul %19, %24, %cst_17 {dimension_numbers = #tpu.dot_dimension_numbers<[1], [0], [0], [1], [0, 0, 1, 1], [], []>} : vector<8x32xbf16>, vector<32x32xbf16>, vector<8x32xf32> -> vector<8x32xf32>
    %cst_18 = arith.constant 0.000000e+00 : f32
    %26 = vector.broadcast %cst_18 : f32 to vector<8x32xf32>
    %27 = vector.extract_strided_slice %21 {offsets = [0, 0], sizes = [8, 8], strides = [1, 1]} : vector<8x32xf32> to vector<8x8xf32>
    %28 = arith.truncf %27 : vector<8x8xf32> to vector<8x8xbf16>
    %29 = vector.extract_strided_slice %23 {offsets = [0, 0], sizes = [8, 8], strides = [1, 1]} : vector<8x32xf32> to vector<8x8xf32>
    %30 = arith.truncf %29 : vector<8x8xf32> to vector<8x8xbf16>
    %31 = vector.extract_strided_slice %25 {offsets = [0, 0], sizes = [8, 8], strides = [1, 1]} : vector<8x32xf32> to vector<8x8xf32>
    %32 = arith.truncf %31 : vector<8x8xf32> to vector<8x8xbf16>
    %cst_19 = arith.constant dense<0.000000e+00> : vector<8x8xf32>
    %33 = tpu.matmul %28, %30, %cst_19 {dimension_numbers = #tpu.dot_dimension_numbers<[1], [1], [0], [0], [0, 0, 1, 0], [], []>} : vector<8x8xbf16>, vector<8x8xbf16>, vector<8x8xf32> -> vector<8x8xf32>
    %c0_20 = arith.constant 0 : index
    %c0_21 = arith.constant 0 : index
    %c0_22 = arith.constant 0 : index
    %34 = vector.load %arg3[%c0_20, %c0_21, %c0_22] : memref<4x8x8xbf16, #tpu.memory_space<vmem>>, vector<1x8x8xbf16>
    %35 = vector.shape_cast %34 : vector<1x8x8xbf16> to vector<8x8xbf16>
    %36 = arith.extf %35 : vector<8x8xbf16> to vector<8x8xf32>
    %37 = arith.addf %33, %36 : vector<8x8xf32>
    %38 = vector.broadcast %3 : vector<1x8xf32> to vector<8x8xf32>
    %39 = arith.addf %37, %38 : vector<8x8xf32>
    %cst_23 = arith.constant dense<0xFF800000> : vector<8xf32>
    %40 = vector.multi_reduction <maximumf>, %39, %cst_23 [1] : vector<8x8xf32> to vector<8xf32>
    %41 = vector.shape_cast %40 : vector<8xf32> to vector<8x1xf32>
    %42 = vector.broadcast %41 : vector<8x1xf32> to vector<8x8xf32>
    %43 = arith.subf %39, %42 : vector<8x8xf32>
    %44 = math.exp %43 : vector<8x8xf32>
    %cst_24 = arith.constant dense<0.000000e+00> : vector<8xf32>
    %45 = vector.multi_reduction <add>, %44, %cst_24 [1] : vector<8x8xf32> to vector<8xf32>
    %46 = vector.shape_cast %45 : vector<8xf32> to vector<8x1xf32>
    %47 = tpu.reciprocal %46 {approx = true} : vector<8x1xf32> -> vector<8x1xf32>
    %48 = vector.broadcast %47 : vector<8x1xf32> to vector<8x8xf32>
    %49 = arith.mulf %44, %48 : vector<8x8xf32>
    %50 = arith.truncf %49 : vector<8x8xf32> to vector<8x8xbf16>
    %cst_25 = arith.constant dense<0.000000e+00> : vector<8x8xf32>
    %51 = tpu.matmul %50, %32, %cst_25 {dimension_numbers = #tpu.dot_dimension_numbers<[1], [0], [0], [1], [0, 0, 1, 1], [], []>} : vector<8x8xbf16>, vector<8x8xbf16>, vector<8x8xf32> -> vector<8x8xf32>
    %52 = arith.truncf %51 : vector<8x8xf32> to vector<8x8xbf16>
    %c0_26 = arith.constant 0 : index
    %c0_27 = arith.constant 0 : index
    %53 = vector.load %arg8[%c0_26, %c0_27] : memref<32x32xbf16, #tpu.memory_space<vmem>>, vector<8x32xbf16>
    %cst_28 = arith.constant dense<0.000000e+00> : vector<8x32xf32>
    %54 = tpu.matmul %52, %53, %cst_28 {dimension_numbers = #tpu.dot_dimension_numbers<[1], [0], [0], [1], [0, 0, 1, 1], [], []>} : vector<8x8xbf16>, vector<8x32xbf16>, vector<8x32xf32> -> vector<8x32xf32>
    %55 = arith.addf %26, %54 : vector<8x32xf32>
    %56 = vector.extract_strided_slice %21 {offsets = [0, 8], sizes = [8, 8], strides = [1, 1]} : vector<8x32xf32> to vector<8x8xf32>
    %57 = arith.truncf %56 : vector<8x8xf32> to vector<8x8xbf16>
    %58 = vector.extract_strided_slice %23 {offsets = [0, 8], sizes = [8, 8], strides = [1, 1]} : vector<8x32xf32> to vector<8x8xf32>
    %59 = arith.truncf %58 : vector<8x8xf32> to vector<8x8xbf16>
    %60 = vector.extract_strided_slice %25 {offsets = [0, 8], sizes = [8, 8], strides = [1, 1]} : vector<8x32xf32> to vector<8x8xf32>
    %61 = arith.truncf %60 : vector<8x8xf32> to vector<8x8xbf16>
    %cst_29 = arith.constant dense<0.000000e+00> : vector<8x8xf32>
    %62 = tpu.matmul %57, %59, %cst_29 {dimension_numbers = #tpu.dot_dimension_numbers<[1], [1], [0], [0], [0, 0, 1, 0], [], []>} : vector<8x8xbf16>, vector<8x8xbf16>, vector<8x8xf32> -> vector<8x8xf32>
    %c1 = arith.constant 1 : index
    %c0_30 = arith.constant 0 : index
    %c0_31 = arith.constant 0 : index
    %63 = vector.load %arg3[%c1, %c0_30, %c0_31] : memref<4x8x8xbf16, #tpu.memory_space<vmem>>, vector<1x8x8xbf16>
    %64 = vector.shape_cast %63 : vector<1x8x8xbf16> to vector<8x8xbf16>
    %65 = arith.extf %64 : vector<8x8xbf16> to vector<8x8xf32>
    %66 = arith.addf %62, %65 : vector<8x8xf32>
    %67 = vector.broadcast %3 : vector<1x8xf32> to vector<8x8xf32>
    %68 = arith.addf %66, %67 : vector<8x8xf32>
    %cst_32 = arith.constant dense<0xFF800000> : vector<8xf32>
    %69 = vector.multi_reduction <maximumf>, %68, %cst_32 [1] : vector<8x8xf32> to vector<8xf32>
    %70 = vector.shape_cast %69 : vector<8xf32> to vector<8x1xf32>
    %71 = vector.broadcast %70 : vector<8x1xf32> to vector<8x8xf32>
    %72 = arith.subf %68, %71 : vector<8x8xf32>
    %73 = math.exp %72 : vector<8x8xf32>
    %cst_33 = arith.constant dense<0.000000e+00> : vector<8xf32>
    %74 = vector.multi_reduction <add>, %73, %cst_33 [1] : vector<8x8xf32> to vector<8xf32>
    %75 = vector.shape_cast %74 : vector<8xf32> to vector<8x1xf32>
    %76 = tpu.reciprocal %75 {approx = true} : vector<8x1xf32> -> vector<8x1xf32>
    %77 = vector.broadcast %76 : vector<8x1xf32> to vector<8x8xf32>
    %78 = arith.mulf %73, %77 : vector<8x8xf32>
    %79 = arith.truncf %78 : vector<8x8xf32> to vector<8x8xbf16>
    %cst_34 = arith.constant dense<0.000000e+00> : vector<8x8xf32>
    %80 = tpu.matmul %79, %61, %cst_34 {dimension_numbers = #tpu.dot_dimension_numbers<[1], [0], [0], [1], [0, 0, 1, 1], [], []>} : vector<8x8xbf16>, vector<8x8xbf16>, vector<8x8xf32> -> vector<8x8xf32>
    %81 = arith.truncf %80 : vector<8x8xf32> to vector<8x8xbf16>
    %c8 = arith.constant 8 : index
    %c0_35 = arith.constant 0 : index
    %82 = vector.load %arg8[%c8, %c0_35] : memref<32x32xbf16, #tpu.memory_space<vmem>>, vector<8x32xbf16>
    %cst_36 = arith.constant dense<0.000000e+00> : vector<8x32xf32>
    %83 = tpu.matmul %81, %82, %cst_36 {dimension_numbers = #tpu.dot_dimension_numbers<[1], [0], [0], [1], [0, 0, 1, 1], [], []>} : vector<8x8xbf16>, vector<8x32xbf16>, vector<8x32xf32> -> vector<8x32xf32>
    %84 = arith.addf %55, %83 : vector<8x32xf32>
    %85 = vector.extract_strided_slice %21 {offsets = [0, 16], sizes = [8, 8], strides = [1, 1]} : vector<8x32xf32> to vector<8x8xf32>
    %86 = arith.truncf %85 : vector<8x8xf32> to vector<8x8xbf16>
    %87 = vector.extract_strided_slice %23 {offsets = [0, 16], sizes = [8, 8], strides = [1, 1]} : vector<8x32xf32> to vector<8x8xf32>
    %88 = arith.truncf %87 : vector<8x8xf32> to vector<8x8xbf16>
    %89 = vector.extract_strided_slice %25 {offsets = [0, 16], sizes = [8, 8], strides = [1, 1]} : vector<8x32xf32> to vector<8x8xf32>
    %90 = arith.truncf %89 : vector<8x8xf32> to vector<8x8xbf16>
    %cst_37 = arith.constant dense<0.000000e+00> : vector<8x8xf32>
    %91 = tpu.matmul %86, %88, %cst_37 {dimension_numbers = #tpu.dot_dimension_numbers<[1], [1], [0], [0], [0, 0, 1, 0], [], []>} : vector<8x8xbf16>, vector<8x8xbf16>, vector<8x8xf32> -> vector<8x8xf32>
    %c2 = arith.constant 2 : index
    %c0_38 = arith.constant 0 : index
    %c0_39 = arith.constant 0 : index
    %92 = vector.load %arg3[%c2, %c0_38, %c0_39] : memref<4x8x8xbf16, #tpu.memory_space<vmem>>, vector<1x8x8xbf16>
    %93 = vector.shape_cast %92 : vector<1x8x8xbf16> to vector<8x8xbf16>
    %94 = arith.extf %93 : vector<8x8xbf16> to vector<8x8xf32>
    %95 = arith.addf %91, %94 : vector<8x8xf32>
    %96 = vector.broadcast %3 : vector<1x8xf32> to vector<8x8xf32>
    %97 = arith.addf %95, %96 : vector<8x8xf32>
    %cst_40 = arith.constant dense<0xFF800000> : vector<8xf32>
    %98 = vector.multi_reduction <maximumf>, %97, %cst_40 [1] : vector<8x8xf32> to vector<8xf32>
    %99 = vector.shape_cast %98 : vector<8xf32> to vector<8x1xf32>
    %100 = vector.broadcast %99 : vector<8x1xf32> to vector<8x8xf32>
    %101 = arith.subf %97, %100 : vector<8x8xf32>
    %102 = math.exp %101 : vector<8x8xf32>
    %cst_41 = arith.constant dense<0.000000e+00> : vector<8xf32>
    %103 = vector.multi_reduction <add>, %102, %cst_41 [1] : vector<8x8xf32> to vector<8xf32>
    %104 = vector.shape_cast %103 : vector<8xf32> to vector<8x1xf32>
    %105 = tpu.reciprocal %104 {approx = true} : vector<8x1xf32> -> vector<8x1xf32>
    %106 = vector.broadcast %105 : vector<8x1xf32> to vector<8x8xf32>
    %107 = arith.mulf %102, %106 : vector<8x8xf32>
    %108 = arith.truncf %107 : vector<8x8xf32> to vector<8x8xbf16>
    %cst_42 = arith.constant dense<0.000000e+00> : vector<8x8xf32>
    %109 = tpu.matmul %108, %90, %cst_42 {dimension_numbers = #tpu.dot_dimension_numbers<[1], [0], [0], [1], [0, 0, 1, 1], [], []>} : vector<8x8xbf16>, vector<8x8xbf16>, vector<8x8xf32> -> vector<8x8xf32>
    %110 = arith.truncf %109 : vector<8x8xf32> to vector<8x8xbf16>
    %c16 = arith.constant 16 : index
    %c0_43 = arith.constant 0 : index
    %111 = vector.load %arg8[%c16, %c0_43] : memref<32x32xbf16, #tpu.memory_space<vmem>>, vector<8x32xbf16>
    %cst_44 = arith.constant dense<0.000000e+00> : vector<8x32xf32>
    %112 = tpu.matmul %110, %111, %cst_44 {dimension_numbers = #tpu.dot_dimension_numbers<[1], [0], [0], [1], [0, 0, 1, 1], [], []>} : vector<8x8xbf16>, vector<8x32xbf16>, vector<8x32xf32> -> vector<8x32xf32>
    %113 = arith.addf %84, %112 : vector<8x32xf32>
    %114 = vector.extract_strided_slice %21 {offsets = [0, 24], sizes = [8, 8], strides = [1, 1]} : vector<8x32xf32> to vector<8x8xf32>
    %115 = arith.truncf %114 : vector<8x8xf32> to vector<8x8xbf16>
    %116 = vector.extract_strided_slice %23 {offsets = [0, 24], sizes = [8, 8], strides = [1, 1]} : vector<8x32xf32> to vector<8x8xf32>
    %117 = arith.truncf %116 : vector<8x8xf32> to vector<8x8xbf16>
    %118 = vector.extract_strided_slice %25 {offsets = [0, 24], sizes = [8, 8], strides = [1, 1]} : vector<8x32xf32> to vector<8x8xf32>
    %119 = arith.truncf %118 : vector<8x8xf32> to vector<8x8xbf16>
    %cst_45 = arith.constant dense<0.000000e+00> : vector<8x8xf32>
    %120 = tpu.matmul %115, %117, %cst_45 {dimension_numbers = #tpu.dot_dimension_numbers<[1], [1], [0], [0], [0, 0, 1, 0], [], []>} : vector<8x8xbf16>, vector<8x8xbf16>, vector<8x8xf32> -> vector<8x8xf32>
    %c3 = arith.constant 3 : index
    %c0_46 = arith.constant 0 : index
    %c0_47 = arith.constant 0 : index
    %121 = vector.load %arg3[%c3, %c0_46, %c0_47] : memref<4x8x8xbf16, #tpu.memory_space<vmem>>, vector<1x8x8xbf16>
    %122 = vector.shape_cast %121 : vector<1x8x8xbf16> to vector<8x8xbf16>
    %123 = arith.extf %122 : vector<8x8xbf16> to vector<8x8xf32>
    %124 = arith.addf %120, %123 : vector<8x8xf32>
    %125 = vector.broadcast %3 : vector<1x8xf32> to vector<8x8xf32>
    %126 = arith.addf %124, %125 : vector<8x8xf32>
    %cst_48 = arith.constant dense<0xFF800000> : vector<8xf32>
    %127 = vector.multi_reduction <maximumf>, %126, %cst_48 [1] : vector<8x8xf32> to vector<8xf32>
    %128 = vector.shape_cast %127 : vector<8xf32> to vector<8x1xf32>
    %129 = vector.broadcast %128 : vector<8x1xf32> to vector<8x8xf32>
    %130 = arith.subf %126, %129 : vector<8x8xf32>
    %131 = math.exp %130 : vector<8x8xf32>
    %cst_49 = arith.constant dense<0.000000e+00> : vector<8xf32>
    %132 = vector.multi_reduction <add>, %131, %cst_49 [1] : vector<8x8xf32> to vector<8xf32>
    %133 = vector.shape_cast %132 : vector<8xf32> to vector<8x1xf32>
    %134 = tpu.reciprocal %133 {approx = true} : vector<8x1xf32> -> vector<8x1xf32>
    %135 = vector.broadcast %134 : vector<8x1xf32> to vector<8x8xf32>
    %136 = arith.mulf %131, %135 : vector<8x8xf32>
    %137 = arith.truncf %136 : vector<8x8xf32> to vector<8x8xbf16>
    %cst_50 = arith.constant dense<0.000000e+00> : vector<8x8xf32>
    %138 = tpu.matmul %137, %119, %cst_50 {dimension_numbers = #tpu.dot_dimension_numbers<[1], [0], [0], [1], [0, 0, 1, 1], [], []>} : vector<8x8xbf16>, vector<8x8xbf16>, vector<8x8xf32> -> vector<8x8xf32>
    %139 = arith.truncf %138 : vector<8x8xf32> to vector<8x8xbf16>
    %c24 = arith.constant 24 : index
    %c0_51 = arith.constant 0 : index
    %140 = vector.load %arg8[%c24, %c0_51] : memref<32x32xbf16, #tpu.memory_space<vmem>>, vector<8x32xbf16>
    %cst_52 = arith.constant dense<0.000000e+00> : vector<8x32xf32>
    %141 = tpu.matmul %139, %140, %cst_52 {dimension_numbers = #tpu.dot_dimension_numbers<[1], [0], [0], [1], [0, 0, 1, 1], [], []>} : vector<8x8xbf16>, vector<8x32xbf16>, vector<8x32xf32> -> vector<8x32xf32>
    %142 = arith.addf %113, %141 : vector<8x32xf32>
    %143 = arith.addf %1, %142 : vector<8x32xf32>
    %144 = arith.mulf %143, %143 : vector<8x32xf32>
    %cst_53 = arith.constant dense<0.000000e+00> : vector<8xf32>
    %145 = vector.multi_reduction <add>, %144, %cst_53 [1] : vector<8x32xf32> to vector<8xf32>
    %146 = vector.shape_cast %145 : vector<8xf32> to vector<8x1xf32>
    %cst_54 = arith.constant 3.200000e+01 : f32
    %147 = vector.broadcast %cst_54 : f32 to vector<8x1xf32>
    %148 = arith.divf %146, %147 : vector<8x1xf32>
    %cst_55 = arith.constant 9.99999997E-7 : f32
    %149 = vector.broadcast %cst_55 : f32 to vector<8x1xf32>
    %150 = arith.addf %148, %149 : vector<8x1xf32>
    %151 = math.rsqrt %150 : vector<8x1xf32>
    %152 = vector.broadcast %151 : vector<8x1xf32> to vector<8x32xf32>
    %153 = arith.mulf %143, %152 : vector<8x32xf32>
    %c0_56 = arith.constant 0 : index
    %c0_57 = arith.constant 0 : index
    %154 = vector.load %arg9[%c0_56, %c0_57] : memref<1x32xf32, #tpu.memory_space<vmem>>, vector<1x32xf32>
    %155 = vector.shape_cast %154 : vector<1x32xf32> to vector<32xf32>
    %156 = vector.shape_cast %155 : vector<32xf32> to vector<1x32xf32>
    %157 = vector.broadcast %156 : vector<1x32xf32> to vector<8x32xf32>
    %158 = arith.mulf %153, %157 : vector<8x32xf32>
    %159 = arith.truncf %158 : vector<8x32xf32> to vector<8x32xbf16>
    %c0_58 = arith.constant 0 : index
    %c0_59 = arith.constant 0 : index
    %160 = vector.load %arg10[%c0_58, %c0_59] : memref<32x64xbf16, #tpu.memory_space<vmem>>, vector<32x64xbf16>
    %cst_60 = arith.constant dense<0.000000e+00> : vector<8x64xf32>
    %161 = tpu.matmul %159, %160, %cst_60 {dimension_numbers = #tpu.dot_dimension_numbers<[1], [0], [0], [1], [0, 0, 1, 1], [], []>} : vector<8x32xbf16>, vector<32x64xbf16>, vector<8x64xf32> -> vector<8x64xf32>
    %cst_61 = arith.constant 0.000000e+00 : f32
    %162 = vector.broadcast %cst_61 : f32 to vector<8x64xf32>
    %163 = arith.maximumf %161, %162 : vector<8x64xf32>
    %164 = arith.truncf %163 : vector<8x64xf32> to vector<8x64xbf16>
    %c0_62 = arith.constant 0 : index
    %c0_63 = arith.constant 0 : index
    %165 = vector.load %arg11[%c0_62, %c0_63] : memref<64x32xbf16, #tpu.memory_space<vmem>>, vector<64x32xbf16>
    %cst_64 = arith.constant dense<0.000000e+00> : vector<8x32xf32>
    %166 = tpu.matmul %164, %165, %cst_64 {dimension_numbers = #tpu.dot_dimension_numbers<[1], [0], [0], [1], [0, 0, 1, 1], [], []>} : vector<8x64xbf16>, vector<64x32xbf16>, vector<8x32xf32> -> vector<8x32xf32>
    %167 = arith.addf %143, %166 : vector<8x32xf32>
    %c0_65 = arith.constant 0 : index
    %c0_66 = arith.constant 0 : index
    %c0_67 = arith.constant 0 : index
    %168 = vector.load %arg12[%c0_65, %c0_66, %c0_67] : memref<1x8x32xf32, #tpu.memory_space<vmem>>, vector<1x8x32xf32>
    %169 = vector.shape_cast %168 : vector<1x8x32xf32> to vector<8x32xf32>
    %170 = vector.shape_cast %167 : vector<8x32xf32> to vector<1x8x32xf32>
    tpu.vector_store %arg12[%c0_65, %c0_66, %c0_67], %170 {strides = array<i32>} : memref<1x8x32xf32, #tpu.memory_space<vmem>>, vector<1x8x32xf32>,
    return
  }
  func.func @transform_0(%arg0: i32) -> (i32, i32, i32) {
    %c0_i32 = arith.constant 0 : i32
    %c0_i32_0 = arith.constant 0 : i32
    %c0_i32_1 = arith.constant 0 : i32
    return %arg0, %c0_i32, %c0_i32_0 : i32, i32, i32
  }
  func.func @transform_1(%arg0: i32) -> (i32, i32, i32) {
    %c0_i32 = arith.constant 0 : i32
    %c0_i32_0 = arith.constant 0 : i32
    %c0_i32_1 = arith.constant 0 : i32
    return %arg0, %c0_i32, %c0_i32_0 : i32, i32, i32
  }
  func.func @transform_2(%arg0: i32) -> (i32, i32, i32) {
    %c0_i32 = arith.constant 0 : i32
    %c0_i32_0 = arith.constant 0 : i32
    %c0_i32_1 = arith.constant 0 : i32
    %c0_i32_2 = arith.constant 0 : i32
    return %c0_i32, %c0_i32_0, %c0_i32_1 : i32, i32, i32
  }
  func.func @transform_3(%arg0: i32) -> (i32, i32) {
    %c0_i32 = arith.constant 0 : i32
    %c0_i32_0 = arith.constant 0 : i32
    %c0_i32_1 = arith.constant 0 : i32
    return %c0_i32, %c0_i32_0 : i32, i32
  }
  func.func @transform_4(%arg0: i32) -> (i32, i32) {
    %c0_i32 = arith.constant 0 : i32
    %c0_i32_0 = arith.constant 0 : i32
    %c0_i32_1 = arith.constant 0 : i32
    return %c0_i32, %c0_i32_0 : i32, i32
  }
  func.func @transform_5(%arg0: i32) -> (i32, i32) {
    %c0_i32 = arith.constant 0 : i32
    %c0_i32_0 = arith.constant 0 : i32
    %c0_i32_1 = arith.constant 0 : i32
    return %c0_i32, %c0_i32_0 : i32, i32
  }
  func.func @transform_6(%arg0: i32) -> (i32, i32) {
    %c0_i32 = arith.constant 0 : i32
    %c0_i32_0 = arith.constant 0 : i32
    %c0_i32_1 = arith.constant 0 : i32
    return %c0_i32, %c0_i32_0 : i32, i32
  }
  func.func @transform_7(%arg0: i32) -> (i32, i32) {
    %c0_i32 = arith.constant 0 : i32
    %c0_i32_0 = arith.constant 0 : i32
    %c0_i32_1 = arith.constant 0 : i32
    return %c0_i32, %c0_i32_0 : i32, i32
  }
  func.func @transform_8(%arg0: i32) -> (i32, i32) {
    %c0_i32 = arith.constant 0 : i32
    %c0_i32_0 = arith.constant 0 : i32
    %c0_i32_1 = arith.constant 0 : i32
    return %c0_i32, %c0_i32_0 : i32, i32
  }
  func.func @transform_9(%arg0: i32) -> (i32, i32) {
    %c0_i32 = arith.constant 0 : i32
    %c0_i32_0 = arith.constant 0 : i32
    %c0_i32_1 = arith.constant 0 : i32
    return %c0_i32, %c0_i32_0 : i32, i32
  }
  func.func @transform_10(%arg0: i32) -> (i32, i32) {
    %c0_i32 = arith.constant 0 : i32
    %c0_i32_0 = arith.constant 0 : i32
    %c0_i32_1 = arith.constant 0 : i32
    return %c0_i32, %c0_i32_0 : i32, i32
  }
  func.func @transform_11(%arg0: i32) -> (i32, i32, i32) {
    %c0_i32 = arith.constant 0 : i32
    %c0_i32_0 = arith.constant 0 : i32
    %c0_i32_1 = arith.constant 0 : i32
    return %arg0, %c0_i32, %c0_i32_0 : i32, i32, i32
  }
}

</mosaic_0001>

<llo_original>
// kernel: tpu_custom_call.1
$region0: #{tpu_custom_call.1}
  #allocation0 [shape = 'u32[]', space=smem, size = 0x4, offset = 0x4, fixed_abs, tag = 'smem constant byte address 0x4 - core index']
  #allocation1 [shape = 'u32[144,128]{1,0:T(1,128)}', space=vmem, size = 0x12000, scoped, tag = 'internal scratch']
  %s0 = inlined_call_operand.vmem [shape: f32[2,8,32], index: 0, kind: input, shape index: {}]
  %s1 = inlined_call_operand.vmem [shape: f32[2,1,8], index: 1, kind: input, shape index: {}]
  %s2 = inlined_call_operand.vmem [shape: bf16[4,8,8], index: 2, kind: input, shape index: {}]
  %s3 = inlined_call_operand.hbm [shape: f32[1,32], index: 3, kind: input, shape index: {}]
  %s4 = inlined_call_operand.vmem [shape: bf16[32,32], index: 4, kind: input, shape index: {}]
  %s5 = inlined_call_operand.hbm [shape: bf16[32,32], index: 5, kind: input, shape index: {}]
  %s6 = inlined_call_operand.hbm [shape: bf16[32,32], index: 6, kind: input, shape index: {}]
  %s7 = inlined_call_operand.hbm [shape: bf16[32,32], index: 7, kind: input, shape index: {}]
  %s8 = inlined_call_operand.hbm [shape: f32[1,32], index: 8, kind: input, shape index: {}]
  %s9 = inlined_call_operand.vmem [shape: bf16[32,64], index: 9, kind: input, shape index: {}]
  %s10 = inlined_call_operand.vmem [shape: bf16[64,32], index: 10, kind: input, shape index: {}]
  %s11 = inlined_call_operand.hbm [shape: f32[2,8,32], index: 11, kind: output, shape index: {}]
  %s12 = sld [smem:[#allocation0]]
  $region97: #{tpu_custom_call.1} parent=0
    _
  %s14 = ssub.s32 1, %s12
  %s15 = scalar_select 0, %s14, %s12
  $region1: #{tpu_custom_call.1} parent=0
    #allocation2 [shape = 'u8[512]{0}', space=vmem, size = 0x400, scoped, tag = 'input window, operand 3, single buffered']
    #allocation3 [shape = 's32[2]{0}', space=sflag, size = 0x8, scoped, tag = 'scoped memory for tpu_custom_call.1']
    #allocation4 [shape = 's32[2]{0}', space=sflag, size = 0x8, scoped, tag = 'scoped memory for tpu_custom_call.1']
    #allocation5 [shape = 'u8[8192]{0}', space=vmem, size = 0x2000, scoped, tag = 'input window, operand 5, single buffered']
    #allocation6 [shape = 's32[1]{0}', space=sflag, size = 0x4, scoped, tag = 'scoped memory for tpu_custom_call.1']
    #allocation7 [shape = 'u8[8192]{0}', space=vmem, size = 0x2000, scoped, tag = 'input window, operand 6, single buffered']
    #allocation8 [shape = 'u8[8192]{0}', space=vmem, size = 0x2000, scoped, tag = 'input window, operand 7, single buffered']
    #allocation9 [shape = 's32[1]{0}', space=sflag, size = 0x4, scoped, tag = 'scoped memory for tpu_custom_call.1']
    #allocation10 [shape = 'u8[512]{0}', space=vmem, size = 0x400, scoped, tag = 'input window, operand 8, single buffered']
    #allocation11 [shape = 'u8[8192]{0}', space=vmem, size = 0x2000, scoped, tag = 'output window, operand 0']
    %16 = vsyncpa [#allocation3], 0
    %17 = vsyncpa [#allocation6], 0
    %18 = vsyncpa [#allocation9], 0
    %19 = vsyncpa [#allocation4], 0
    %s20 = scalar_lea.sflag [#allocation4], 1
    %21 = vsyncpa %s20, 0
    loop: start=0, step=1, limit=4
    $region2: #{tpu_custom_call.1} parent=1 // loop_pre_header
      _
    $region3: #{tpu_custom_call.1} parent=1 // loop_header
      %s23 = sphi 0, %s27
      %p24 = scmp.ge.s32.totalorder %s23, 4
      %s33 = sphi 0, %s35
      %s36 = sphi 0, %s33
      %s37 = sphi 0, %s36
      %s53 = sphi 0, %s37
      %s59 = sphi 0, %s61
      %s62 = sphi 0, %s59
      %s63 = sphi 0, %s62
      %s79 = sphi 0, %s63
      %s83 = sphi 0, %s83
      %s85 = sphi 0, %s83
      %s86 = sphi 0, %s85
      %s100 = sphi 0, %s86
      %s104 = sphi 0, %s104
      %s106 = sphi 0, %s104
      %s107 = sphi 0, %s106
      %s121 = sphi 0, %s107
      %s125 = sphi 0, %s125
      %s127 = sphi 0, %s125
      %s128 = sphi 0, %s127
      %s142 = sphi 0, %s128
      %s146 = sphi 0, %s146
      %s148 = sphi 0, %s146
      %s149 = sphi 0, %s148
      %s163 = sphi 0, %s149
      %s167 = sphi 0, %s167
      %s169 = sphi 0, %s167
      %s170 = sphi 0, %s169
      %s184 = sphi 0, %s170
      %s188 = sphi 0, %s188
      %s190 = sphi 0, %s188
      %s191 = sphi 0, %s190
      %s205 = sphi 0, %s191
      %s209 = sphi 0, %s209
      %s211 = sphi 0, %s209
      %s212 = sphi 0, %s211
      %s226 = sphi 0, %s212
      %s230 = sphi 0, %s230
      %s232 = sphi 0, %s230
      %s233 = sphi 0, %s232
      %s247 = sphi 0, %s233
      %s251 = sphi 0, %s251
      %s253 = sphi 0, %s251
      %s254 = sphi 0, %s253
      %s268 = sphi 0, %s254
      %s274 = sphi 0, %s276
      %s277 = sphi 0, %s274
      %s278 = sphi 0, %s277
      %s294 = sphi 0, %s278
    $region4: #{tpu_custom_call.1} parent=1 // loop_header_branch
      %26 = sbr.rel (%p24) target = $region8
    $region5: #{tpu_custom_call.1} parent=1 // loop_body
      %s28 = ssub.s32 %s23, 1
      %s29 = ssub.s32 %s23, 2
      %s30 = sadd.s32 %s23, 1
      %s31 = ssub.s32 %s23, %s30
      %p32 = scmp.eq.s32.totalorder %s31, 0
      %s34 = sadd.s32 %s33, 1
      %s35 = scalar_select %p32, %s33, %s34
      %p38 = pneg %p32
      %p39 = scmp.eq.s32.totalorder %s23, 1
      %p40 = por %p38, %p39
      %p41 = scmp.ne.s32.totalorder %s33, %s36
      %p42 = scmp.eq.s32.totalorder %s23, 0
      %p43 = por %p41, %p42
      %p44 = scmp.ne.s32.totalorder %s33, %s36
      %p45 = scmp.eq.s32.totalorder %s28, 1
      %p46 = por %p44, %p45
      %p47 = scmp.ne.s32.totalorder %s36, %s37
      %p48 = scmp.eq.s32.totalorder %s28, 0
      %p49 = por %p47, %p48
      %p50 = scmp.ne.s32.totalorder %s36, %s37
      %p51 = scmp.eq.s32.totalorder %s29, 1
      %p52 = por %p50, %p51
      %p54 = scmp.ne.s32.totalorder %s37, %s53
      %p55 = scmp.eq.s32.totalorder %s29, 0
      %p56 = por %p54, %p55
      %s57 = ssub.s32 %s23, %s30
      %p58 = scmp.eq.s32.totalorder %s57, 0
      %s60 = sadd.s32 %s59, 1
      %s61 = scalar_select %p58, %s59, %s60
      %p64 = pneg %p58
      %p65 = scmp.eq.s32.totalorder %s23, 1
      %p66 = por %p64, %p65
      %p67 = scmp.ne.s32.totalorder %s59, %s62
      %p68 = scmp.eq.s32.totalorder %s23, 0
      %p69 = por %p67, %p68
      %p70 = scmp.ne.s32.totalorder %s59, %s62
      %p71 = scmp.eq.s32.totalorder %s28, 1
      %p72 = por %p70, %p71
      %p73 = scmp.ne.s32.totalorder %s62, %s63
      %p74 = scmp.eq.s32.totalorder %s28, 0
      %p75 = por %p73, %p74
      %p76 = scmp.ne.s32.totalorder %s62, %s63
      %p77 = scmp.eq.s32.totalorder %s29, 1
      %p78 = por %p76, %p77
      %p80 = scmp.ne.s32.totalorder %s63, %s79
      %p81 = scmp.eq.s32.totalorder %s29, 0
      %p82 = por %p80, %p81
      %s84 = sadd.s32 %s83, 1
      %p87 = scmp.eq.s32.totalorder %s23, 1
      %p88 = scmp.ne.s32.totalorder %s83, %s85
      %p89 = scmp.eq.s32.totalorder %s23, 0
      %p90 = por %p88, %p89
      %p91 = scmp.ne.s32.totalorder %s83, %s85
      %p92 = scmp.eq.s32.totalorder %s28, 1
      %p93 = por %p91, %p92
      %p94 = scmp.ne.s32.totalorder %s85, %s86
      %p95 = scmp.eq.s32.totalorder %s28, 0
      %p96 = por %p94, %p95
      %p97 = scmp.ne.s32.totalorder %s85, %s86
      %p98 = scmp.eq.s32.totalorder %s29, 1
      %p99 = por %p97, %p98
      %p101 = scmp.ne.s32.totalorder %s86, %s100
      %p102 = scmp.eq.s32.totalorder %s29, 0
      %p103 = por %p101, %p102
      %s105 = sadd.s32 %s104, 1
      %p108 = scmp.eq.s32.totalorder %s23, 1
      %p109 = scmp.ne.s32.totalorder %s104, %s106
      %p110 = scmp.eq.s32.totalorder %s23, 0
      %p111 = por %p109, %p110
      %p112 = scmp.ne.s32.totalorder %s104, %s106
      %p113 = scmp.eq.s32.totalorder %s28, 1
      %p114 = por %p112, %p113
      %p115 = scmp.ne.s32.totalorder %s106, %s107
      %p116 = scmp.eq.s32.totalorder %s28, 0
      %p117 = por %p115, %p116
      %p118 = scmp.ne.s32.totalorder %s106, %s107
      %p119 = scmp.eq.s32.totalorder %s29, 1
      %p120 = por %p118, %p119
      %p122 = scmp.ne.s32.totalorder %s107, %s121
      %p123 = scmp.eq.s32.totalorder %s29, 0
      %p124 = por %p122, %p123
      %s126 = sadd.s32 %s125, 1
      %p129 = scmp.eq.s32.totalorder %s23, 1
      %p130 = scmp.ne.s32.totalorder %s125, %s127
      %p131 = scmp.eq.s32.totalorder %s23, 0
      %p132 = por %p130, %p131
      %p133 = scmp.ne.s32.totalorder %s125, %s127
      %p134 = scmp.eq.s32.totalorder %s28, 1
      %p135 = por %p133, %p134
      %p136 = scmp.ne.s32.totalorder %s127, %s128
      %p137 = scmp.eq.s32.totalorder %s28, 0
      %p138 = por %p136, %p137
      %p139 = scmp.ne.s32.totalorder %s127, %s128
      %p140 = scmp.eq.s32.totalorder %s29, 1
      %p141 = por %p139, %p140
      %p143 = scmp.ne.s32.totalorder %s128, %s142
      %p144 = scmp.eq.s32.totalorder %s29, 0
      %p145 = por %p143, %p144
      %s147 = sadd.s32 %s146, 1
      %p150 = scmp.eq.s32.totalorder %s23, 1
      %p151 = scmp.ne.s32.totalorder %s146, %s148
      %p152 = scmp.eq.s32.totalorder %s23, 0
      %p153 = por %p151, %p152
      %p154 = scmp.ne.s32.totalorder %s146, %s148
      %p155 = scmp.eq.s32.totalorder %s28, 1
      %p156 = por %p154, %p155
      %p157 = scmp.ne.s32.totalorder %s148, %s149
      %p158 = scmp.eq.s32.totalorder %s28, 0
      %p159 = por %p157, %p158
      %p160 = scmp.ne.s32.totalorder %s148, %s149
      %p161 = scmp.eq.s32.totalorder %s29, 1
      %p162 = por %p160, %p161
      %p164 = scmp.ne.s32.totalorder %s149, %s163
      %p165 = scmp.eq.s32.totalorder %s29, 0
      %p166 = por %p164, %p165
      %s168 = sadd.s32 %s167, 1
      %p171 = scmp.eq.s32.totalorder %s23, 1
      %p172 = scmp.ne.s32.totalorder %s167, %s169
      %p173 = scmp.eq.s32.totalorder %s23, 0
      %p174 = por %p172, %p173
      %p175 = scmp.ne.s32.totalorder %s167, %s169
      %p176 = scmp.eq.s32.totalorder %s28, 1
      %p177 = por %p175, %p176
      %p178 = scmp.ne.s32.totalorder %s169, %s170
      %p179 = scmp.eq.s32.totalorder %s28, 0
      %p180 = por %p178, %p179
      %p181 = scmp.ne.s32.totalorder %s169, %s170
      %p182 = scmp.eq.s32.totalorder %s29, 1
      %p183 = por %p181, %p182
      %p185 = scmp.ne.s32.totalorder %s170, %s184
      %p186 = scmp.eq.s32.totalorder %s29, 0
      %p187 = por %p185, %p186
      %s189 = sadd.s32 %s188, 1
      %p192 = scmp.eq.s32.totalorder %s23, 1
      %p193 = scmp.ne.s32.totalorder %s188, %s190
      %p194 = scmp.eq.s32.totalorder %s23, 0
      %p195 = por %p193, %p194
      %p196 = scmp.ne.s32.totalorder %s188, %s190
      %p197 = scmp.eq.s32.totalorder %s28, 1
      %p198 = por %p196, %p197
      %p199 = scmp.ne.s32.totalorder %s190, %s191
      %p200 = scmp.eq.s32.totalorder %s28, 0
      %p201 = por %p199, %p200
      %p202 = scmp.ne.s32.totalorder %s190, %s191
      %p203 = scmp.eq.s32.totalorder %s29, 1
      %p204 = por %p202, %p203
      %p206 = scmp.ne.s32.totalorder %s191, %s205
      %p207 = scmp.eq.s32.totalorder %s29, 0
      %p208 = por %p206, %p207
      %s210 = sadd.s32 %s209, 1
      %p213 = scmp.eq.s32.totalorder %s23, 1
      %p214 = scmp.ne.s32.totalorder %s209, %s211
      %p215 = scmp.eq.s32.totalorder %s23, 0
      %p216 = por %p214, %p215
      %p217 = scmp.ne.s32.totalorder %s209, %s211
      %p218 = scmp.eq.s32.totalorder %s28, 1
      %p219 = por %p217, %p218
      %p220 = scmp.ne.s32.totalorder %s211, %s212
      %p221 = scmp.eq.s32.totalorder %s28, 0
      %p222 = por %p220, %p221
      %p223 = scmp.ne.s32.totalorder %s211, %s212
      %p224 = scmp.eq.s32.totalorder %s29, 1
      %p225 = por %p223, %p224
      %p227 = scmp.ne.s32.totalorder %s212, %s226
      %p228 = scmp.eq.s32.totalorder %s29, 0
      %p229 = por %p227, %p228
      %s231 = sadd.s32 %s230, 1
      %p234 = scmp.eq.s32.totalorder %s23, 1
      %p235 = scmp.ne.s32.totalorder %s230, %s232
      %p236 = scmp.eq.s32.totalorder %s23, 0
      %p237 = por %p235, %p236
      %p238 = scmp.ne.s32.totalorder %s230, %s232
      %p239 = scmp.eq.s32.totalorder %s28, 1
      %p240 = por %p238, %p239
      %p241 = scmp.ne.s32.totalorder %s232, %s233
      %p242 = scmp.eq.s32.totalorder %s28, 0
      %p243 = por %p241, %p242
      %p244 = scmp.ne.s32.totalorder %s232, %s233
      %p245 = scmp.eq.s32.totalorder %s29, 1
      %p246 = por %p244, %p245
      %p248 = scmp.ne.s32.totalorder %s233, %s247
      %p249 = scmp.eq.s32.totalorder %s29, 0
      %p250 = por %p248, %p249
      %s252 = sadd.s32 %s251, 1
      %p255 = scmp.eq.s32.totalorder %s23, 1
      %p256 = scmp.ne.s32.totalorder %s251, %s253
      %p257 = scmp.eq.s32.totalorder %s23, 0
      %p258 = por %p256, %p257
      %p259 = scmp.ne.s32.totalorder %s251, %s253
      %p260 = scmp.eq.s32.totalorder %s28, 1
      %p261 = por %p259, %p260
      %p262 = scmp.ne.s32.totalorder %s253, %s254
      %p263 = scmp.eq.s32.totalorder %s28, 0
      %p264 = por %p262, %p263
      %p265 = scmp.ne.s32.totalorder %s253, %s254
      %p266 = scmp.eq.s32.totalorder %s29, 1
      %p267 = por %p265, %p266
      %p269 = scmp.ne.s32.totalorder %s254, %s268
      %p270 = scmp.eq.s32.totalorder %s29, 0
      %p271 = por %p269, %p270
      %s272 = ssub.s32 %s23, %s30
      %p273 = scmp.eq.s32.totalorder %s272, 0
      %s275 = sadd.s32 %s274, 1
      %s276 = scalar_select %p273, %s274, %s275
      %p279 = pneg %p273
      %p280 = scmp.eq.s32.totalorder %s23, 1
      %p281 = por %p279, %p280
      %p282 = scmp.ne.s32.totalorder %s274, %s277
      %p283 = scmp.eq.s32.totalorder %s23, 0
      %p284 = por %p282, %p283
      %p285 = scmp.ne.s32.totalorder %s274, %s277
      %p286 = scmp.eq.s32.totalorder %s28, 1
      %p287 = por %p285, %p286
      %p288 = scmp.ne.s32.totalorder %s277, %s278
      %p289 = scmp.eq.s32.totalorder %s28, 0
      %p290 = por %p288, %p289
      %p291 = scmp.ne.s32.totalorder %s277, %s278
      %p292 = scmp.eq.s32.totalorder %s29, 1
      %p293 = por %p291, %p292
      %p295 = scmp.ne.s32.totalorder %s278, %s294
      %p296 = scmp.eq.s32.totalorder %s29, 0
      %p297 = por %p295, %p296
      %p298 = scmp.le.s32.totalorder 1, %s23
      %p299 = scmp.lt.s32.totalorder %s23, 3
      %p300 = pnand %p298, %p299
      %p301 = pneg %p300
      // Predicated region
      $region9: #{tpu_custom_call.1} parent=5 // pred_check
        _
      $region10: #{tpu_custom_call.1} parent=5 // pred_check_branch
        %303 = sbr.rel (%p300) target = $region12
      $region11: #{tpu_custom_call.1} parent=5 // pred_region
        %s304 = ssub.s32 %s23, 1
        // Predicated region
        $region13: #{tpu_custom_call.1} parent=11 // pred_check
          %p305 = pneg %p96
        $region14: #{tpu_custom_call.1} parent=11 // pred_check_branch
          %307 = sbr.rel (%p305) target = $region16
        $region15: #{tpu_custom_call.1} parent=11 // pred_region
          _
        $region16: #{tpu_custom_call.1} parent=11 // pred_fallthru
          _
        // Predicated region
        $region17: #{tpu_custom_call.1} parent=11 // pred_check
          %p308 = pneg %p117
        $region18: #{tpu_custom_call.1} parent=11 // pred_check_branch
          %310 = sbr.rel (%p308) target = $region20
        $region19: #{tpu_custom_call.1} parent=11 // pred_region
          %s312 = ssub.s32 16, 16
          %313 = vsyncadd [#allocation3], %s312
          %s315 = sshll.u32 [#allocation2], 4
          %s316 = int_to_ptr.vmem [resolvable:$true] %s315
          %318 = dma.hbm_to_vmem [thread:$0]  %s3, 16, %s316, [#allocation3]
        $region20: #{tpu_custom_call.1} parent=11 // pred_fallthru
          _
        // Predicated region
        $region21: #{tpu_custom_call.1} parent=11 // pred_check
          %p319 = pneg %p138
        $region22: #{tpu_custom_call.1} parent=11 // pred_check_branch
          %321 = sbr.rel (%p319) target = $region24
        $region23: #{tpu_custom_call.1} parent=11 // pred_region
          _
        $region24: #{tpu_custom_call.1} parent=11 // pred_fallthru
          _
        // Predicated region
        $region25: #{tpu_custom_call.1} parent=11 // pred_check
          %p322 = pneg %p159
        $region26: #{tpu_custom_call.1} parent=11 // pred_check_branch
          %324 = sbr.rel (%p322) target = $region28
        $region27: #{tpu_custom_call.1} parent=11 // pred_region
          %s326 = ssub.s32 256, 256
          %327 = vsyncadd [#allocation6], %s326
          %s328 = sshll.u32 [#allocation5], 4
          %s329 = int_to_ptr.vmem [resolvable:$true] %s328
          %334 = dma.hbm_to_vmem [thread:$0]  %s5, 256, %s329, [#allocation6], 64, 64, 4
        $region28: #{tpu_custom_call.1} parent=11 // pred_fallthru
          _
        // Predicated region
        $region29: #{tpu_custom_call.1} parent=11 // pred_check
          %p335 = pneg %p180
        $region30: #{tpu_custom_call.1} parent=11 // pred_check_branch
          %337 = sbr.rel (%p335) target = $region32
        $region31: #{tpu_custom_call.1} parent=11 // pred_region
          %s339 = ssub.s32 256, 256
          %340 = vsyncadd [#allocation6], %s339
          %s341 = sshll.u32 [#allocation7], 4
          %s342 = int_to_ptr.vmem [resolvable:$true] %s341
          %347 = dma.hbm_to_vmem [thread:$0]  %s6, 256, %s342, [#allocation6], 64, 64, 4
        $region32: #{tpu_custom_call.1} parent=11 // pred_fallthru
          _
        // Predicated region
        $region33: #{tpu_custom_call.1} parent=11 // pred_check
          %p348 = pneg %p201
        $region34: #{tpu_custom_call.1} parent=11 // pred_check_branch
          %350 = sbr.rel (%p348) target = $region36
        $region35: #{tpu_custom_call.1} parent=11 // pred_region
          %s352 = ssub.s32 256, 256
          %353 = vsyncadd [#allocation9], %s352
          %s354 = sshll.u32 [#allocation8], 4
          %s355 = int_to_ptr.vmem [resolvable:$true] %s354
          %360 = dma.hbm_to_vmem [thread:$0]  %s7, 256, %s355, [#allocation9], 64, 64, 4
        $region36: #{tpu_custom_call.1} parent=11 // pred_fallthru
          _
        // Predicated region
        $region37: #{tpu_custom_call.1} parent=11 // pred_check
          %p361 = pneg %p222
        $region38: #{tpu_custom_call.1} parent=11 // pred_check_branch
          %363 = sbr.rel (%p361) target = $region40
        $region39: #{tpu_custom_call.1} parent=11 // pred_region
          %s365 = ssub.s32 16, 16
          %366 = vsyncadd [#allocation9], %s365
          %s368 = sshll.u32 [#allocation10], 4
          %s369 = int_to_ptr.vmem [resolvable:$true] %s368
          %371 = dma.hbm_to_vmem [thread:$0]  %s8, 16, %s369, [#allocation9]
        $region40: #{tpu_custom_call.1} parent=11 // pred_fallthru
          _
        // Predicated region
        $region41: #{tpu_custom_call.1} parent=11 // pred_check
          %p372 = pneg %p243
        $region42: #{tpu_custom_call.1} parent=11 // pred_check_branch
          %374 = sbr.rel (%p372) target = $region44
        $region43: #{tpu_custom_call.1} parent=11 // pred_region
          _
        $region44: #{tpu_custom_call.1} parent=11 // pred_fallthru
          _
        // Predicated region
        $region45: #{tpu_custom_call.1} parent=11 // pred_check
          %p375 = pneg %p264
        $region46: #{tpu_custom_call.1} parent=11 // pred_check_branch
          %377 = sbr.rel (%p375) target = $region48
        $region47: #{tpu_custom_call.1} parent=11 // pred_region
          _
        $region48: #{tpu_custom_call.1} parent=11 // pred_fallthru
          _
      $region12: #{tpu_custom_call.1} parent=5 // pred_fallthru
        _
      %p378 = scmp.lt.s32.totalorder %s23, 2
      // Predicated region
      $region49: #{tpu_custom_call.1} parent=5 // pred_check
        %p379 = pneg %p378
      $region50: #{tpu_custom_call.1} parent=5 // pred_check_branch
        %381 = sbr.rel (%p379) target = $region52
      $region51: #{tpu_custom_call.1} parent=5 // pred_region
        // Predicated region
        $region53: #{tpu_custom_call.1} parent=51 // pred_check
          %p382 = pneg %p43
        $region54: #{tpu_custom_call.1} parent=51 // pred_check_branch
          %384 = sbr.rel (%p382) target = $region56
        $region55: #{tpu_custom_call.1} parent=51 // pred_region
          %p385 = scmp.lt.s32.totalorder %s23, 1
          %s386 = scalar_select %p385, %s23, 1
          %s387 = smul.addr %s386, 8
          %s388 = scalar_lea.vmem %s0, %s387
        $region56: #{tpu_custom_call.1} parent=51 // pred_fallthru
          _
        // Predicated region
        $region57: #{tpu_custom_call.1} parent=51 // pred_check
          %p389 = pneg %p69
        $region58: #{tpu_custom_call.1} parent=51 // pred_check_branch
          %391 = sbr.rel (%p389) target = $region60
        $region59: #{tpu_custom_call.1} parent=51 // pred_region
          %p392 = scmp.lt.s32.totalorder %s23, 1
          %s393 = scalar_select %p392, %s23, 1
          %s394 = scalar_lea.vmem %s1, %s393
        $region60: #{tpu_custom_call.1} parent=51 // pred_fallthru
          _
      $region52: #{tpu_custom_call.1} parent=5 // pred_fallthru
        _
      %p395 = scmp.le.s32.totalorder 1, %s23
      %p396 = scmp.lt.s32.totalorder %s23, 3
      %p397 = pnand %p395, %p396
      %p398 = pneg %p397
      // Predicated region
      $region61: #{tpu_custom_call.1} parent=5 // pred_check
        _
      $region62: #{tpu_custom_call.1} parent=5 // pred_check_branch
        %400 = sbr.rel (%p397) target = $region64
      $region63: #{tpu_custom_call.1} parent=5 // pred_region
        %s401 = ssub.s32 %s23, 1
        // Predicated region
        $region65: #{tpu_custom_call.1} parent=63 // pred_check
          %p402 = pneg %p117
        $region66: #{tpu_custom_call.1} parent=63 // pred_check_branch
          %404 = sbr.rel (%p402) target = $region68
        $region67: #{tpu_custom_call.1} parent=63 // pred_region
          %405 = dma.done [#allocation3], 16
        $region68: #{tpu_custom_call.1} parent=63 // pred_fallthru
          _
        // Predicated region
        $region69: #{tpu_custom_call.1} parent=63 // pred_check
          %p406 = pneg %p159
        $region70: #{tpu_custom_call.1} parent=63 // pred_check_branch
          %408 = sbr.rel (%p406) target = $region72
        $region71: #{tpu_custom_call.1} parent=63 // pred_region
          %409 = dma.done [#allocation6], 256
        $region72: #{tpu_custom_call.1} parent=63 // pred_fallthru
          _
        // Predicated region
        $region73: #{tpu_custom_call.1} parent=63 // pred_check
          %p410 = pneg %p180
        $region74: #{tpu_custom_call.1} parent=63 // pred_check_branch
          %412 = sbr.rel (%p410) target = $region76
        $region75: #{tpu_custom_call.1} parent=63 // pred_region
          %413 = dma.done [#allocation6], 256
        $region76: #{tpu_custom_call.1} parent=63 // pred_fallthru
          _
        // Predicated region
        $region77: #{tpu_custom_call.1} parent=63 // pred_check
          %p414 = pneg %p201
        $region78: #{tpu_custom_call.1} parent=63 // pred_check_branch
          %416 = sbr.rel (%p414) target = $region80
        $region79: #{tpu_custom_call.1} parent=63 // pred_region
          %417 = dma.done [#allocation9], 256
        $region80: #{tpu_custom_call.1} parent=63 // pred_fallthru
          _
        // Predicated region
        $region81: #{tpu_custom_call.1} parent=63 // pred_check
          %p418 = pneg %p222
        $region82: #{tpu_custom_call.1} parent=63 // pred_check_branch
          %420 = sbr.rel (%p418) target = $region84
        $region83: #{tpu_custom_call.1} parent=63 // pred_region
          %421 = dma.done [#allocation9], 16
        $region84: #{tpu_custom_call.1} parent=63 // pred_fallthru
          _
        %p422 = scmp.lt.s32.totalorder %s28, 1
        %s423 = scalar_select %p422, %s28, 1
        %s424 = smul.addr %s423, 8
        %s425 = scalar_lea.vmem %s0, %s424
        %p426 = pneg %p49
        %p427 = pneg %p46
        %p428 = scmp.lt.s32.totalorder %s28, 1
        %s429 = scalar_select %p428, %s28, 1
        %s430 = scalar_lea.vmem %s1, %s429
        %p431 = pneg %p75
        %p432 = pneg %p72
        %p433 = pneg %p96
        %p434 = pneg %p93
        %p435 = pneg %p117
        %p436 = pneg %p114
        %p437 = pneg %p138
        %p438 = pneg %p135
        %p439 = pneg %p159
        %p440 = pneg %p156
        %p441 = pneg %p180
        %p442 = pneg %p177
        %p443 = pneg %p201
        %p444 = pneg %p198
        %p445 = pneg %p222
        %p446 = pneg %p219
        %p447 = pneg %p243
        %p448 = pneg %p240
        %p449 = pneg %p264
        %p450 = pneg %p261
        %p451 = pneg %p290
        %p452 = pneg %p287
        %s453 = sand.u32 %s277, 1
        %s454 = scalar_lea.sflag [#allocation4], %s453
        %s455 = sand.u32 %s277, 1
        %s456 = smul.addr %s455, 8
        %s457 = scalar_lea.vmem [#allocation11], %s456
        %p458 = scmp.lt.s32.totalorder %s28, 1
        %s459 = scalar_select %p458, %s28, 1
        %s460 = smul.addr %s459, 8
        %s461 = scalar_lea.vmem %s0, %s460
        %p462 = scmp.lt.s32.totalorder %s28, 1
        %s463 = scalar_select %p462, %s28, 1
        %s464 = scalar_lea.vmem %s1, %s463
        %v466 = vld [vmem:[%s461] sm:$0xff]
        %v467 = vld [vmem:[%s464] sm:$0x1]
        %v468 = vmul.f32 %v466, %v466
        %vm469 = vcmask 261120
        %v470 = vsel %vm469, %v468, 0.0
        %471 = vadd.xlane.f32.xlu0 %v470
        %v472 = vpop.xlane.xlu0 %471
        %v473 = vrcp.pop 32.0
        %v474 = vmul.f32 %v472, %v473
        %v475 = vadd.f32 %v474, 1e-06
        %v476 = vrsqrt.pop %v475
        %v477 = vmul.f32 %v466, %v476
        %v478 = vld [vmem:[#allocation2] sm:$0x1]
        %v480 = vlaneseq
        %v481 = vshrl.u32 %v480, 7
        %v482 = vsub.s32 0, %v481
        %v483 = vrot.slane %v478, %v482
        %v485 = vmul.f32 %v477, %v483
        %v486 = vpack.c.bf16 %v485, %v485
        %v487 = vld [vmem:[%s4] sm:$0xf]
        %v488 = vld [vmem:[%s4 + $0x4] sm:$0xf]
        %v489 = vld [vmem:[%s4 + $0x8] sm:$0xf]
        %v490 = vld [vmem:[%s4 + $0xc] sm:$0xf]
        %v495 = vunpack.c.l.b16 %v487
        %v496 = vunpack.c.l.b16 %v488
        %v497 = vunpack.c.l.b16 %v489
        %v498 = vunpack.c.l.b16 %v490
        %v499 = vpack.c.b16 %v496, %v495
        %v500 = vpack.c.b16 %v498, %v497
        %v504 = vsel %vm469, %v486, 0
        %506 = vmatprep.subr.bf16.mxu0 0
        %507 = vmatpush1.bf16.msra.mxu0 %v499
        %508 = vmatprep.subr.bf16.mxu0 0
        %509 = vmatpush1.bf16.msra.mxu0 %v500
        %510 = vmatprep.subr.bf16.mxu0 0
        %511 = vmatpush1.bf16.msra.mxu0 0
        %512 = vmatprep.subr.bf16.mxu0 0
        %513 = vmatpush1.bf16.msra.mxu0 0
        %514 = vmatprep.subr.bf16.mxu0 0
        %515 = vmatpush1.bf16.msra.mxu0 0
        %516 = vmatprep.subr.bf16.mxu0 0
        %517 = vmatpush1.bf16.msra.mxu0 0
        %518 = vmatprep.subr.bf16.mxu0 0
        %519 = vmatpush1.bf16.msra.mxu0 0
        %520 = vmatprep.subr.bf16.mxu0 0
        %521 = vmatpush1.bf16.msra.mxu0 0
        %522 = vmatprep.subr.bf16.mxu0 0
        %523 = vmatpush1.bf16.msra.mxu0 0
        %524 = vmatprep.subr.bf16.mxu0 0
        %525 = vmatpush1.bf16.msra.mxu0 0
        %526 = vmatprep.subr.bf16.mxu0 0
        %527 = vmatpush1.bf16.msra.mxu0 0
        %528 = vmatprep.subr.bf16.mxu0 0
        %529 = vmatpush1.bf16.msra.mxu0 0
        %530 = vmatprep.subr.bf16.mxu0 0
        %531 = vmatpush1.bf16.msra.mxu0 0
        %532 = vmatprep.subr.bf16.mxu0 0
        %533 = vmatpush1.bf16.msra.mxu0 0
        %534 = vmatprep.subr.bf16.mxu0 0
        %535 = vmatpush1.bf16.msra.mxu0 0
        %536 = vmatprep.subr.bf16.mxu0 0
        %537 = vmatpush1.bf16.msra.mxu0 0
        %538 = vmatprep.mubr.bf16.mxu0 0
        %539 = vmatmul.mubr.bf16.gmra.mrb[0].mxu0 %v504
        %v540 = vpop.f32.mrb[0].mxu0
        %v541 = vadd.f32 0.0, %v540
        %v542 = vpop.f32.mrb[0].mxu0
        %v543 = vpop.f32.mrb[0].mxu0
        %v544 = vpop.f32.mrb[0].mxu0
        %545 = vdwg.mxu0
        %v546 = vld [vmem:[#allocation5] sm:$0xf]
        %v547 = vld [vmem:[#allocation5 + $0x4] sm:$0xf]
        %v548 = vld [vmem:[#allocation5 + $0x8] sm:$0xf]
        %v549 = vld [vmem:[#allocation5 + $0xc] sm:$0xf]
        %v554 = vunpack.c.l.b16 %v546
        %v555 = vunpack.c.l.b16 %v547
        %v556 = vunpack.c.l.b16 %v548
        %v557 = vunpack.c.l.b16 %v549
        %v558 = vpack.c.b16 %v555, %v554
        %v559 = vpack.c.b16 %v557, %v556
        %562 = vmatprep.subr.bf16.mxu0 0
        %563 = vmatpush1.bf16.msra.mxu0 %v558
        %564 = vmatprep.subr.bf16.mxu0 0
        %565 = vmatpush1.bf16.msra.mxu0 %v559
        %566 = vmatprep.subr.bf16.mxu0 0
        %567 = vmatpush1.bf16.msra.mxu0 0
        %568 = vmatprep.subr.bf16.mxu0 0
        %569 = vmatpush1.bf16.msra.mxu0 0
        %570 = vmatprep.subr.bf16.mxu0 0
        %571 = vmatpush1.bf16.msra.mxu0 0
        %572 = vmatprep.subr.bf16.mxu0 0
        %573 = vmatpush1.bf16.msra.mxu0 0
        %574 = vmatprep.subr.bf16.mxu0 0
        %575 = vmatpush1.bf16.msra.mxu0 0
        %576 = vmatprep.subr.bf16.mxu0 0
        %577 = vmatpush1.bf16.msra.mxu0 0
        %578 = vmatprep.subr.bf16.mxu0 0
        %579 = vmatpush1.bf16.msra.mxu0 0
        %580 = vmatprep.subr.bf16.mxu0 0
        %581 = vmatpush1.bf16.msra.mxu0 0
        %582 = vmatprep.subr.bf16.mxu0 0
        %583 = vmatpush1.bf16.msra.mxu0 0
        %584 = vmatprep.subr.bf16.mxu0 0
        %585 = vmatpush1.bf16.msra.mxu0 0
        %586 = vmatprep.subr.bf16.mxu0 0
        %587 = vmatpush1.bf16.msra.mxu0 0
        %588 = vmatprep.subr.bf16.mxu0 0
        %589 = vmatpush1.bf16.msra.mxu0 0
        %590 = vmatprep.subr.bf16.mxu0 0
        %591 = vmatpush1.bf16.msra.mxu0 0
        %592 = vmatprep.subr.bf16.mxu0 0
        %593 = vmatpush1.bf16.msra.mxu0 0
        %594 = vmatprep.mubr.bf16.mxu0 0
        %595 = vmatmul.mubr.bf16.gmra.mrb[0].mxu0 %v504
        %v596 = vpop.f32.mrb[0].mxu0
        %v597 = vadd.f32 0.0, %v596
        %v598 = vpop.f32.mrb[0].mxu0
        %v599 = vpop.f32.mrb[0].mxu0
        %v600 = vpop.f32.mrb[0].mxu0
        %601 = vdwg.mxu0
        %v602 = vld [vmem:[#allocation7] sm:$0xf]
        %v603 = vld [vmem:[#allocation7 + $0x4] sm:$0xf]
        %v604 = vld [vmem:[#allocation7 + $0x8] sm:$0xf]
        %v605 = vld [vmem:[#allocation7 + $0xc] sm:$0xf]
        %v610 = vunpack.c.l.b16 %v602
        %v611 = vunpack.c.l.b16 %v603
        %v612 = vunpack.c.l.b16 %v604
        %v613 = vunpack.c.l.b16 %v605
        %v614 = vpack.c.b16 %v611, %v610
        %v615 = vpack.c.b16 %v613, %v612
        %618 = vmatprep.subr.bf16.mxu0 0
        %619 = vmatpush1.bf16.msra.mxu0 %v614
        %620 = vmatprep.subr.bf16.mxu0 0
        %621 = vmatpush1.bf16.msra.mxu0 %v615
        %622 = vmatprep.subr.bf16.mxu0 0
        %623 = vmatpush1.bf16.msra.mxu0 0
        %624 = vmatprep.subr.bf16.mxu0 0
        %625 = vmatpush1.bf16.msra.mxu0 0
        %626 = vmatprep.subr.bf16.mxu0 0
        %627 = vmatpush1.bf16.msra.mxu0 0
        %628 = vmatprep.subr.bf16.mxu0 0
        %629 = vmatpush1.bf16.msra.mxu0 0
        %630 = vmatprep.subr.bf16.mxu0 0
        %631 = vmatpush1.bf16.msra.mxu0 0
        %632 = vmatprep.subr.bf16.mxu0 0
        %633 = vmatpush1.bf16.msra.mxu0 0
        %634 = vmatprep.subr.bf16.mxu0 0
        %635 = vmatpush1.bf16.msra.mxu0 0
        %636 = vmatprep.subr.bf16.mxu0 0
        %637 = vmatpush1.bf16.msra.mxu0 0
        %638 = vmatprep.subr.bf16.mxu0 0
        %639 = vmatpush1.bf16.msra.mxu0 0
        %640 = vmatprep.subr.bf16.mxu0 0
        %641 = vmatpush1.bf16.msra.mxu0 0
        %642 = vmatprep.subr.bf16.mxu0 0
        %643 = vmatpush1.bf16.msra.mxu0 0
        %644 = vmatprep.subr.bf16.mxu0 0
        %645 = vmatpush1.bf16.msra.mxu0 0
        %646 = vmatprep.subr.bf16.mxu0 0
        %647 = vmatpush1.bf16.msra.mxu0 0
        %648 = vmatprep.subr.bf16.mxu0 0
        %649 = vmatpush1.bf16.msra.mxu0 0
        %650 = vmatprep.mubr.bf16.mxu0 0
        %651 = vmatmul.mubr.bf16.gmra.mrb[0].mxu0 %v504
        %v652 = vpop.f32.mrb[0].mxu0
        %v653 = vadd.f32 0.0, %v652
        %v654 = vpop.f32.mrb[0].mxu0
        %v655 = vpop.f32.mrb[0].mxu0
        %v656 = vpop.f32.mrb[0].mxu0
        %657 = vdwg.mxu0
        %v658 = vpack.c.bf16 %v541, %v541
        %v659 = vpack.c.bf16 %v597, %v597
        %v660 = vpack.c.bf16 %v653, %v653
        %v661 = vld [vmem:[%s2] sm:$0xf]
        %v662 = vunpack.c.l.bf16 %v661
        %vm663 = vcmask 64512
        %v665 = vsel %vm663, %v658, 0
        %v668 = vsel %vm663, %v659, 0
        %670 = vmatprep.subr.bf16.mxu0 0
        %671 = vmatpush1.bf16.xpose.msra.mxu0 %v668
        %672 = vmatprep.subr.bf16.mxu0 0
        %673 = vmatpush1.bf16.xpose.msra.mxu0 0
        %674 = vmatprep.subr.bf16.mxu0 0
        %675 = vmatpush1.bf16.xpose.msra.mxu0 0
        %676 = vmatprep.subr.bf16.mxu0 0
        %677 = vmatpush1.bf16.xpose.msra.mxu0 0
        %678 = vmatprep.subr.bf16.mxu0 0
        %679 = vmatpush1.bf16.xpose.msra.mxu0 0
        %680 = vmatprep.subr.bf16.mxu0 0
        %681 = vmatpush1.bf16.xpose.msra.mxu0 0
        %682 = vmatprep.subr.bf16.mxu0 0
        %683 = vmatpush1.bf16.xpose.msra.mxu0 0
        %684 = vmatprep.subr.bf16.mxu0 0
        %685 = vmatpush1.bf16.xpose.msra.mxu0 0
        %686 = vmatprep.subr.bf16.mxu0 0
        %687 = vmatpush1.bf16.xpose.msra.mxu0 0
        %688 = vmatprep.subr.bf16.mxu0 0
        %689 = vmatpush1.bf16.xpose.msra.mxu0 0
        %690 = vmatprep.subr.bf16.mxu0 0
        %691 = vmatpush1.bf16.xpose.msra.mxu0 0
        %692 = vmatprep.subr.bf16.mxu0 0
        %693 = vmatpush1.bf16.xpose.msra.mxu0 0
        %694 = vmatprep.subr.bf16.mxu0 0
        %695 = vmatpush1.bf16.xpose.msra.mxu0 0
        %696 = vmatprep.subr.bf16.mxu0 0
        %697 = vmatpush1.bf16.xpose.msra.mxu0 0
        %698 = vmatprep.subr.bf16.mxu0 0
        %699 = vmatpush1.bf16.xpose.msra.mxu0 0
        %700 = vmatprep.subr.bf16.mxu0 0
        %701 = vmatpush1.bf16.xpose.msra.mxu0 0
        %702 = vmatprep.mubr.bf16.mxu0 0
        %703 = vmatmul.mubr.bf16.gmra.mrb[0].mxu0 %v665
        %v704 = vpop.f32.mrb[0].mxu0
        %v705 = vadd.f32 %v662, %v704
        %v706 = vpop.f32.mrb[0].mxu0
        %v707 = vpop.f32.mrb[0].mxu0
        %v708 = vpop.f32.mrb[0].mxu0
        %709 = vdwg.mxu0
        %v711 = vlaneseq
        %v712 = vshrl.u32 %v711, 7
        %v713 = vsub.s32 0, %v712
        %v714 = vrot.slane %v467, %v713
        %v716 = vadd.f32 %v705, %v714
        %v717 = vsel %vm663, %v716, -inf
        %718 = vmax.xlane.f32.xlu0 %v717
        %v719 = vpop.xlane.xlu0 %718
        %v720 = vsub.f32 %v716, %v719
        %v721 = vmul.f32 %v720, 1.442695
        %v722 = vpow.pop %v721
        %v723 = vsel %vm663, %v722, 0.0
        %724 = vadd.xlane.f32.xlu0 %v723
        %v725 = vpop.xlane.xlu0 %724
        %v726 = vrcp.pop %v725
        %v727 = vmul.f32 %v722, %v726
        %v728 = vpack.c.bf16 %v727, %v727
        %v730 = vsel %vm663, %v728, 0
        %vm732 = vcmask 1043456
        %v734 = vsel %vm732, %v660, 0
        %736 = vmatprep.subr.bf16.mxu0 0
        %737 = vmatpush1.bf16.msra.mxu0 %v734
        %738 = vmatprep.subr.bf16.mxu0 0
        %739 = vmatpush1.bf16.msra.mxu0 0
        %740 = vmatprep.subr.bf16.mxu0 0
        %741 = vmatpush1.bf16.msra.mxu0 0
        %742 = vmatprep.subr.bf16.mxu0 0
        %743 = vmatpush1.bf16.msra.mxu0 0
        %744 = vmatprep.subr.bf16.mxu0 0
        %745 = vmatpush1.bf16.msra.mxu0 0
        %746 = vmatprep.subr.bf16.mxu0 0
        %747 = vmatpush1.bf16.msra.mxu0 0
        %748 = vmatprep.subr.bf16.mxu0 0
        %749 = vmatpush1.bf16.msra.mxu0 0
        %750 = vmatprep.subr.bf16.mxu0 0
        %751 = vmatpush1.bf16.msra.mxu0 0
        %752 = vmatprep.subr.bf16.mxu0 0
        %753 = vmatpush1.bf16.msra.mxu0 0
        %754 = vmatprep.subr.bf16.mxu0 0
        %755 = vmatpush1.bf16.msra.mxu0 0
        %756 = vmatprep.subr.bf16.mxu0 0
        %757 = vmatpush1.bf16.msra.mxu0 0
        %758 = vmatprep.subr.bf16.mxu0 0
        %759 = vmatpush1.bf16.msra.mxu0 0
        %760 = vmatprep.subr.bf16.mxu0 0
        %761 = vmatpush1.bf16.msra.mxu0 0
        %762 = vmatprep.subr.bf16.mxu0 0
        %763 = vmatpush1.bf16.msra.mxu0 0
        %764 = vmatprep.subr.bf16.mxu0 0
        %765 = vmatpush1.bf16.msra.mxu0 0
        %766 = vmatprep.subr.bf16.mxu0 0
        %767 = vmatpush1.bf16.msra.mxu0 0
        %768 = vmatprep.mubr.bf16.mxu0 0
        %769 = vmatmul.mubr.bf16.gmra.mrb[0].mxu0 %v730
        %v770 = vpop.f32.mrb[0].mxu0
        %v771 = vadd.f32 0.0, %v770
        %v772 = vpop.f32.mrb[0].mxu0
        %v773 = vpop.f32.mrb[0].mxu0
        %v774 = vpop.f32.mrb[0].mxu0
        %775 = vdwg.mxu0
        %v776 = vpack.c.bf16 %v771, %v771
        %v777 = vld [vmem:[#allocation8] sm:$0xf]
        %s778 = scalar_lea.vmem %s2, 4
        %v779 = vld [vmem:[%s778] sm:$0xf]
        %v780 = vunpack.c.l.bf16 %v779
        %782 = vrot.lane.b32.xlu0 %v658, 120
        %v783 = vpop.permute.xlu0 %782
        %785 = vrot.lane.b32.xlu0 %v659, 120
        %v786 = vpop.permute.xlu0 %785
        %v788 = vsel %vm663, %v783, 0
        %v791 = vsel %vm663, %v786, 0
        %793 = vmatprep.subr.bf16.mxu0 0
        %794 = vmatpush1.bf16.xpose.msra.mxu0 %v791
        %795 = vmatprep.subr.bf16.mxu0 0
        %796 = vmatpush1.bf16.xpose.msra.mxu0 0
        %797 = vmatprep.subr.bf16.mxu0 0
        %798 = vmatpush1.bf16.xpose.msra.mxu0 0
        %799 = vmatprep.subr.bf16.mxu0 0
        %800 = vmatpush1.bf16.xpose.msra.mxu0 0
        %801 = vmatprep.subr.bf16.mxu0 0
        %802 = vmatpush1.bf16.xpose.msra.mxu0 0
        %803 = vmatprep.subr.bf16.mxu0 0
        %804 = vmatpush1.bf16.xpose.msra.mxu0 0
        %805 = vmatprep.subr.bf16.mxu0 0
        %806 = vmatpush1.bf16.xpose.msra.mxu0 0
        %807 = vmatprep.subr.bf16.mxu0 0
        %808 = vmatpush1.bf16.xpose.msra.mxu0 0
        %809 = vmatprep.subr.bf16.mxu0 0
        %810 = vmatpush1.bf16.xpose.msra.mxu0 0
        %811 = vmatprep.subr.bf16.mxu0 0
        %812 = vmatpush1.bf16.xpose.msra.mxu0 0
        %813 = vmatprep.subr.bf16.mxu0 0
        %814 = vmatpush1.bf16.xpose.msra.mxu0 0
        %815 = vmatprep.subr.bf16.mxu0 0
        %816 = vmatpush1.bf16.xpose.msra.mxu0 0
        %817 = vmatprep.subr.bf16.mxu0 0
        %818 = vmatpush1.bf16.xpose.msra.mxu0 0
        %819 = vmatprep.subr.bf16.mxu0 0
        %820 = vmatpush1.bf16.xpose.msra.mxu0 0
        %821 = vmatprep.subr.bf16.mxu0 0
        %822 = vmatpush1.bf16.xpose.msra.mxu0 0
        %823 = vmatprep.subr.bf16.mxu0 0
        %824 = vmatpush1.bf16.xpose.msra.mxu0 0
        %825 = vmatprep.mubr.bf16.mxu0 0
        %826 = vmatmul.mubr.bf16.gmra.mrb[0].mxu0 %v788
        %v827 = vpop.f32.mrb[0].mxu0
        %v828 = vadd.f32 %v780, %v827
        %v829 = vpop.f32.mrb[0].mxu0
        %v830 = vpop.f32.mrb[0].mxu0
        %v831 = vpop.f32.mrb[0].mxu0
        %832 = vdwg.mxu0
        %v833 = vadd.f32 %v828, %v714
        %v834 = vsel %vm663, %v833, -inf
        %835 = vmax.xlane.f32.xlu0 %v834
        %v836 = vpop.xlane.xlu0 %835
        %v837 = vsub.f32 %v833, %v836
        %v838 = vmul.f32 %v837, 1.442695
        %v839 = vpow.pop %v838
        %v840 = vsel %vm663, %v839, 0.0
        %841 = vadd.xlane.f32.xlu0 %v840
        %v842 = vpop.xlane.xlu0 %841
        %v843 = vrcp.pop %v842
        %v844 = vmul.f32 %v839, %v843
        %v845 = vpack.c.bf16 %v844, %v844
        %847 = vrot.lane.b32.xlu0 %v660, 120
        %v848 = vpop.permute.xlu0 %847
        %v850 = vsel %vm663, %v845, 0
        %v853 = vsel %vm732, %v848, 0
        %855 = vmatprep.subr.bf16.mxu0 0
        %856 = vmatpush1.bf16.msra.mxu0 %v853
        %857 = vmatprep.subr.bf16.mxu0 0
        %858 = vmatpush1.bf16.msra.mxu0 0
        %859 = vmatprep.subr.bf16.mxu0 0
        %860 = vmatpush1.bf16.msra.mxu0 0
        %861 = vmatprep.subr.bf16.mxu0 0
        %862 = vmatpush1.bf16.msra.mxu0 0
        %863 = vmatprep.subr.bf16.mxu0 0
        %864 = vmatpush1.bf16.msra.mxu0 0
        %865 = vmatprep.subr.bf16.mxu0 0
        %866 = vmatpush1.bf16.msra.mxu0 0
        %867 = vmatprep.subr.bf16.mxu0 0
        %868 = vmatpush1.bf16.msra.mxu0 0
        %869 = vmatprep.subr.bf16.mxu0 0
        %870 = vmatpush1.bf16.msra.mxu0 0
        %871 = vmatprep.subr.bf16.mxu0 0
        %872 = vmatpush1.bf16.msra.mxu0 0
        %873 = vmatprep.subr.bf16.mxu0 0
        %874 = vmatpush1.bf16.msra.mxu0 0
        %875 = vmatprep.subr.bf16.mxu0 0
        %876 = vmatpush1.bf16.msra.mxu0 0
        %877 = vmatprep.subr.bf16.mxu0 0
        %878 = vmatpush1.bf16.msra.mxu0 0
        %879 = vmatprep.subr.bf16.mxu0 0
        %880 = vmatpush1.bf16.msra.mxu0 0
        %881 = vmatprep.subr.bf16.mxu0 0
        %882 = vmatpush1.bf16.msra.mxu0 0
        %883 = vmatprep.subr.bf16.mxu0 0
        %884 = vmatpush1.bf16.msra.mxu0 0
        %885 = vmatprep.subr.bf16.mxu0 0
        %886 = vmatpush1.bf16.msra.mxu0 0
        %887 = vmatprep.mubr.bf16.mxu0 0
        %888 = vmatmul.mubr.bf16.gmra.mrb[0].mxu0 %v850
        %v889 = vpop.f32.mrb[0].mxu0
        %v890 = vadd.f32 0.0, %v889
        %v891 = vpop.f32.mrb[0].mxu0
        %v892 = vpop.f32.mrb[0].mxu0
        %v893 = vpop.f32.mrb[0].mxu0
        %894 = vdwg.mxu0
        %v895 = vpack.c.bf16 %v890, %v890
        %v896 = vld [vmem:[#allocation8 + $0x4] sm:$0xf]
        %v898 = vsel %vm663, %v895, 0
        %v901 = vsel %vm732, %v896, 0
        %903 = vmatprep.subr.bf16.mxu0 0
        %904 = vmatpush1.bf16.msra.mxu0 %v901
        %905 = vmatprep.subr.bf16.mxu0 0
        %906 = vmatpush1.bf16.msra.mxu0 0
        %907 = vmatprep.subr.bf16.mxu0 0
        %908 = vmatpush1.bf16.msra.mxu0 0
        %909 = vmatprep.subr.bf16.mxu0 0
        %910 = vmatpush1.bf16.msra.mxu0 0
        %911 = vmatprep.subr.bf16.mxu0 0
        %912 = vmatpush1.bf16.msra.mxu0 0
        %913 = vmatprep.subr.bf16.mxu0 0
        %914 = vmatpush1.bf16.msra.mxu0 0
        %915 = vmatprep.subr.bf16.mxu0 0
        %916 = vmatpush1.bf16.msra.mxu0 0
        %917 = vmatprep.subr.bf16.mxu0 0
        %918 = vmatpush1.bf16.msra.mxu0 0
        %919 = vmatprep.subr.bf16.mxu0 0
        %920 = vmatpush1.bf16.msra.mxu0 0
        %921 = vmatprep.subr.bf16.mxu0 0
        %922 = vmatpush1.bf16.msra.mxu0 0
        %923 = vmatprep.subr.bf16.mxu0 0
        %924 = vmatpush1.bf16.msra.mxu0 0
        %925 = vmatprep.subr.bf16.mxu0 0
        %926 = vmatpush1.bf16.msra.mxu0 0
        %927 = vmatprep.subr.bf16.mxu0 0
        %928 = vmatpush1.bf16.msra.mxu0 0
        %929 = vmatprep.subr.bf16.mxu0 0
        %930 = vmatpush1.bf16.msra.mxu0 0
        %931 = vmatprep.subr.bf16.mxu0 0
        %932 = vmatpush1.bf16.msra.mxu0 0
        %933 = vmatprep.subr.bf16.mxu0 0
        %934 = vmatpush1.bf16.msra.mxu0 0
        %935 = vmatprep.mubr.bf16.mxu0 0
        %936 = vmatmul.mubr.bf16.gmra.mrb[0].mxu0 %v898
        %v937 = vpop.f32.mrb[0].mxu0
        %v938 = vadd.f32 0.0, %v937
        %v939 = vpop.f32.mrb[0].mxu0
        %v940 = vpop.f32.mrb[0].mxu0
        %v941 = vpop.f32.mrb[0].mxu0
        %942 = vdwg.mxu0
        %v944 = vsel %vm663, %v776, 0
        %v947 = vsel %vm732, %v777, 0
        %949 = vmatprep.subr.bf16.mxu0 0
        %950 = vmatpush1.bf16.msra.mxu0 %v947
        %951 = vmatprep.subr.bf16.mxu0 0
        %952 = vmatpush1.bf16.msra.mxu0 0
        %953 = vmatprep.subr.bf16.mxu0 0
        %954 = vmatpush1.bf16.msra.mxu0 0
        %955 = vmatprep.subr.bf16.mxu0 0
        %956 = vmatpush1.bf16.msra.mxu0 0
        %957 = vmatprep.subr.bf16.mxu0 0
        %958 = vmatpush1.bf16.msra.mxu0 0
        %959 = vmatprep.subr.bf16.mxu0 0
        %960 = vmatpush1.bf16.msra.mxu0 0
        %961 = vmatprep.subr.bf16.mxu0 0
        %962 = vmatpush1.bf16.msra.mxu0 0
        %963 = vmatprep.subr.bf16.mxu0 0
        %964 = vmatpush1.bf16.msra.mxu0 0
        %965 = vmatprep.subr.bf16.mxu0 0
        %966 = vmatpush1.bf16.msra.mxu0 0
        %967 = vmatprep.subr.bf16.mxu0 0
        %968 = vmatpush1.bf16.msra.mxu0 0
        %969 = vmatprep.subr.bf16.mxu0 0
        %970 = vmatpush1.bf16.msra.mxu0 0
        %971 = vmatprep.subr.bf16.mxu0 0
        %972 = vmatpush1.bf16.msra.mxu0 0
        %973 = vmatprep.subr.bf16.mxu0 0
        %974 = vmatpush1.bf16.msra.mxu0 0
        %975 = vmatprep.subr.bf16.mxu0 0
        %976 = vmatpush1.bf16.msra.mxu0 0
        %977 = vmatprep.subr.bf16.mxu0 0
        %978 = vmatpush1.bf16.msra.mxu0 0
        %979 = vmatprep.subr.bf16.mxu0 0
        %980 = vmatpush1.bf16.msra.mxu0 0
        %981 = vmatprep.mubr.bf16.mxu0 0
        %982 = vmatmul.mubr.bf16.gmra.mrb[0].mxu0 %v944
        %v983 = vpop.f32.mrb[0].mxu0
        %v984 = vadd.f32 %v938, %v983
        %v985 = vpop.f32.mrb[0].mxu0
        %v986 = vpop.f32.mrb[0].mxu0
        %v987 = vpop.f32.mrb[0].mxu0
        %988 = vdwg.mxu0
        %s989 = scalar_lea.vmem %s2, 8
        %v990 = vld [vmem:[%s989] sm:$0xf]
        %v991 = vunpack.c.l.bf16 %v990
        %992 = vrot.lane.b32.xlu0 %v658, 112
        %v993 = vpop.permute.xlu0 %992
        %994 = vrot.lane.b32.xlu0 %v659, 112
        %v995 = vpop.permute.xlu0 %994
        %v997 = vsel %vm663, %v993, 0
        %v1000 = vsel %vm663, %v995, 0
        %1002 = vmatprep.subr.bf16.mxu0 0
        %1003 = vmatpush1.bf16.xpose.msra.mxu0 %v1000
        %1004 = vmatprep.subr.bf16.mxu0 0
        %1005 = vmatpush1.bf16.xpose.msra.mxu0 0
        %1006 = vmatprep.subr.bf16.mxu0 0
        %1007 = vmatpush1.bf16.xpose.msra.mxu0 0
        %1008 = vmatprep.subr.bf16.mxu0 0
        %1009 = vmatpush1.bf16.xpose.msra.mxu0 0
        %1010 = vmatprep.subr.bf16.mxu0 0
        %1011 = vmatpush1.bf16.xpose.msra.mxu0 0
        %1012 = vmatprep.subr.bf16.mxu0 0
        %1013 = vmatpush1.bf16.xpose.msra.mxu0 0
        %1014 = vmatprep.subr.bf16.mxu0 0
        %1015 = vmatpush1.bf16.xpose.msra.mxu0 0
        %1016 = vmatprep.subr.bf16.mxu0 0
        %1017 = vmatpush1.bf16.xpose.msra.mxu0 0
        %1018 = vmatprep.subr.bf16.mxu0 0
        %1019 = vmatpush1.bf16.xpose.msra.mxu0 0
        %1020 = vmatprep.subr.bf16.mxu0 0
        %1021 = vmatpush1.bf16.xpose.msra.mxu0 0
        %1022 = vmatprep.subr.bf16.mxu0 0
        %1023 = vmatpush1.bf16.xpose.msra.mxu0 0
        %1024 = vmatprep.subr.bf16.mxu0 0
        %1025 = vmatpush1.bf16.xpose.msra.mxu0 0
        %1026 = vmatprep.subr.bf16.mxu0 0
        %1027 = vmatpush1.bf16.xpose.msra.mxu0 0
        %1028 = vmatprep.subr.bf16.mxu0 0
        %1029 = vmatpush1.bf16.xpose.msra.mxu0 0
        %1030 = vmatprep.subr.bf16.mxu0 0
        %1031 = vmatpush1.bf16.xpose.msra.mxu0 0
        %1032 = vmatprep.subr.bf16.mxu0 0
        %1033 = vmatpush1.bf16.xpose.msra.mxu0 0
        %1034 = vmatprep.mubr.bf16.mxu0 0
        %1035 = vmatmul.mubr.bf16.gmra.mrb[0].mxu0 %v997
        %v1036 = vpop.f32.mrb[0].mxu0
        %v1037 = vadd.f32 %v991, %v1036
        %v1038 = vpop.f32.mrb[0].mxu0
        %v1039 = vpop.f32.mrb[0].mxu0
        %v1040 = vpop.f32.mrb[0].mxu0
        %1041 = vdwg.mxu0
        %v1042 = vadd.f32 %v1037, %v714
        %v1043 = vsel %vm663, %v1042, -inf
        %1044 = vmax.xlane.f32.xlu0 %v1043
        %v1045 = vpop.xlane.xlu0 %1044
        %v1046 = vsub.f32 %v1042, %v1045
        %v1047 = vmul.f32 %v1046, 1.442695
        %v1048 = vpow.pop %v1047
        %v1049 = vsel %vm663, %v1048, 0.0
        %1050 = vadd.xlane.f32.xlu0 %v1049
        %v1051 = vpop.xlane.xlu0 %1050
        %v1052 = vrcp.pop %v1051
        %v1053 = vmul.f32 %v1048, %v1052
        %v1054 = vpack.c.bf16 %v1053, %v1053
        %1055 = vrot.lane.b32.xlu0 %v660, 112
        %v1056 = vpop.permute.xlu0 %1055
        %v1058 = vsel %vm663, %v1054, 0
        %v1061 = vsel %vm732, %v1056, 0
        %1063 = vmatprep.subr.bf16.mxu0 0
        %1064 = vmatpush1.bf16.msra.mxu0 %v1061
        %1065 = vmatprep.subr.bf16.mxu0 0
        %1066 = vmatpush1.bf16.msra.mxu0 0
        %1067 = vmatprep.subr.bf16.mxu0 0
        %1068 = vmatpush1.bf16.msra.mxu0 0
        %1069 = vmatprep.subr.bf16.mxu0 0
        %1070 = vmatpush1.bf16.msra.mxu0 0
        %1071 = vmatprep.subr.bf16.mxu0 0
        %1072 = vmatpush1.bf16.msra.mxu0 0
        %1073 = vmatprep.subr.bf16.mxu0 0
        %1074 = vmatpush1.bf16.msra.mxu0 0
        %1075 = vmatprep.subr.bf16.mxu0 0
        %1076 = vmatpush1.bf16.msra.mxu0 0
        %1077 = vmatprep.subr.bf16.mxu0 0
        %1078 = vmatpush1.bf16.msra.mxu0 0
        %1079 = vmatprep.subr.bf16.mxu0 0
        %1080 = vmatpush1.bf16.msra.mxu0 0
        %1081 = vmatprep.subr.bf16.mxu0 0
        %1082 = vmatpush1.bf16.msra.mxu0 0
        %1083 = vmatprep.subr.bf16.mxu0 0
        %1084 = vmatpush1.bf16.msra.mxu0 0
        %1085 = vmatprep.subr.bf16.mxu0 0
        %1086 = vmatpush1.bf16.msra.mxu0 0
        %1087 = vmatprep.subr.bf16.mxu0 0
        %1088 = vmatpush1.bf16.msra.mxu0 0
        %1089 = vmatprep.subr.bf16.mxu0 0
        %1090 = vmatpush1.bf16.msra.mxu0 0
        %1091 = vmatprep.subr.bf16.mxu0 0
        %1092 = vmatpush1.bf16.msra.mxu0 0
        %1093 = vmatprep.subr.bf16.mxu0 0
        %1094 = vmatpush1.bf16.msra.mxu0 0
        %1095 = vmatprep.mubr.bf16.mxu0 0
        %1096 = vmatmul.mubr.bf16.gmra.mrb[0].mxu0 %v1058
        %v1097 = vpop.f32.mrb[0].mxu0
        %v1098 = vadd.f32 0.0, %v1097
        %v1099 = vpop.f32.mrb[0].mxu0
        %v1100 = vpop.f32.mrb[0].mxu0
        %v1101 = vpop.f32.mrb[0].mxu0
        %1102 = vdwg.mxu0
        %v1103 = vpack.c.bf16 %v1098, %v1098
        %v1104 = vld [vmem:[#allocation8 + $0x8] sm:$0xf]
        %v1106 = vsel %vm663, %v1103, 0
        %v1109 = vsel %vm732, %v1104, 0
        %1111 = vmatprep.subr.bf16.mxu0 0
        %1112 = vmatpush1.bf16.msra.mxu0 %v1109
        %1113 = vmatprep.subr.bf16.mxu0 0
        %1114 = vmatpush1.bf16.msra.mxu0 0
        %1115 = vmatprep.subr.bf16.mxu0 0
        %1116 = vmatpush1.bf16.msra.mxu0 0
        %1117 = vmatprep.subr.bf16.mxu0 0
        %1118 = vmatpush1.bf16.msra.mxu0 0
        %1119 = vmatprep.subr.bf16.mxu0 0
        %1120 = vmatpush1.bf16.msra.mxu0 0
        %1121 = vmatprep.subr.bf16.mxu0 0
        %1122 = vmatpush1.bf16.msra.mxu0 0
        %1123 = vmatprep.subr.bf16.mxu0 0
        %1124 = vmatpush1.bf16.msra.mxu0 0
        %1125 = vmatprep.subr.bf16.mxu0 0
        %1126 = vmatpush1.bf16.msra.mxu0 0
        %1127 = vmatprep.subr.bf16.mxu0 0
        %1128 = vmatpush1.bf16.msra.mxu0 0
        %1129 = vmatprep.subr.bf16.mxu0 0
        %1130 = vmatpush1.bf16.msra.mxu0 0
        %1131 = vmatprep.subr.bf16.mxu0 0
        %1132 = vmatpush1.bf16.msra.mxu0 0
        %1133 = vmatprep.subr.bf16.mxu0 0
        %1134 = vmatpush1.bf16.msra.mxu0 0
        %1135 = vmatprep.subr.bf16.mxu0 0
        %1136 = vmatpush1.bf16.msra.mxu0 0
        %1137 = vmatprep.subr.bf16.mxu0 0
        %1138 = vmatpush1.bf16.msra.mxu0 0
        %1139 = vmatprep.subr.bf16.mxu0 0
        %1140 = vmatpush1.bf16.msra.mxu0 0
        %1141 = vmatprep.subr.bf16.mxu0 0
        %1142 = vmatpush1.bf16.msra.mxu0 0
        %1143 = vmatprep.mubr.bf16.mxu0 0
        %1144 = vmatmul.mubr.bf16.gmra.mrb[0].mxu0 %v1106
        %v1145 = vpop.f32.mrb[0].mxu0
        %v1146 = vadd.f32 0.0, %v1145
        %v1147 = vpop.f32.mrb[0].mxu0
        %v1148 = vpop.f32.mrb[0].mxu0
        %v1149 = vpop.f32.mrb[0].mxu0
        %1150 = vdwg.mxu0
        %v1151 = vadd.f32 %v984, %v1146
        %s1152 = scalar_lea.vmem %s2, 12
        %v1153 = vld [vmem:[%s1152] sm:$0xf]
        %v1154 = vunpack.c.l.bf16 %v1153
        %1155 = vrot.lane.b32.xlu0 %v658, 104
        %v1156 = vpop.permute.xlu0 %1155
        %1157 = vrot.lane.b32.xlu0 %v659, 104
        %v1158 = vpop.permute.xlu0 %1157
        %v1160 = vsel %vm663, %v1156, 0
        %v1163 = vsel %vm663, %v1158, 0
        %1165 = vmatprep.subr.bf16.mxu0 0
        %1166 = vmatpush1.bf16.xpose.msra.mxu0 %v1163
        %1167 = vmatprep.subr.bf16.mxu0 0
        %1168 = vmatpush1.bf16.xpose.msra.mxu0 0
        %1169 = vmatprep.subr.bf16.mxu0 0
        %1170 = vmatpush1.bf16.xpose.msra.mxu0 0
        %1171 = vmatprep.subr.bf16.mxu0 0
        %1172 = vmatpush1.bf16.xpose.msra.mxu0 0
        %1173 = vmatprep.subr.bf16.mxu0 0
        %1174 = vmatpush1.bf16.xpose.msra.mxu0 0
        %1175 = vmatprep.subr.bf16.mxu0 0
        %1176 = vmatpush1.bf16.xpose.msra.mxu0 0
        %1177 = vmatprep.subr.bf16.mxu0 0
        %1178 = vmatpush1.bf16.xpose.msra.mxu0 0
        %1179 = vmatprep.subr.bf16.mxu0 0
        %1180 = vmatpush1.bf16.xpose.msra.mxu0 0
        %1181 = vmatprep.subr.bf16.mxu0 0
        %1182 = vmatpush1.bf16.xpose.msra.mxu0 0
        %1183 = vmatprep.subr.bf16.mxu0 0
        %1184 = vmatpush1.bf16.xpose.msra.mxu0 0
        %1185 = vmatprep.subr.bf16.mxu0 0
        %1186 = vmatpush1.bf16.xpose.msra.mxu0 0
        %1187 = vmatprep.subr.bf16.mxu0 0
        %1188 = vmatpush1.bf16.xpose.msra.mxu0 0
        %1189 = vmatprep.subr.bf16.mxu0 0
        %1190 = vmatpush1.bf16.xpose.msra.mxu0 0
        %1191 = vmatprep.subr.bf16.mxu0 0
        %1192 = vmatpush1.bf16.xpose.msra.mxu0 0
        %1193 = vmatprep.subr.bf16.mxu0 0
        %1194 = vmatpush1.bf16.xpose.msra.mxu0 0
        %1195 = vmatprep.subr.bf16.mxu0 0
        %1196 = vmatpush1.bf16.xpose.msra.mxu0 0
        %1197 = vmatprep.mubr.bf16.mxu0 0
        %1198 = vmatmul.mubr.bf16.gmra.mrb[0].mxu0 %v1160
        %v1199 = vpop.f32.mrb[0].mxu0
        %v1200 = vadd.f32 %v1154, %v1199
        %v1201 = vpop.f32.mrb[0].mxu0
        %v1202 = vpop.f32.mrb[0].mxu0
        %v1203 = vpop.f32.mrb[0].mxu0
        %1204 = vdwg.mxu0
        %v1205 = vadd.f32 %v1200, %v714
        %v1206 = vsel %vm663, %v1205, -inf
        %1207 = vmax.xlane.f32.xlu0 %v1206
        %v1208 = vpop.xlane.xlu0 %1207
        %v1209 = vsub.f32 %v1205, %v1208
        %v1210 = vmul.f32 %v1209, 1.442695
        %v1211 = vpow.pop %v1210
        %v1212 = vsel %vm663, %v1211, 0.0
        %1213 = vadd.xlane.f32.xlu0 %v1212
        %v1214 = vpop.xlane.xlu0 %1213
        %v1215 = vrcp.pop %v1214
        %v1216 = vmul.f32 %v1211, %v1215
        %v1217 = vpack.c.bf16 %v1216, %v1216
        %1218 = vrot.lane.b32.xlu0 %v660, 104
        %v1219 = vpop.permute.xlu0 %1218
        %v1221 = vsel %vm663, %v1217, 0
        %v1224 = vsel %vm732, %v1219, 0
        %1226 = vmatprep.subr.bf16.mxu0 0
        %1227 = vmatpush1.bf16.msra.mxu0 %v1224
        %1228 = vmatprep.subr.bf16.mxu0 0
        %1229 = vmatpush1.bf16.msra.mxu0 0
        %1230 = vmatprep.subr.bf16.mxu0 0
        %1231 = vmatpush1.bf16.msra.mxu0 0
        %1232 = vmatprep.subr.bf16.mxu0 0
        %1233 = vmatpush1.bf16.msra.mxu0 0
        %1234 = vmatprep.subr.bf16.mxu0 0
        %1235 = vmatpush1.bf16.msra.mxu0 0
        %1236 = vmatprep.subr.bf16.mxu0 0
        %1237 = vmatpush1.bf16.msra.mxu0 0
        %1238 = vmatprep.subr.bf16.mxu0 0
        %1239 = vmatpush1.bf16.msra.mxu0 0
        %1240 = vmatprep.subr.bf16.mxu0 0
        %1241 = vmatpush1.bf16.msra.mxu0 0
        %1242 = vmatprep.subr.bf16.mxu0 0
        %1243 = vmatpush1.bf16.msra.mxu0 0
        %1244 = vmatprep.subr.bf16.mxu0 0
        %1245 = vmatpush1.bf16.msra.mxu0 0
        %1246 = vmatprep.subr.bf16.mxu0 0
        %1247 = vmatpush1.bf16.msra.mxu0 0
        %1248 = vmatprep.subr.bf16.mxu0 0
        %1249 = vmatpush1.bf16.msra.mxu0 0
        %1250 = vmatprep.subr.bf16.mxu0 0
        %1251 = vmatpush1.bf16.msra.mxu0 0
        %1252 = vmatprep.subr.bf16.mxu0 0
        %1253 = vmatpush1.bf16.msra.mxu0 0
        %1254 = vmatprep.subr.bf16.mxu0 0
        %1255 = vmatpush1.bf16.msra.mxu0 0
        %1256 = vmatprep.subr.bf16.mxu0 0
        %1257 = vmatpush1.bf16.msra.mxu0 0
        %1258 = vmatprep.mubr.bf16.mxu0 0
        %1259 = vmatmul.mubr.bf16.gmra.mrb[0].mxu0 %v1221
        %v1260 = vpop.f32.mrb[0].mxu0
        %v1261 = vadd.f32 0.0, %v1260
        %v1262 = vpop.f32.mrb[0].mxu0
        %v1263 = vpop.f32.mrb[0].mxu0
        %v1264 = vpop.f32.mrb[0].mxu0
        %1265 = vdwg.mxu0
        %v1266 = vpack.c.bf16 %v1261, %v1261
        %v1267 = vld [vmem:[#allocation8 + $0xc] sm:$0xf]
        %v1269 = vsel %vm663, %v1266, 0
        %v1272 = vsel %vm732, %v1267, 0
        %1274 = vmatprep.subr.bf16.mxu0 0
        %1275 = vmatpush1.bf16.msra.mxu0 %v1272
        %1276 = vmatprep.subr.bf16.mxu0 0
        %1277 = vmatpush1.bf16.msra.mxu0 0
        %1278 = vmatprep.subr.bf16.mxu0 0
        %1279 = vmatpush1.bf16.msra.mxu0 0
        %1280 = vmatprep.subr.bf16.mxu0 0
        %1281 = vmatpush1.bf16.msra.mxu0 0
        %1282 = vmatprep.subr.bf16.mxu0 0
        %1283 = vmatpush1.bf16.msra.mxu0 0
        %1284 = vmatprep.subr.bf16.mxu0 0
        %1285 = vmatpush1.bf16.msra.mxu0 0
        %1286 = vmatprep.subr.bf16.mxu0 0
        %1287 = vmatpush1.bf16.msra.mxu0 0
        %1288 = vmatprep.subr.bf16.mxu0 0
        %1289 = vmatpush1.bf16.msra.mxu0 0
        %1290 = vmatprep.subr.bf16.mxu0 0
        %1291 = vmatpush1.bf16.msra.mxu0 0
        %1292 = vmatprep.subr.bf16.mxu0 0
        %1293 = vmatpush1.bf16.msra.mxu0 0
        %1294 = vmatprep.subr.bf16.mxu0 0
        %1295 = vmatpush1.bf16.msra.mxu0 0
        %1296 = vmatprep.subr.bf16.mxu0 0
        %1297 = vmatpush1.bf16.msra.mxu0 0
        %1298 = vmatprep.subr.bf16.mxu0 0
        %1299 = vmatpush1.bf16.msra.mxu0 0
        %1300 = vmatprep.subr.bf16.mxu0 0
        %1301 = vmatpush1.bf16.msra.mxu0 0
        %1302 = vmatprep.subr.bf16.mxu0 0
        %1303 = vmatpush1.bf16.msra.mxu0 0
        %1304 = vmatprep.subr.bf16.mxu0 0
        %1305 = vmatpush1.bf16.msra.mxu0 0
        %1306 = vmatprep.mubr.bf16.mxu0 0
        %1307 = vmatmul.mubr.bf16.gmra.mrb[0].mxu0 %v1269
        %v1308 = vpop.f32.mrb[0].mxu0
        %v1309 = vadd.f32 0.0, %v1308
        %v1310 = vpop.f32.mrb[0].mxu0
        %v1311 = vpop.f32.mrb[0].mxu0
        %v1312 = vpop.f32.mrb[0].mxu0
        %1313 = vdwg.mxu0
        %v1314 = vadd.f32 %v1151, %v1309
        %v1315 = vadd.f32 %v466, %v1314
        %v1316 = vmul.f32 %v1315, %v1315
        %v1317 = vsel %vm469, %v1316, 0.0
        %1318 = vadd.xlane.f32.xlu0 %v1317
        %v1319 = vpop.xlane.xlu0 %1318
        %v1320 = vmul.f32 %v1319, %v473
        %v1321 = vadd.f32 %v1320, 1e-06
        %v1322 = vrsqrt.pop %v1321
        %v1323 = vmul.f32 %v1315, %v1322
        %v1324 = vld [vmem:[#allocation10] sm:$0x1]
        %v1326 = vlaneseq
        %v1327 = vshrl.u32 %v1326, 7
        %v1328 = vsub.s32 0, %v1327
        %v1329 = vrot.slane %v1324, %v1328
        %v1331 = vmul.f32 %v1323, %v1329
        %v1332 = vpack.c.bf16 %v1331, %v1331
        %v1333 = vld [vmem:[%s9] sm:$0xf]
        %v1334 = vld [vmem:[%s9 + $0x4] sm:$0xf]
        %v1335 = vld [vmem:[%s9 + $0x8] sm:$0xf]
        %v1336 = vld [vmem:[%s9 + $0xc] sm:$0xf]
        %v1341 = vunpack.c.l.b16 %v1333
        %v1342 = vunpack.c.l.b16 %v1334
        %v1343 = vunpack.c.l.b16 %v1335
        %v1344 = vunpack.c.l.b16 %v1336
        %v1345 = vpack.c.b16 %v1342, %v1341
        %v1346 = vpack.c.b16 %v1344, %v1343
        %v1350 = vsel %vm469, %v1332, 0
        %1352 = vmatprep.subr.bf16.mxu0 0
        %1353 = vmatpush1.bf16.msra.mxu0 %v1345
        %1354 = vmatprep.subr.bf16.mxu0 0
        %1355 = vmatpush1.bf16.msra.mxu0 %v1346
        %1356 = vmatprep.subr.bf16.mxu0 0
        %1357 = vmatpush1.bf16.msra.mxu0 0
        %1358 = vmatprep.subr.bf16.mxu0 0
        %1359 = vmatpush1.bf16.msra.mxu0 0
        %1360 = vmatprep.subr.bf16.mxu0 0
        %1361 = vmatpush1.bf16.msra.mxu0 0
        %1362 = vmatprep.subr.bf16.mxu0 0
        %1363 = vmatpush1.bf16.msra.mxu0 0
        %1364 = vmatprep.subr.bf16.mxu0 0
        %1365 = vmatpush1.bf16.msra.mxu0 0
        %1366 = vmatprep.subr.bf16.mxu0 0
        %1367 = vmatpush1.bf16.msra.mxu0 0
        %1368 = vmatprep.subr.bf16.mxu0 0
        %1369 = vmatpush1.bf16.msra.mxu0 0
        %1370 = vmatprep.subr.bf16.mxu0 0
        %1371 = vmatpush1.bf16.msra.mxu0 0
        %1372 = vmatprep.subr.bf16.mxu0 0
        %1373 = vmatpush1.bf16.msra.mxu0 0
        %1374 = vmatprep.subr.bf16.mxu0 0
        %1375 = vmatpush1.bf16.msra.mxu0 0
        %1376 = vmatprep.subr.bf16.mxu0 0
        %1377 = vmatpush1.bf16.msra.mxu0 0
        %1378 = vmatprep.subr.bf16.mxu0 0
        %1379 = vmatpush1.bf16.msra.mxu0 0
        %1380 = vmatprep.subr.bf16.mxu0 0
        %1381 = vmatpush1.bf16.msra.mxu0 0
        %1382 = vmatprep.subr.bf16.mxu0 0
        %1383 = vmatpush1.bf16.msra.mxu0 0
        %1384 = vmatprep.mubr.bf16.mxu0 0
        %1385 = vmatmul.mubr.bf16.gmra.mrb[0].mxu0 %v1350
        %v1386 = vpop.f32.mrb[0].mxu0
        %v1387 = vadd.f32 0.0, %v1386
        %v1388 = vpop.f32.mrb[0].mxu0
        %v1389 = vpop.f32.mrb[0].mxu0
        %v1390 = vpop.f32.mrb[0].mxu0
        %1391 = vdwg.mxu0
        %v1392 = vmax.f32 %v1387, 0.0
        %v1393 = vpack.c.bf16 %v1392, %v1392
        %v1394 = vld [vmem:[%s10] sm:$0xf]
        %v1395 = vld [vmem:[%s10 + $0x4] sm:$0xf]
        %v1396 = vld [vmem:[%s10 + $0x8] sm:$0xf]
        %v1397 = vld [vmem:[%s10 + $0xc] sm:$0xf]
        %v1398 = vld [vmem:[%s10 + $0x10] sm:$0xf]
        %v1399 = vld [vmem:[%s10 + $0x14] sm:$0xf]
        %v1400 = vld [vmem:[%s10 + $0x18] sm:$0xf]
        %v1401 = vld [vmem:[%s10 + $0x1c] sm:$0xf]
        %v1410 = vunpack.c.l.b16 %v1394
        %v1411 = vunpack.c.l.b16 %v1395
        %v1412 = vunpack.c.l.b16 %v1396
        %v1413 = vunpack.c.l.b16 %v1397
        %v1414 = vunpack.c.l.b16 %v1398
        %v1415 = vunpack.c.l.b16 %v1399
        %v1416 = vunpack.c.l.b16 %v1400
        %v1417 = vunpack.c.l.b16 %v1401
        %v1418 = vpack.c.b16 %v1411, %v1410
        %v1419 = vpack.c.b16 %v1413, %v1412
        %v1420 = vpack.c.b16 %v1415, %v1414
        %v1421 = vpack.c.b16 %v1417, %v1416
        %vm1426 = vcmask 523264
        %v1428 = vsel %vm1426, %v1393, 0
        %1430 = vmatprep.subr.bf16.mxu0 0
        %1431 = vmatpush1.bf16.msra.mxu0 %v1418
        %1432 = vmatprep.subr.bf16.mxu0 0
        %1433 = vmatpush1.bf16.msra.mxu0 %v1419
        %1434 = vmatprep.subr.bf16.mxu0 0
        %1435 = vmatpush1.bf16.msra.mxu0 %v1420
        %1436 = vmatprep.subr.bf16.mxu0 0
        %1437 = vmatpush1.bf16.msra.mxu0 %v1421
        %1438 = vmatprep.subr.bf16.mxu0 0
        %1439 = vmatpush1.bf16.msra.mxu0 0
        %1440 = vmatprep.subr.bf16.mxu0 0
        %1441 = vmatpush1.bf16.msra.mxu0 0
        %1442 = vmatprep.subr.bf16.mxu0 0
        %1443 = vmatpush1.bf16.msra.mxu0 0
        %1444 = vmatprep.subr.bf16.mxu0 0
        %1445 = vmatpush1.bf16.msra.mxu0 0
        %1446 = vmatprep.subr.bf16.mxu0 0
        %1447 = vmatpush1.bf16.msra.mxu0 0
        %1448 = vmatprep.subr.bf16.mxu0 0
        %1449 = vmatpush1.bf16.msra.mxu0 0
        %1450 = vmatprep.subr.bf16.mxu0 0
        %1451 = vmatpush1.bf16.msra.mxu0 0
        %1452 = vmatprep.subr.bf16.mxu0 0
        %1453 = vmatpush1.bf16.msra.mxu0 0
        %1454 = vmatprep.subr.bf16.mxu0 0
        %1455 = vmatpush1.bf16.msra.mxu0 0
        %1456 = vmatprep.subr.bf16.mxu0 0
        %1457 = vmatpush1.bf16.msra.mxu0 0
        %1458 = vmatprep.subr.bf16.mxu0 0
        %1459 = vmatpush1.bf16.msra.mxu0 0
        %1460 = vmatprep.subr.bf16.mxu0 0
        %1461 = vmatpush1.bf16.msra.mxu0 0
        %1462 = vmatprep.mubr.bf16.mxu0 0
        %1463 = vmatmul.mubr.bf16.gmra.mrb[0].mxu0 %v1428
        %v1464 = vpop.f32.mrb[0].mxu0
        %v1465 = vadd.f32 0.0, %v1464
        %v1466 = vpop.f32.mrb[0].mxu0
        %v1467 = vpop.f32.mrb[0].mxu0
        %v1468 = vpop.f32.mrb[0].mxu0
        %1469 = vdwg.mxu0
        %v1470 = vadd.f32 %v1315, %v1465
        %1471 = vst.msk [vmem:[%s457] sm:$0xff] %vm469, %v1470
        %s1472 = sand.u32 %s277, 1
        %s1473 = scalar_lea.sflag [#allocation4], %s1472
        %s1474 = sand.u32 %s277, 1
        %s1475 = smul.addr %s1474, 8
        %s1476 = scalar_lea.vmem [#allocation11], %s1475
        // Predicated region
        $region85: #{tpu_custom_call.1} parent=63 // pred_check
          %p1477 = pneg %p287
        $region86: #{tpu_custom_call.1} parent=63 // pred_check_branch
          %1479 = sbr.rel (%p1477) target = $region88
        $region87: #{tpu_custom_call.1} parent=63 // pred_region
          %s1481 = ssub.s32 128, 128
          %1482 = vsyncadd %s1473, %s1481
          %s1483 = smul.addr %s28, 128
          %s1484 = scalar_lea.hbm %s11, %s1483
          %s1486 = sshll.u32 %s1476, 4
          %s1487 = int_to_ptr.vmem [resolvable:$true] %s1486
          %1489 = dma.vmem_to_hbm [thread:$0]  %s1487, 128, %s1484, %s1473
        $region88: #{tpu_custom_call.1} parent=63 // pred_fallthru
          _
      $region64: #{tpu_custom_call.1} parent=5 // pred_fallthru
        _
      %p1490 = scmp.le.s32.totalorder 2, %s23
      // Predicated region
      $region89: #{tpu_custom_call.1} parent=5 // pred_check
        %p1491 = pneg %p1490
      $region90: #{tpu_custom_call.1} parent=5 // pred_check_branch
        %1493 = sbr.rel (%p1491) target = $region92
      $region91: #{tpu_custom_call.1} parent=5 // pred_region
        %s1494 = ssub.s32 %s23, 2
        // Predicated region
        $region93: #{tpu_custom_call.1} parent=91 // pred_check
          %p1495 = pneg %p293
        $region94: #{tpu_custom_call.1} parent=91 // pred_check_branch
          %1497 = sbr.rel (%p1495) target = $region96
        $region95: #{tpu_custom_call.1} parent=91 // pred_region
          %s1498 = sand.u32 %s278, 1
          %s1499 = scalar_lea.sflag [#allocation4], %s1498
          %s1500 = sand.u32 %s278, 1
          %s1501 = smul.addr %s1500, 8
          %s1502 = scalar_lea.vmem [#allocation11], %s1501
          %1503 = dma.done %s1499, 128
        $region96: #{tpu_custom_call.1} parent=91 // pred_fallthru
          _
      $region92: #{tpu_custom_call.1} parent=5 // pred_fallthru
        _
    $region6: #{tpu_custom_call.1} parent=1 // loop_footer
      %s27 = sadd.s32 1, %s23
    $region7: #{tpu_custom_call.1} parent=1 // loop_footer_branch
      %22 = sbr.rel target = $region3
    $region8: #{tpu_custom_call.1} parent=1 // loop_exit
      _
    %1504 = vsyncpa [#allocation3], 1
    %s1505 = scalar_lea.sflag [#allocation3], 1
    %1506 = vsyncpa %s1505, 1
    %1507 = vsyncpa [#allocation6], 1
    %1508 = vsyncpa [#allocation9], 1
    %1509 = vsyncpa [#allocation4], 1
    %s1510 = scalar_lea.sflag [#allocation4], 1
    %1511 = vsyncpa %s1510, 1

// kernel: tpu_custom_call.1
$region0: #{tpu_custom_call.1}
  #allocation0 [shape = 'u32[]', space=smem, size = 0x4, offset = 0x4, fixed_abs, tag = 'smem constant byte address 0x4 - core index']
  #allocation1 [shape = 'u32[144,128]{1,0:T(1,128)}', space=vmem, size = 0x12000, scoped, tag = 'internal scratch']
  %s0 = inlined_call_operand.vmem [shape: f32[2,8,32], index: 0, kind: input, shape index: {}]
  %s1 = inlined_call_operand.vmem [shape: f32[2,1,8], index: 1, kind: input, shape index: {}]
  %s2 = inlined_call_operand.vmem [shape: bf16[4,8,8], index: 2, kind: input, shape index: {}]
  %s3 = inlined_call_operand.hbm [shape: f32[1,32], index: 3, kind: input, shape index: {}]
  %s4 = inlined_call_operand.vmem [shape: bf16[32,32], index: 4, kind: input, shape index: {}]
  %s5 = inlined_call_operand.hbm [shape: bf16[32,32], index: 5, kind: input, shape index: {}]
  %s6 = inlined_call_operand.hbm [shape: bf16[32,32], index: 6, kind: input, shape index: {}]
  %s7 = inlined_call_operand.hbm [shape: bf16[32,32], index: 7, kind: input, shape index: {}]
  %s8 = inlined_call_operand.hbm [shape: f32[1,32], index: 8, kind: input, shape index: {}]
  %s9 = inlined_call_operand.vmem [shape: bf16[32,64], index: 9, kind: input, shape index: {}]
  %s10 = inlined_call_operand.vmem [shape: bf16[64,32], index: 10, kind: input, shape index: {}]
  %s11 = inlined_call_operand.hbm [shape: f32[2,8,32], index: 11, kind: output, shape index: {}]
  %s12 = sld [smem:[#allocation0]]
  $region97: #{tpu_custom_call.1} parent=0
    _
  %s14 = ssub.s32 1, %s12
  %s15 = scalar_select 0, %s14, %s12
  $region1: #{tpu_custom_call.1} parent=0
    #allocation2 [shape = 'u8[512]{0}', space=vmem, size = 0x400, scoped, tag = 'input window, operand 3, single buffered']
    #allocation3 [shape = 's32[2]{0}', space=sflag, size = 0x8, scoped, tag = 'scoped memory for tpu_custom_call.1']
    #allocation4 [shape = 's32[2]{0}', space=sflag, size = 0x8, scoped, tag = 'scoped memory for tpu_custom_call.1']
    #allocation5 [shape = 'u8[8192]{0}', space=vmem, size = 0x2000, scoped, tag = 'input window, operand 5, single buffered']
    #allocation6 [shape = 's32[1]{0}', space=sflag, size = 0x4, scoped, tag = 'scoped memory for tpu_custom_call.1']
    #allocation7 [shape = 'u8[8192]{0}', space=vmem, size = 0x2000, scoped, tag = 'input window, operand 6, single buffered']
    #allocation8 [shape = 'u8[8192]{0}', space=vmem, size = 0x2000, scoped, tag = 'input window, operand 7, single buffered']
    #allocation9 [shape = 's32[1]{0}', space=sflag, size = 0x4, scoped, tag = 'scoped memory for tpu_custom_call.1']
    #allocation10 [shape = 'u8[512]{0}', space=vmem, size = 0x400, scoped, tag = 'input window, operand 8, single buffered']
    #allocation11 [shape = 'u8[8192]{0}', space=vmem, size = 0x2000, scoped, tag = 'output window, operand 0']
    %16 = vsyncpa [#allocation3], 0
    %17 = vsyncpa [#allocation6], 0
    %18 = vsyncpa [#allocation9], 0
    %19 = vsyncpa [#allocation4], 0
    %s20 = scalar_lea.sflag [#allocation4], 1
    %21 = vsyncpa %s20, 0
    loop: start=0, step=1, limit=4
    $region2: #{tpu_custom_call.1} parent=1 // loop_pre_header
      _
    $region3: #{tpu_custom_call.1} parent=1 // loop_header
      %s23 = sphi 0, %s27
      %p24 = scmp.ge.s32.totalorder %s23, 4
      %s33 = sphi 0, %s35
      %s36 = sphi 0, %s33
      %s37 = sphi 0, %s36
      %s53 = sphi 0, %s37
      %s59 = sphi 0, %s61
      %s62 = sphi 0, %s59
      %s63 = sphi 0, %s62
      %s79 = sphi 0, %s63
      %s83 = sphi 0, %s83
      %s85 = sphi 0, %s83
      %s86 = sphi 0, %s85
      %s100 = sphi 0, %s86
      %s104 = sphi 0, %s104
      %s106 = sphi 0, %s104
      %s107 = sphi 0, %s106
      %s121 = sphi 0, %s107
      %s125 = sphi 0, %s125
      %s127 = sphi 0, %s125
      %s128 = sphi 0, %s127
      %s142 = sphi 0, %s128
      %s146 = sphi 0, %s146
      %s148 = sphi 0, %s146
      %s149 = sphi 0, %s148
      %s163 = sphi 0, %s149
      %s167 = sphi 0, %s167
      %s169 = sphi 0, %s167
      %s170 = sphi 0, %s169
      %s184 = sphi 0, %s170
      %s188 = sphi 0, %s188
      %s190 = sphi 0, %s188
      %s191 = sphi 0, %s190
      %s205 = sphi 0, %s191
      %s209 = sphi 0, %s209
      %s211 = sphi 0, %s209
      %s212 = sphi 0, %s211
      %s226 = sphi 0, %s212
      %s230 = sphi 0, %s230
      %s232 = sphi 0, %s230
      %s233 = sphi 0, %s232
      %s247 = sphi 0, %s233
      %s251 = sphi 0, %s251
      %s253 = sphi 0, %s251
      %s254 = sphi 0, %s253
      %s268 = sphi 0, %s254
      %s274 = sphi 0, %s276
      %s277 = sphi 0, %s274
      %s278 = sphi 0, %s277
      %s294 = sphi 0, %s278
    $region4: #{tpu_custom_call.1} parent=1 // loop_header_branch
      %26 = sbr.rel (%p24) target = $region8
    $region5: #{tpu_custom_call.1} parent=1 // loop_body
      %s28 = ssub.s32 %s23, 1
      %s29 = ssub.s32 %s23, 2
      %s30 = sadd.s32 %s23, 1
      %s31 = ssub.s32 %s23, %s30
      %p32 = scmp.eq.s32.totalorder %s31, 0
      %s34 = sadd.s32 %s33, 1
      %s35 = scalar_select %p32, %s33, %s34
      %p38 = pneg %p32
      %p39 = scmp.eq.s32.totalorder %s23, 1
      %p40 = por %p38, %p39
      %p41 = scmp.ne.s32.totalorder %s33, %s36
      %p42 = scmp.eq.s32.totalorder %s23, 0
      %p43 = por %p41, %p42
      %p44 = scmp.ne.s32.totalorder %s33, %s36
      %p45 = scmp.eq.s32.totalorder %s28, 1
      %p46 = por %p44, %p45
      %p47 = scmp.ne.s32.totalorder %s36, %s37
      %p48 = scmp.eq.s32.totalorder %s28, 0
      %p49 = por %p47, %p48
      %p50 = scmp.ne.s32.totalorder %s36, %s37
      %p51 = scmp.eq.s32.totalorder %s29, 1
      %p52 = por %p50, %p51
      %p54 = scmp.ne.s32.totalorder %s37, %s53
      %p55 = scmp.eq.s32.totalorder %s29, 0
      %p56 = por %p54, %p55
      %s57 = ssub.s32 %s23, %s30
      %p58 = scmp.eq.s32.totalorder %s57, 0
      %s60 = sadd.s32 %s59, 1
      %s61 = scalar_select %p58, %s59, %s60
      %p64 = pneg %p58
      %p65 = scmp.eq.s32.totalorder %s23, 1
      %p66 = por %p64, %p65
      %p67 = scmp.ne.s32.totalorder %s59, %s62
      %p68 = scmp.eq.s32.totalorder %s23, 0
      %p69 = por %p67, %p68
      %p70 = scmp.ne.s32.totalorder %s59, %s62
      %p71 = scmp.eq.s32.totalorder %s28, 1
      %p72 = por %p70, %p71
      %p73 = scmp.ne.s32.totalorder %s62, %s63
      %p74 = scmp.eq.s32.totalorder %s28, 0
      %p75 = por %p73, %p74
      %p76 = scmp.ne.s32.totalorder %s62, %s63
      %p77 = scmp.eq.s32.totalorder %s29, 1
      %p78 = por %p76, %p77
      %p80 = scmp.ne.s32.totalorder %s63, %s79
      %p81 = scmp.eq.s32.totalorder %s29, 0
      %p82 = por %p80, %p81
      %s84 = sadd.s32 %s83, 1
      %p87 = scmp.eq.s32.totalorder %s23, 1
      %p88 = scmp.ne.s32.totalorder %s83, %s85
      %p89 = scmp.eq.s32.totalorder %s23, 0
      %p90 = por %p88, %p89
      %p91 = scmp.ne.s32.totalorder %s83, %s85
      %p92 = scmp.eq.s32.totalorder %s28, 1
      %p93 = por %p91, %p92
      %p94 = scmp.ne.s32.totalorder %s85, %s86
      %p95 = scmp.eq.s32.totalorder %s28, 0
      %p96 = por %p94, %p95
      %p97 = scmp.ne.s32.totalorder %s85, %s86
      %p98 = scmp.eq.s32.totalorder %s29, 1
      %p99 = por %p97, %p98
      %p101 = scmp.ne.s32.totalorder %s86, %s100
      %p102 = scmp.eq.s32.totalorder %s29, 0
      %p103 = por %p101, %p102
      %s105 = sadd.s32 %s104, 1
      %p108 = scmp.eq.s32.totalorder %s23, 1
      %p109 = scmp.ne.s32.totalorder %s104, %s106
      %p110 = scmp.eq.s32.totalorder %s23, 0
      %p111 = por %p109, %p110
      %p112 = scmp.ne.s32.totalorder %s104, %s106
      %p113 = scmp.eq.s32.totalorder %s28, 1
      %p114 = por %p112, %p113
      %p115 = scmp.ne.s32.totalorder %s106, %s107
      %p116 = scmp.eq.s32.totalorder %s28, 0
      %p117 = por %p115, %p116
      %p118 = scmp.ne.s32.totalorder %s106, %s107
      %p119 = scmp.eq.s32.totalorder %s29, 1
      %p120 = por %p118, %p119
      %p122 = scmp.ne.s32.totalorder %s107, %s121
      %p123 = scmp.eq.s32.totalorder %s29, 0
      %p124 = por %p122, %p123
      %s126 = sadd.s32 %s125, 1
      %p129 = scmp.eq.s32.totalorder %s23, 1
      %p130 = scmp.ne.s32.totalorder %s125, %s127
      %p131 = scmp.eq.s32.totalorder %s23, 0
      %p132 = por %p130, %p131
      %p133 = scmp.ne.s32.totalorder %s125, %s127
      %p134 = scmp.eq.s32.totalorder %s28, 1
      %p135 = por %p133, %p134
      %p136 = scmp.ne.s32.totalorder %s127, %s128
      %p137 = scmp.eq.s32.totalorder %s28, 0
      %p138 = por %p136, %p137
      %p139 = scmp.ne.s32.totalorder %s127, %s128
      %p140 = scmp.eq.s32.totalorder %s29, 1
      %p141 = por %p139, %p140
      %p143 = scmp.ne.s32.totalorder %s128, %s142
      %p144 = scmp.eq.s32.totalorder %s29, 0
      %p145 = por %p143, %p144
      %s147 = sadd.s32 %s146, 1
      %p150 = scmp.eq.s32.totalorder %s23, 1
      %p151 = scmp.ne.s32.totalorder %s146, %s148
      %p152 = scmp.eq.s32.totalorder %s23, 0
      %p153 = por %p151, %p152
      %p154 = scmp.ne.s32.totalorder %s146, %s148
      %p155 = scmp.eq.s32.totalorder %s28, 1
      %p156 = por %p154, %p155
      %p157 = scmp.ne.s32.totalorder %s148, %s149
      %p158 = scmp.eq.s32.totalorder %s28, 0
      %p159 = por %p157, %p158
      %p160 = scmp.ne.s32.totalorder %s148, %s149
      %p161 = scmp.eq.s32.totalorder %s29, 1
      %p162 = por %p160, %p161
      %p164 = scmp.ne.s32.totalorder %s149, %s163
      %p165 = scmp.eq.s32.totalorder %s29, 0
      %p166 = por %p164, %p165
      %s168 = sadd.s32 %s167, 1
      %p171 = scmp.eq.s32.totalorder %s23, 1
      %p172 = scmp.ne.s32.totalorder %s167, %s169
      %p173 = scmp.eq.s32.totalorder %s23, 0
      %p174 = por %p172, %p173
      %p175 = scmp.ne.s32.totalorder %s167, %s169
      %p176 = scmp.eq.s32.totalorder %s28, 1
      %p177 = por %p175, %p176
      %p178 = scmp.ne.s32.totalorder %s169, %s170
      %p179 = scmp.eq.s32.totalorder %s28, 0
      %p180 = por %p178, %p179
      %p181 = scmp.ne.s32.totalorder %s169, %s170
      %p182 = scmp.eq.s32.totalorder %s29, 1
      %p183 = por %p181, %p182
      %p185 = scmp.ne.s32.totalorder %s170, %s184
      %p186 = scmp.eq.s32.totalorder %s29, 0
      %p187 = por %p185, %p186
      %s189 = sadd.s32 %s188, 1
      %p192 = scmp.eq.s32.totalorder %s23, 1
      %p193 = scmp.ne.s32.totalorder %s188, %s190
      %p194 = scmp.eq.s32.totalorder %s23, 0
      %p195 = por %p193, %p194
      %p196 = scmp.ne.s32.totalorder %s188, %s190
      %p197 = scmp.eq.s32.totalorder %s28, 1
      %p198 = por %p196, %p197
      %p199 = scmp.ne.s32.totalorder %s190, %s191
      %p200 = scmp.eq.s32.totalorder %s28, 0
      %p201 = por %p199, %p200
      %p202 = scmp.ne.s32.totalorder %s190, %s191
      %p203 = scmp.eq.s32.totalorder %s29, 1
      %p204 = por %p202, %p203
      %p206 = scmp.ne.s32.totalorder %s191, %s205
      %p207 = scmp.eq.s32.totalorder %s29, 0
      %p208 = por %p206, %p207
      %s210 = sadd.s32 %s209, 1
      %p213 = scmp.eq.s32.totalorder %s23, 1
      %p214 = scmp.ne.s32.totalorder %s209, %s211
      %p215 = scmp.eq.s32.totalorder %s23, 0
      %p216 = por %p214, %p215
      %p217 = scmp.ne.s32.totalorder %s209, %s211
      %p218 = scmp.eq.s32.totalorder %s28, 1
      %p219 = por %p217, %p218
      %p220 = scmp.ne.s32.totalorder %s211, %s212
      %p221 = scmp.eq.s32.totalorder %s28, 0
      %p222 = por %p220, %p221
      %p223 = scmp.ne.s32.totalorder %s211, %s212
      %p224 = scmp.eq.s32.totalorder %s29, 1
      %p225 = por %p223, %p224
      %p227 = scmp.ne.s32.totalorder %s212, %s226
      %p228 = scmp.eq.s32.totalorder %s29, 0
      %p229 = por %p227, %p228
      %s231 = sadd.s32 %s230, 1
      %p234 = scmp.eq.s32.totalorder %s23, 1
      %p235 = scmp.ne.s32.totalorder %s230, %s232
      %p236 = scmp.eq.s32.totalorder %s23, 0
      %p237 = por %p235, %p236
      %p238 = scmp.ne.s32.totalorder %s230, %s232
      %p239 = scmp.eq.s32.totalorder %s28, 1
      %p240 = por %p238, %p239
      %p241 = scmp.ne.s32.totalorder %s232, %s233
      %p242 = scmp.eq.s32.totalorder %s28, 0
      %p243 = por %p241, %p242
      %p244 = scmp.ne.s32.totalorder %s232, %s233
      %p245 = scmp.eq.s32.totalorder %s29, 1
      %p246 = por %p244, %p245
      %p248 = scmp.ne.s32.totalorder %s233, %s247
      %p249 = scmp.eq.s32.totalorder %s29, 0
      %p250 = por %p248, %p249
      %s252 = sadd.s32 %s251, 1
      %p255 = scmp.eq.s32.totalorder %s23, 1
      %p256 = scmp.ne.s32.totalorder %s251, %s253
      %p257 = scmp.eq.s32.totalorder %s23, 0
      %p258 = por %p256, %p257
      %p259 = scmp.ne.s32.totalorder %s251, %s253
      %p260 = scmp.eq.s32.totalorder %s28, 1
      %p261 = por %p259, %p260
      %p262 = scmp.ne.s32.totalorder %s253, %s254
      %p263 = scmp.eq.s32.totalorder %s28, 0
      %p264 = por %p262, %p263
      %p265 = scmp.ne.s32.totalorder %s253, %s254
      %p266 = scmp.eq.s32.totalorder %s29, 1
      %p267 = por %p265, %p266
      %p269 = scmp.ne.s32.totalorder %s254, %s268
      %p270 = scmp.eq.s32.totalorder %s29, 0
      %p271 = por %p269, %p270
      %s272 = ssub.s32 %s23, %s30
      %p273 = scmp.eq.s32.totalorder %s272, 0
      %s275 = sadd.s32 %s274, 1
      %s276 = scalar_select %p273, %s274, %s275
      %p279 = pneg %p273
      %p280 = scmp.eq.s32.totalorder %s23, 1
      %p281 = por %p279, %p280
      %p282 = scmp.ne.s32.totalorder %s274, %s277
      %p283 = scmp.eq.s32.totalorder %s23, 0
      %p284 = por %p282, %p283
      %p285 = scmp.ne.s32.totalorder %s274, %s277
      %p286 = scmp.eq.s32.totalorder %s28, 1
      %p287 = por %p285, %p286
      %p288 = scmp.ne.s32.totalorder %s277, %s278
      %p289 = scmp.eq.s32.totalorder %s28, 0
      %p290 = por %p288, %p289
      %p291 = scmp.ne.s32.totalorder %s277, %s278
      %p292 = scmp.eq.s32.totalorder %s29, 1
      %p293 = por %p291, %p292
      %p295 = scmp.ne.s32.totalorder %s278, %s294
      %p296 = scmp.eq.s32.totalorder %s29, 0
      %p297 = por %p295, %p296
      %p298 = scmp.le.s32.totalorder 1, %s23
      %p299 = scmp.lt.s32.totalorder %s23, 3
      %p300 = pnand %p298, %p299
      %p301 = pneg %p300
      // Predicated region
      $region9: #{tpu_custom_call.1} parent=5 // pred_check
        _
      $region10: #{tpu_custom_call.1} parent=5 // pred_check_branch
        %303 = sbr.rel (%p300) target = $region12
      $region11: #{tpu_custom_call.1} parent=5 // pred_region
        %s304 = ssub.s32 %s23, 1
        // Predicated region
        $region13: #{tpu_custom_call.1} parent=11 // pred_check
          %p305 = pneg %p96
        $region14: #{tpu_custom_call.1} parent=11 // pred_check_branch
          %307 = sbr.rel (%p305) target = $region16
        $region15: #{tpu_custom_call.1} parent=11 // pred_region
          _
        $region16: #{tpu_custom_call.1} parent=11 // pred_fallthru
          _
        // Predicated region
        $region17: #{tpu_custom_call.1} parent=11 // pred_check
          %p308 = pneg %p117
        $region18: #{tpu_custom_call.1} parent=11 // pred_check_branch
          %310 = sbr.rel (%p308) target = $region20
        $region19: #{tpu_custom_call.1} parent=11 // pred_region
          %s312 = ssub.s32 16, 16
          %313 = vsyncadd [#allocation3], %s312
          %s315 = sshll.u32 [#allocation2], 4
          %s316 = int_to_ptr.vmem [resolvable:$true] %s315
          %318 = dma.hbm_to_vmem [thread:$0]  %s3, 16, %s316, [#allocation3]
        $region20: #{tpu_custom_call.1} parent=11 // pred_fallthru
          _
        // Predicated region
        $region21: #{tpu_custom_call.1} parent=11 // pred_check
          %p319 = pneg %p138
        $region22: #{tpu_custom_call.1} parent=11 // pred_check_branch
          %321 = sbr.rel (%p319) target = $region24
        $region23: #{tpu_custom_call.1} parent=11 // pred_region
          _
        $region24: #{tpu_custom_call.1} parent=11 // pred_fallthru
          _
        // Predicated region
        $region25: #{tpu_custom_call.1} parent=11 // pred_check
          %p322 = pneg %p159
        $region26: #{tpu_custom_call.1} parent=11 // pred_check_branch
          %324 = sbr.rel (%p322) target = $region28
        $region27: #{tpu_custom_call.1} parent=11 // pred_region
          %s326 = ssub.s32 256, 256
          %327 = vsyncadd [#allocation6], %s326
          %s328 = sshll.u32 [#allocation5], 4
          %s329 = int_to_ptr.vmem [resolvable:$true] %s328
          %334 = dma.hbm_to_vmem [thread:$0]  %s5, 256, %s329, [#allocation6], 64, 64, 4
        $region28: #{tpu_custom_call.1} parent=11 // pred_fallthru
          _
        // Predicated region
        $region29: #{tpu_custom_call.1} parent=11 // pred_check
          %p335 = pneg %p180
        $region30: #{tpu_custom_call.1} parent=11 // pred_check_branch
          %337 = sbr.rel (%p335) target = $region32
        $region31: #{tpu_custom_call.1} parent=11 // pred_region
          %s339 = ssub.s32 256, 256
          %340 = vsyncadd [#allocation6], %s339
          %s341 = sshll.u32 [#allocation7], 4
          %s342 = int_to_ptr.vmem [resolvable:$true] %s341
          %347 = dma.hbm_to_vmem [thread:$0]  %s6, 256, %s342, [#allocation6], 64, 64, 4
        $region32: #{tpu_custom_call.1} parent=11 // pred_fallthru
          _
        // Predicated region
        $region33: #{tpu_custom_call.1} parent=11 // pred_check
          %p348 = pneg %p201
        $region34: #{tpu_custom_call.1} parent=11 // pred_check_branch
          %350 = sbr.rel (%p348) target = $region36
        $region35: #{tpu_custom_call.1} parent=11 // pred_region
          %s352 = ssub.s32 256, 256
          %353 = vsyncadd [#allocation9], %s352
          %s354 = sshll.u32 [#allocation8], 4
          %s355 = int_to_ptr.vmem [resolvable:$true] %s354
          %360 = dma.hbm_to_vmem [thread:$0]  %s7, 256, %s355, [#allocation9], 64, 64, 4
        $region36: #{tpu_custom_call.1} parent=11 // pred_fallthru
          _
        // Predicated region
        $region37: #{tpu_custom_call.1} parent=11 // pred_check
          %p361 = pneg %p222
        $region38: #{tpu_custom_call.1} parent=11 // pred_check_branch
          %363 = sbr.rel (%p361) target = $region40
        $region39: #{tpu_custom_call.1} parent=11 // pred_region
          %s365 = ssub.s32 16, 16
          %366 = vsyncadd [#allocation9], %s365
          %s368 = sshll.u32 [#allocation10], 4
          %s369 = int_to_ptr.vmem [resolvable:$true] %s368
          %371 = dma.hbm_to_vmem [thread:$0]  %s8, 16, %s369, [#allocation9]
        $region40: #{tpu_custom_call.1} parent=11 // pred_fallthru
          _
        // Predicated region
        $region41: #{tpu_custom_call.1} parent=11 // pred_check
          %p372 = pneg %p243
        $region42: #{tpu_custom_call.1} parent=11 // pred_check_branch
          %374 = sbr.rel (%p372) target = $region44
        $region43: #{tpu_custom_call.1} parent=11 // pred_region
          _
        $region44: #{tpu_custom_call.1} parent=11 // pred_fallthru
          _
        // Predicated region
        $region45: #{tpu_custom_call.1} parent=11 // pred_check
          %p375 = pneg %p264
        $region46: #{tpu_custom_call.1} parent=11 // pred_check_branch
          %377 = sbr.rel (%p375) target = $region48
        $region47: #{tpu_custom_call.1} parent=11 // pred_region
          _
        $region48: #{tpu_custom_call.1} parent=11 // pred_fallthru
          _
      $region12: #{tpu_custom_call.1} parent=5 // pred_fallthru
        _
      %p378 = scmp.lt.s32.totalorder %s23, 2
      // Predicated region
      $region49: #{tpu_custom_call.1} parent=5 // pred_check
        %p379 = pneg %p378
      $region50: #{tpu_custom_call.1} parent=5 // pred_check_branch
        %381 = sbr.rel (%p379) target = $region52
      $region51: #{tpu_custom_call.1} parent=5 // pred_region
        // Predicated region
        $region53: #{tpu_custom_call.1} parent=51 // pred_check
          %p382 = pneg %p43
        $region54: #{tpu_custom_call.1} parent=51 // pred_check_branch
          %384 = sbr.rel (%p382) target = $region56
        $region55: #{tpu_custom_call.1} parent=51 // pred_region
          %p385 = scmp.lt.s32.totalorder %s23, 1
          %s386 = scalar_select %p385, %s23, 1
          %s387 = smul.addr %s386, 8
          %s388 = scalar_lea.vmem %s0, %s387
        $region56: #{tpu_custom_call.1} parent=51 // pred_fallthru
          _
        // Predicated region
        $region57: #{tpu_custom_call.1} parent=51 // pred_check
          %p389 = pneg %p69
        $region58: #{tpu_custom_call.1} parent=51 // pred_check_branch
          %391 = sbr.rel (%p389) target = $region60
        $region59: #{tpu_custom_call.1} parent=51 // pred_region
          %p392 = scmp.lt.s32.totalorder %s23, 1
          %s393 = scalar_select %p392, %s23, 1
          %s394 = scalar_lea.vmem %s1, %s393
        $region60: #{tpu_custom_call.1} parent=51 // pred_fallthru
          _
      $region52: #{tpu_custom_call.1} parent=5 // pred_fallthru
        _
      %p395 = scmp.le.s32.totalorder 1, %s23
      %p396 = scmp.lt.s32.totalorder %s23, 3
      %p397 = pnand %p395, %p396
      %p398 = pneg %p397
      // Predicated region
      $region61: #{tpu_custom_call.1} parent=5 // pred_check
        _
      $region62: #{tpu_custom_call.1} parent=5 // pred_check_branch
        %400 = sbr.rel (%p397) target = $region64
      $region63: #{tpu_custom_call.1} parent=5 // pred_region
        %s401 = ssub.s32 %s23, 1
        // Predicated region
        $region65: #{tpu_custom_call.1} parent=63 // pred_check
          %p402 = pneg %p117
        $region66: #{tpu_custom_call.1} parent=63 // pred_check_branch
          %404 = sbr.rel (%p402) target = $region68
        $region67: #{tpu_custom_call.1} parent=63 // pred_region
          %405 = dma.done [#allocation3], 16
        $region68: #{tpu_custom_call.1} parent=63 // pred_fallthru
          _
        // Predicated region
        $region69: #{tpu_custom_call.1} parent=63 // pred_check
          %p406 = pneg %p159
        $region70: #{tpu_custom_call.1} parent=63 // pred_check_branch
          %408 = sbr.rel (%p406) target = $region72
        $region71: #{tpu_custom_call.1} parent=63 // pred_region
          %409 = dma.done [#allocation6], 256
        $region72: #{tpu_custom_call.1} parent=63 // pred_fallthru
          _
        // Predicated region
        $region73: #{tpu_custom_call.1} parent=63 // pred_check
          %p410 = pneg %p180
        $region74: #{tpu_custom_call.1} parent=63 // pred_check_branch
          %412 = sbr.rel (%p410) target = $region76
        $region75: #{tpu_custom_call.1} parent=63 // pred_region
          %413 = dma.done [#allocation6], 256
        $region76: #{tpu_custom_call.1} parent=63 // pred_fallthru
          _
        // Predicated region
        $region77: #{tpu_custom_call.1} parent=63 // pred_check
          %p414 = pneg %p201
        $region78: #{tpu_custom_call.1} parent=63 // pred_check_branch
          %416 = sbr.rel (%p414) target = $region80
        $region79: #{tpu_custom_call.1} parent=63 // pred_region
          %417 = dma.done [#allocation9], 256
        $region80: #{tpu_custom_call.1} parent=63 // pred_fallthru
          _
        // Predicated region
        $region81: #{tpu_custom_call.1} parent=63 // pred_check
          %p418 = pneg %p222
        $region82: #{tpu_custom_call.1} parent=63 // pred_check_branch
          %420 = sbr.rel (%p418) target = $region84
        $region83: #{tpu_custom_call.1} parent=63 // pred_region
          %421 = dma.done [#allocation9], 16
        $region84: #{tpu_custom_call.1} parent=63 // pred_fallthru
          _
        %p422 = scmp.lt.s32.totalorder %s28, 1
        %s423 = scalar_select %p422, %s28, 1
        %s424 = smul.addr %s423, 8
        %s425 = scalar_lea.vmem %s0, %s424
        %p426 = pneg %p49
        %p427 = pneg %p46
        %p428 = scmp.lt.s32.totalorder %s28, 1
        %s429 = scalar_select %p428, %s28, 1
        %s430 = scalar_lea.vmem %s1, %s429
        %p431 = pneg %p75
        %p432 = pneg %p72
        %p433 = pneg %p96
        %p434 = pneg %p93
        %p435 = pneg %p117
        %p436 = pneg %p114
        %p437 = pneg %p138
        %p438 = pneg %p135
        %p439 = pneg %p159
        %p440 = pneg %p156
        %p441 = pneg %p180
        %p442 = pneg %p177
        %p443 = pneg %p201
        %p444 = pneg %p198
        %p445 = pneg %p222
        %p446 = pneg %p219
        %p447 = pneg %p243
        %p448 = pneg %p240
        %p449 = pneg %p264
        %p450 = pneg %p261
        %p451 = pneg %p290
        %p452 = pneg %p287
        %s453 = sand.u32 %s277, 1
        %s454 = scalar_lea.sflag [#allocation4], %s453
        %s455 = sand.u32 %s277, 1
        %s456 = smul.addr %s455, 8
        %s457 = scalar_lea.vmem [#allocation11], %s456
        %p458 = scmp.lt.s32.totalorder %s28, 1
        %s459 = scalar_select %p458, %s28, 1
        %s460 = smul.addr %s459, 8
        %s461 = scalar_lea.vmem %s0, %s460
        %p462 = scmp.lt.s32.totalorder %s28, 1
        %s463 = scalar_select %p462, %s28, 1
        %s464 = scalar_lea.vmem %s1, %s463
        %v466 = vld [vmem:[%s461] sm:$0xff]
        %v467 = vld [vmem:[%s464] sm:$0x1]
        %v468 = vmul.f32 %v466, %v466
        %vm469 = vcmask 261120
        %v470 = vsel %vm469, %v468, 0.0
        %471 = vadd.xlane.f32.xlu0 %v470
        %v472 = vpop.xlane.xlu0 %471
        %v473 = vrcp.pop 32.0
        %v474 = vmul.f32 %v472, %v473
        %v475 = vadd.f32 %v474, 1e-06
        %v476 = vrsqrt.pop %v475
        %v477 = vmul.f32 %v466, %v476
        %v478 = vld [vmem:[#allocation2] sm:$0x1]
        %v480 = vlaneseq
        %v481 = vshrl.u32 %v480, 7
        %v482 = vsub.s32 0, %v481
        %v483 = vrot.slane %v478, %v482
        %v485 = vmul.f32 %v477, %v483
        %v486 = vpack.c.bf16 %v485, %v485
        %v487 = vld [vmem:[%s4] sm:$0xf]
        %v488 = vld [vmem:[%s4 + $0x4] sm:$0xf]
        %v489 = vld [vmem:[%s4 + $0x8] sm:$0xf]
        %v490 = vld [vmem:[%s4 + $0xc] sm:$0xf]
        %v495 = vunpack.c.l.b16 %v487
        %v496 = vunpack.c.l.b16 %v488
        %v497 = vunpack.c.l.b16 %v489
        %v498 = vunpack.c.l.b16 %v490
        %v499 = vpack.c.b16 %v496, %v495
        %v500 = vpack.c.b16 %v498, %v497
        %v504 = vsel %vm469, %v486, 0
        %506 = vmatprep.subr.bf16.mxu0 0
        %507 = vmatpush1.bf16.msra.mxu0 %v499
        %508 = vmatprep.subr.bf16.mxu0 0
        %509 = vmatpush1.bf16.msra.mxu0 %v500
        %510 = vmatprep.subr.bf16.mxu0 0
        %511 = vmatpush1.bf16.msra.mxu0 0
        %512 = vmatprep.subr.bf16.mxu0 0
        %513 = vmatpush1.bf16.msra.mxu0 0
        %514 = vmatprep.subr.bf16.mxu0 0
        %515 = vmatpush1.bf16.msra.mxu0 0
        %516 = vmatprep.subr.bf16.mxu0 0
        %517 = vmatpush1.bf16.msra.mxu0 0
        %518 = vmatprep.subr.bf16.mxu0 0
        %519 = vmatpush1.bf16.msra.mxu0 0
        %520 = vmatprep.subr.bf16.mxu0 0
        %521 = vmatpush1.bf16.msra.mxu0 0
        %522 = vmatprep.subr.bf16.mxu0 0
        %523 = vmatpush1.bf16.msra.mxu0 0
        %524 = vmatprep.subr.bf16.mxu0 0
        %525 = vmatpush1.bf16.msra.mxu0 0
        %526 = vmatprep.subr.bf16.mxu0 0
        %527 = vmatpush1.bf16.msra.mxu0 0
        %528 = vmatprep.subr.bf16.mxu0 0
        %529 = vmatpush1.bf16.msra.mxu0 0
        %530 = vmatprep.subr.bf16.mxu0 0
        %531 = vmatpush1.bf16.msra.mxu0 0
        %532 = vmatprep.subr.bf16.mxu0 0
        %533 = vmatpush1.bf16.msra.mxu0 0
        %534 = vmatprep.subr.bf16.mxu0 0
        %535 = vmatpush1.bf16.msra.mxu0 0
        %536 = vmatprep.subr.bf16.mxu0 0
        %537 = vmatpush1.bf16.msra.mxu0 0
        %538 = vmatprep.mubr.bf16.mxu0 0
        %539 = vmatmul.mubr.bf16.gmra.mrb[0].mxu0 %v504
        %v540 = vpop.f32.mrb[0].mxu0
        %v541 = vadd.f32 0.0, %v540
        %v542 = vpop.f32.mrb[0].mxu0
        %v543 = vpop.f32.mrb[0].mxu0
        %v544 = vpop.f32.mrb[0].mxu0
        %545 = vdwg.mxu0
        %v546 = vld [vmem:[#allocation5] sm:$0xf]
        %v547 = vld [vmem:[#allocation5 + $0x4] sm:$0xf]
        %v548 = vld [vmem:[#allocation5 + $0x8] sm:$0xf]
        %v549 = vld [vmem:[#allocation5 + $0xc] sm:$0xf]
        %v554 = vunpack.c.l.b16 %v546
        %v555 = vunpack.c.l.b16 %v547
        %v556 = vunpack.c.l.b16 %v548
        %v557 = vunpack.c.l.b16 %v549
        %v558 = vpack.c.b16 %v555, %v554
        %v559 = vpack.c.b16 %v557, %v556
        %562 = vmatprep.subr.bf16.mxu0 0
        %563 = vmatpush1.bf16.msra.mxu0 %v558
        %564 = vmatprep.subr.bf16.mxu0 0
        %565 = vmatpush1.bf16.msra.mxu0 %v559
        %566 = vmatprep.subr.bf16.mxu0 0
        %567 = vmatpush1.bf16.msra.mxu0 0
        %568 = vmatprep.subr.bf16.mxu0 0
        %569 = vmatpush1.bf16.msra.mxu0 0
        %570 = vmatprep.subr.bf16.mxu0 0
        %571 = vmatpush1.bf16.msra.mxu0 0
        %572 = vmatprep.subr.bf16.mxu0 0
        %573 = vmatpush1.bf16.msra.mxu0 0
        %574 = vmatprep.subr.bf16.mxu0 0
        %575 = vmatpush1.bf16.msra.mxu0 0
        %576 = vmatprep.subr.bf16.mxu0 0
        %577 = vmatpush1.bf16.msra.mxu0 0
        %578 = vmatprep.subr.bf16.mxu0 0
        %579 = vmatpush1.bf16.msra.mxu0 0
        %580 = vmatprep.subr.bf16.mxu0 0
        %581 = vmatpush1.bf16.msra.mxu0 0
        %582 = vmatprep.subr.bf16.mxu0 0
        %583 = vmatpush1.bf16.msra.mxu0 0
        %584 = vmatprep.subr.bf16.mxu0 0
        %585 = vmatpush1.bf16.msra.mxu0 0
        %586 = vmatprep.subr.bf16.mxu0 0
        %587 = vmatpush1.bf16.msra.mxu0 0
        %588 = vmatprep.subr.bf16.mxu0 0
        %589 = vmatpush1.bf16.msra.mxu0 0
        %590 = vmatprep.subr.bf16.mxu0 0
        %591 = vmatpush1.bf16.msra.mxu0 0
        %592 = vmatprep.subr.bf16.mxu0 0
        %593 = vmatpush1.bf16.msra.mxu0 0
        %594 = vmatprep.mubr.bf16.mxu0 0
        %595 = vmatmul.mubr.bf16.gmra.mrb[0].mxu0 %v504
        %v596 = vpop.f32.mrb[0].mxu0
        %v597 = vadd.f32 0.0, %v596
        %v598 = vpop.f32.mrb[0].mxu0
        %v599 = vpop.f32.mrb[0].mxu0
        %v600 = vpop.f32.mrb[0].mxu0
        %601 = vdwg.mxu0
        %v602 = vld [vmem:[#allocation7] sm:$0xf]
        %v603 = vld [vmem:[#allocation7 + $0x4] sm:$0xf]
        %v604 = vld [vmem:[#allocation7 + $0x8] sm:$0xf]
        %v605 = vld [vmem:[#allocation7 + $0xc] sm:$0xf]
        %v610 = vunpack.c.l.b16 %v602
        %v611 = vunpack.c.l.b16 %v603
        %v612 = vunpack.c.l.b16 %v604
        %v613 = vunpack.c.l.b16 %v605
        %v614 = vpack.c.b16 %v611, %v610
        %v615 = vpack.c.b16 %v613, %v612
        %618 = vmatprep.subr.bf16.mxu0 0
        %619 = vmatpush1.bf16.msra.mxu0 %v614
        %620 = vmatprep.subr.bf16.mxu0 0
        %621 = vmatpush1.bf16.msra.mxu0 %v615
        %622 = vmatprep.subr.bf16.mxu0 0
        %623 = vmatpush1.bf16.msra.mxu0 0
        %624 = vmatprep.subr.bf16.mxu0 0
        %625 = vmatpush1.bf16.msra.mxu0 0
        %626 = vmatprep.subr.bf16.mxu0 0
        %627 = vmatpush1.bf16.msra.mxu0 0
        %628 = vmatprep.subr.bf16.mxu0 0
        %629 = vmatpush1.bf16.msra.mxu0 0
        %630 = vmatprep.subr.bf16.mxu0 0
        %631 = vmatpush1.bf16.msra.mxu0 0
        %632 = vmatprep.subr.bf16.mxu0 0
        %633 = vmatpush1.bf16.msra.mxu0 0
        %634 = vmatprep.subr.bf16.mxu0 0
        %635 = vmatpush1.bf16.msra.mxu0 0
        %636 = vmatprep.subr.bf16.mxu0 0
        %637 = vmatpush1.bf16.msra.mxu0 0
        %638 = vmatprep.subr.bf16.mxu0 0
        %639 = vmatpush1.bf16.msra.mxu0 0
        %640 = vmatprep.subr.bf16.mxu0 0
        %641 = vmatpush1.bf16.msra.mxu0 0
        %642 = vmatprep.subr.bf16.mxu0 0
        %643 = vmatpush1.bf16.msra.mxu0 0
        %644 = vmatprep.subr.bf16.mxu0 0
        %645 = vmatpush1.bf16.msra.mxu0 0
        %646 = vmatprep.subr.bf16.mxu0 0
        %647 = vmatpush1.bf16.msra.mxu0 0
        %648 = vmatprep.subr.bf16.mxu0 0
        %649 = vmatpush1.bf16.msra.mxu0 0
        %650 = vmatprep.mubr.bf16.mxu0 0
        %651 = vmatmul.mubr.bf16.gmra.mrb[0].mxu0 %v504
        %v652 = vpop.f32.mrb[0].mxu0
        %v653 = vadd.f32 0.0, %v652
        %v654 = vpop.f32.mrb[0].mxu0
        %v655 = vpop.f32.mrb[0].mxu0
        %v656 = vpop.f32.mrb[0].mxu0
        %657 = vdwg.mxu0
        %v658 = vpack.c.bf16 %v541, %v541
        %v659 = vpack.c.bf16 %v597, %v597
        %v660 = vpack.c.bf16 %v653, %v653
        %v661 = vld [vmem:[%s2] sm:$0xf]
        %v662 = vunpack.c.l.bf16 %v661
        %vm663 = vcmask 64512
        %v665 = vsel %vm663, %v658, 0
        %v668 = vsel %vm663, %v659, 0
        %670 = vmatprep.subr.bf16.mxu0 0
        %671 = vmatpush1.bf16.xpose.msra.mxu0 %v668
        %672 = vmatprep.subr.bf16.mxu0 0
        %673 = vmatpush1.bf16.xpose.msra.mxu0 0
        %674 = vmatprep.subr.bf16.mxu0 0
        %675 = vmatpush1.bf16.xpose.msra.mxu0 0
        %676 = vmatprep.subr.bf16.mxu0 0
        %677 = vmatpush1.bf16.xpose.msra.mxu0 0
        %678 = vmatprep.subr.bf16.mxu0 0
        %679 = vmatpush1.bf16.xpose.msra.mxu0 0
        %680 = vmatprep.subr.bf16.mxu0 0
        %681 = vmatpush1.bf16.xpose.msra.mxu0 0
        %682 = vmatprep.subr.bf16.mxu0 0
        %683 = vmatpush1.bf16.xpose.msra.mxu0 0
        %684 = vmatprep.subr.bf16.mxu0 0
        %685 = vmatpush1.bf16.xpose.msra.mxu0 0
        %686 = vmatprep.subr.bf16.mxu0 0
        %687 = vmatpush1.bf16.xpose.msra.mxu0 0
        %688 = vmatprep.subr.bf16.mxu0 0
        %689 = vmatpush1.bf16.xpose.msra.mxu0 0
        %690 = vmatprep.subr.bf16.mxu0 0
        %691 = vmatpush1.bf16.xpose.msra.mxu0 0
        %692 = vmatprep.subr.bf16.mxu0 0
        %693 = vmatpush1.bf16.xpose.msra.mxu0 0
        %694 = vmatprep.subr.bf16.mxu0 0
        %695 = vmatpush1.bf16.xpose.msra.mxu0 0
        %696 = vmatprep.subr.bf16.mxu0 0
        %697 = vmatpush1.bf16.xpose.msra.mxu0 0
        %698 = vmatprep.subr.bf16.mxu0 0
        %699 = vmatpush1.bf16.xpose.msra.mxu0 0
        %700 = vmatprep.subr.bf16.mxu0 0
        %701 = vmatpush1.bf16.xpose.msra.mxu0 0
        %702 = vmatprep.mubr.bf16.mxu0 0
        %703 = vmatmul.mubr.bf16.gmra.mrb[0].mxu0 %v665
        %v704 = vpop.f32.mrb[0].mxu0
        %v705 = vadd.f32 %v662, %v704
        %v706 = vpop.f32.mrb[0].mxu0
        %v707 = vpop.f32.mrb[0].mxu0
        %v708 = vpop.f32.mrb[0].mxu0
        %709 = vdwg.mxu0
        %v711 = vlaneseq
        %v712 = vshrl.u32 %v711, 7
        %v713 = vsub.s32 0, %v712
        %v714 = vrot.slane %v467, %v713
        %v716 = vadd.f32 %v705, %v714
        %v717 = vsel %vm663, %v716, -inf
        %718 = vmax.xlane.f32.xlu0 %v717
        %v719 = vpop.xlane.xlu0 %718
        %v720 = vsub.f32 %v716, %v719
        %v721 = vmul.f32 %v720, 1.442695
        %v722 = vpow.pop %v721
        %v723 = vsel %vm663, %v722, 0.0
        %724 = vadd.xlane.f32.xlu0 %v723
        %v725 = vpop.xlane.xlu0 %724
        %v726 = vrcp.pop %v725
        %v727 = vmul.f32 %v722, %v726
        %v728 = vpack.c.bf16 %v727, %v727
        %v730 = vsel %vm663, %v728, 0
        %vm732 = vcmask 1043456
        %v734 = vsel %vm732, %v660, 0
        %736 = vmatprep.subr.bf16.mxu0 0
        %737 = vmatpush1.bf16.msra.mxu0 %v734
        %738 = vmatprep.subr.bf16.mxu0 0
        %739 = vmatpush1.bf16.msra.mxu0 0
        %740 = vmatprep.subr.bf16.mxu0 0
        %741 = vmatpush1.bf16.msra.mxu0 0
        %742 = vmatprep.subr.bf16.mxu0 0
        %743 = vmatpush1.bf16.msra.mxu0 0
        %744 = vmatprep.subr.bf16.mxu0 0
        %745 = vmatpush1.bf16.msra.mxu0 0
        %746 = vmatprep.subr.bf16.mxu0 0
        %747 = vmatpush1.bf16.msra.mxu0 0
        %748 = vmatprep.subr.bf16.mxu0 0
        %749 = vmatpush1.bf16.msra.mxu0 0
        %750 = vmatprep.subr.bf16.mxu0 0
        %751 = vmatpush1.bf16.msra.mxu0 0
        %752 = vmatprep.subr.bf16.mxu0 0
        %753 = vmatpush1.bf16.msra.mxu0 0
        %754 = vmatprep.subr.bf16.mxu0 0
        %755 = vmatpush1.bf16.msra.mxu0 0
        %756 = vmatprep.subr.bf16.mxu0 0
        %757 = vmatpush1.bf16.msra.mxu0 0
        %758 = vmatprep.subr.bf16.mxu0 0
        %759 = vmatpush1.bf16.msra.mxu0 0
        %760 = vmatprep.subr.bf16.mxu0 0
        %761 = vmatpush1.bf16.msra.mxu0 0
        %762 = vmatprep.subr.bf16.mxu0 0
        %763 = vmatpush1.bf16.msra.mxu0 0
        %764 = vmatprep.subr.bf16.mxu0 0
        %765 = vmatpush1.bf16.msra.mxu0 0
        %766 = vmatprep.subr.bf16.mxu0 0
        %767 = vmatpush1.bf16.msra.mxu0 0
        %768 = vmatprep.mubr.bf16.mxu0 0
        %769 = vmatmul.mubr.bf16.gmra.mrb[0].mxu0 %v730
        %v770 = vpop.f32.mrb[0].mxu0
        %v771 = vadd.f32 0.0, %v770
        %v772 = vpop.f32.mrb[0].mxu0
        %v773 = vpop.f32.mrb[0].mxu0
        %v774 = vpop.f32.mrb[0].mxu0
        %775 = vdwg.mxu0
        %v776 = vpack.c.bf16 %v771, %v771
        %v777 = vld [vmem:[#allocation8] sm:$0xf]
        %s778 = scalar_lea.vmem %s2, 4
        %v779 = vld [vmem:[%s778] sm:$0xf]
        %v780 = vunpack.c.l.bf16 %v779
        %782 = vrot.lane.b32.xlu0 %v658, 120
        %v783 = vpop.permute.xlu0 %782
        %785 = vrot.lane.b32.xlu0 %v659, 120
        %v786 = vpop.permute.xlu0 %785
        %v788 = vsel %vm663, %v783, 0
        %v791 = vsel %vm663, %v786, 0
        %793 = vmatprep.subr.bf16.mxu0 0
        %794 = vmatpush1.bf16.xpose.msra.mxu0 %v791
        %795 = vmatprep.subr.bf16.mxu0 0
        %796 = vmatpush1.bf16.xpose.msra.mxu0 0
        %797 = vmatprep.subr.bf16.mxu0 0
        %798 = vmatpush1.bf16.xpose.msra.mxu0 0
        %799 = vmatprep.subr.bf16.mxu0 0
        %800 = vmatpush1.bf16.xpose.msra.mxu0 0
        %801 = vmatprep.subr.bf16.mxu0 0
        %802 = vmatpush1.bf16.xpose.msra.mxu0 0
        %803 = vmatprep.subr.bf16.mxu0 0
        %804 = vmatpush1.bf16.xpose.msra.mxu0 0
        %805 = vmatprep.subr.bf16.mxu0 0
        %806 = vmatpush1.bf16.xpose.msra.mxu0 0
        %807 = vmatprep.subr.bf16.mxu0 0
        %808 = vmatpush1.bf16.xpose.msra.mxu0 0
        %809 = vmatprep.subr.bf16.mxu0 0
        %810 = vmatpush1.bf16.xpose.msra.mxu0 0
        %811 = vmatprep.subr.bf16.mxu0 0
        %812 = vmatpush1.bf16.xpose.msra.mxu0 0
        %813 = vmatprep.subr.bf16.mxu0 0
        %814 = vmatpush1.bf16.xpose.msra.mxu0 0
        %815 = vmatprep.subr.bf16.mxu0 0
        %816 = vmatpush1.bf16.xpose.msra.mxu0 0
        %817 = vmatprep.subr.bf16.mxu0 0
        %818 = vmatpush1.bf16.xpose.msra.mxu0 0
        %819 = vmatprep.subr.bf16.mxu0 0
        %820 = vmatpush1.bf16.xpose.msra.mxu0 0
        %821 = vmatprep.subr.bf16.mxu0 0
        %822 = vmatpush1.bf16.xpose.msra.mxu0 0
        %823 = vmatprep.subr.bf16.mxu0 0
        %824 = vmatpush1.bf16.xpose.msra.mxu0 0
        %825 = vmatprep.mubr.bf16.mxu0 0
        %826 = vmatmul.mubr.bf16.gmra.mrb[0].mxu0 %v788
        %v827 = vpop.f32.mrb[0].mxu0
        %v828 = vadd.f32 %v780, %v827
        %v829 = vpop.f32.mrb[0].mxu0
        %v830 = vpop.f32.mrb[0].mxu0
        %v831 = vpop.f32.mrb[0].mxu0
        %832 = vdwg.mxu0
        %v833 = vadd.f32 %v828, %v714
        %v834 = vsel %vm663, %v833, -inf
        %835 = vmax.xlane.f32.xlu0 %v834
        %v836 = vpop.xlane.xlu0 %835
        %v837 = vsub.f32 %v833, %v836
        %v838 = vmul.f32 %v837, 1.442695
        %v839 = vpow.pop %v838
        %v840 = vsel %vm663, %v839, 0.0
        %841 = vadd.xlane.f32.xlu0 %v840
        %v842 = vpop.xlane.xlu0 %841
        %v843 = vrcp.pop %v842
        %v844 = vmul.f32 %v839, %v843
        %v845 = vpack.c.bf16 %v844, %v844
        %847 = vrot.lane.b32.xlu0 %v660, 120
        %v848 = vpop.permute.xlu0 %847
        %v850 = vsel %vm663, %v845, 0
        %v853 = vsel %vm732, %v848, 0
        %855 = vmatprep.subr.bf16.mxu0 0
        %856 = vmatpush1.bf16.msra.mxu0 %v853
        %857 = vmatprep.subr.bf16.mxu0 0
        %858 = vmatpush1.bf16.msra.mxu0 0
        %859 = vmatprep.subr.bf16.mxu0 0
        %860 = vmatpush1.bf16.msra.mxu0 0
        %861 = vmatprep.subr.bf16.mxu0 0
        %862 = vmatpush1.bf16.msra.mxu0 0
        %863 = vmatprep.subr.bf16.mxu0 0
        %864 = vmatpush1.bf16.msra.mxu0 0
        %865 = vmatprep.subr.bf16.mxu0 0
        %866 = vmatpush1.bf16.msra.mxu0 0
        %867 = vmatprep.subr.bf16.mxu0 0
        %868 = vmatpush1.bf16.msra.mxu0 0
        %869 = vmatprep.subr.bf16.mxu0 0
        %870 = vmatpush1.bf16.msra.mxu0 0
        %871 = vmatprep.subr.bf16.mxu0 0
        %872 = vmatpush1.bf16.msra.mxu0 0
        %873 = vmatprep.subr.bf16.mxu0 0
        %874 = vmatpush1.bf16.msra.mxu0 0
        %875 = vmatprep.subr.bf16.mxu0 0
        %876 = vmatpush1.bf16.msra.mxu0 0
        %877 = vmatprep.subr.bf16.mxu0 0
        %878 = vmatpush1.bf16.msra.mxu0 0
        %879 = vmatprep.subr.bf16.mxu0 0
        %880 = vmatpush1.bf16.msra.mxu0 0
        %881 = vmatprep.subr.bf16.mxu0 0
        %882 = vmatpush1.bf16.msra.mxu0 0
        %883 = vmatprep.subr.bf16.mxu0 0
        %884 = vmatpush1.bf16.msra.mxu0 0
        %885 = vmatprep.subr.bf16.mxu0 0
        %886 = vmatpush1.bf16.msra.mxu0 0
        %887 = vmatprep.mubr.bf16.mxu0 0
        %888 = vmatmul.mubr.bf16.gmra.mrb[0].mxu0 %v850
        %v889 = vpop.f32.mrb[0].mxu0
        %v890 = vadd.f32 0.0, %v889
        %v891 = vpop.f32.mrb[0].mxu0
        %v892 = vpop.f32.mrb[0].mxu0
        %v893 = vpop.f32.mrb[0].mxu0
        %894 = vdwg.mxu0
        %v895 = vpack.c.bf16 %v890, %v890
        %v896 = vld [vmem:[#allocation8 + $0x4] sm:$0xf]
        %v898 = vsel %vm663, %v895, 0
        %v901 = vsel %vm732, %v896, 0
        %903 = vmatprep.subr.bf16.mxu0 0
        %904 = vmatpush1.bf16.msra.mxu0 %v901
        %905 = vmatprep.subr.bf16.mxu0 0
        %906 = vmatpush1.bf16.msra.mxu0 0
        %907 = vmatprep.subr.bf16.mxu0 0
        %908 = vmatpush1.bf16.msra.mxu0 0
        %909 = vmatprep.subr.bf16.mxu0 0
        %910 = vmatpush1.bf16.msra.mxu0 0
        %911 = vmatprep.subr.bf16.mxu0 0
        %912 = vmatpush1.bf16.msra.mxu0 0
        %913 = vmatprep.subr.bf16.mxu0 0
        %914 = vmatpush1.bf16.msra.mxu0 0
        %915 = vmatprep.subr.bf16.mxu0 0
        %916 = vmatpush1.bf16.msra.mxu0 0
        %917 = vmatprep.subr.bf16.mxu0 0
        %918 = vmatpush1.bf16.msra.mxu0 0
        %919 = vmatprep.subr.bf16.mxu0 0
        %920 = vmatpush1.bf16.msra.mxu0 0
        %921 = vmatprep.subr.bf16.mxu0 0
        %922 = vmatpush1.bf16.msra.mxu0 0
        %923 = vmatprep.subr.bf16.mxu0 0
        %924 = vmatpush1.bf16.msra.mxu0 0
        %925 = vmatprep.subr.bf16.mxu0 0
        %926 = vmatpush1.bf16.msra.mxu0 0
        %927 = vmatprep.subr.bf16.mxu0 0
        %928 = vmatpush1.bf16.msra.mxu0 0
        %929 = vmatprep.subr.bf16.mxu0 0
        %930 = vmatpush1.bf16.msra.mxu0 0
        %931 = vmatprep.subr.bf16.mxu0 0
        %932 = vmatpush1.bf16.msra.mxu0 0
        %933 = vmatprep.subr.bf16.mxu0 0
        %934 = vmatpush1.bf16.msra.mxu0 0
        %935 = vmatprep.mubr.bf16.mxu0 0
        %936 = vmatmul.mubr.bf16.gmra.mrb[0].mxu0 %v898
        %v937 = vpop.f32.mrb[0].mxu0
        %v938 = vadd.f32 0.0, %v937
        %v939 = vpop.f32.mrb[0].mxu0
        %v940 = vpop.f32.mrb[0].mxu0
        %v941 = vpop.f32.mrb[0].mxu0
        %942 = vdwg.mxu0
        %v944 = vsel %vm663, %v776, 0
        %v947 = vsel %vm732, %v777, 0
        %949 = vmatprep.subr.bf16.mxu0 0
        %950 = vmatpush1.bf16.msra.mxu0 %v947
        %951 = vmatprep.subr.bf16.mxu0 0
        %952 = vmatpush1.bf16.msra.mxu0 0
        %953 = vmatprep.subr.bf16.mxu0 0
        %954 = vmatpush1.bf16.msra.mxu0 0
        %955 = vmatprep.subr.bf16.mxu0 0
        %956 = vmatpush1.bf16.msra.mxu0 0
        %957 = vmatprep.subr.bf16.mxu0 0
        %958 = vmatpush1.bf16.msra.mxu0 0
        %959 = vmatprep.subr.bf16.mxu0 0
        %960 = vmatpush1.bf16.msra.mxu0 0
        %961 = vmatprep.subr.bf16.mxu0 0
        %962 = vmatpush1.bf16.msra.mxu0 0
        %963 = vmatprep.subr.bf16.mxu0 0
        %964 = vmatpush1.bf16.msra.mxu0 0
        %965 = vmatprep.subr.bf16.mxu0 0
        %966 = vmatpush1.bf16.msra.mxu0 0
        %967 = vmatprep.subr.bf16.mxu0 0
        %968 = vmatpush1.bf16.msra.mxu0 0
        %969 = vmatprep.subr.bf16.mxu0 0
        %970 = vmatpush1.bf16.msra.mxu0 0
        %971 = vmatprep.subr.bf16.mxu0 0
        %972 = vmatpush1.bf16.msra.mxu0 0
        %973 = vmatprep.subr.bf16.mxu0 0
        %974 = vmatpush1.bf16.msra.mxu0 0
        %975 = vmatprep.subr.bf16.mxu0 0
        %976 = vmatpush1.bf16.msra.mxu0 0
        %977 = vmatprep.subr.bf16.mxu0 0
        %978 = vmatpush1.bf16.msra.mxu0 0
        %979 = vmatprep.subr.bf16.mxu0 0
        %980 = vmatpush1.bf16.msra.mxu0 0
        %981 = vmatprep.mubr.bf16.mxu0 0
        %982 = vmatmul.mubr.bf16.gmra.mrb[0].mxu0 %v944
        %v983 = vpop.f32.mrb[0].mxu0
        %v984 = vadd.f32 %v938, %v983
        %v985 = vpop.f32.mrb[0].mxu0
        %v986 = vpop.f32.mrb[0].mxu0
        %v987 = vpop.f32.mrb[0].mxu0
        %988 = vdwg.mxu0
        %s989 = scalar_lea.vmem %s2, 8
        %v990 = vld [vmem:[%s989] sm:$0xf]
        %v991 = vunpack.c.l.bf16 %v990
        %992 = vrot.lane.b32.xlu0 %v658, 112
        %v993 = vpop.permute.xlu0 %992
        %994 = vrot.lane.b32.xlu0 %v659, 112
        %v995 = vpop.permute.xlu0 %994
        %v997 = vsel %vm663, %v993, 0
        %v1000 = vsel %vm663, %v995, 0
        %1002 = vmatprep.subr.bf16.mxu0 0
        %1003 = vmatpush1.bf16.xpose.msra.mxu0 %v1000
        %1004 = vmatprep.subr.bf16.mxu0 0
        %1005 = vmatpush1.bf16.xpose.msra.mxu0 0
        %1006 = vmatprep.subr.bf16.mxu0 0
        %1007 = vmatpush1.bf16.xpose.msra.mxu0 0
        %1008 = vmatprep.subr.bf16.mxu0 0
        %1009 = vmatpush1.bf16.xpose.msra.mxu0 0
        %1010 = vmatprep.subr.bf16.mxu0 0
        %1011 = vmatpush1.bf16.xpose.msra.mxu0 0
        %1012 = vmatprep.subr.bf16.mxu0 0
        %1013 = vmatpush1.bf16.xpose.msra.mxu0 0
        %1014 = vmatprep.subr.bf16.mxu0 0
        %1015 = vmatpush1.bf16.xpose.msra.mxu0 0
        %1016 = vmatprep.subr.bf16.mxu0 0
        %1017 = vmatpush1.bf16.xpose.msra.mxu0 0
        %1018 = vmatprep.subr.bf16.mxu0 0
        %1019 = vmatpush1.bf16.xpose.msra.mxu0 0
        %1020 = vmatprep.subr.bf16.mxu0 0
        %1021 = vmatpush1.bf16.xpose.msra.mxu0 0
        %1022 = vmatprep.subr.bf16.mxu0 0
        %1023 = vmatpush1.bf16.xpose.msra.mxu0 0
        %1024 = vmatprep.subr.bf16.mxu0 0
        %1025 = vmatpush1.bf16.xpose.msra.mxu0 0
        %1026 = vmatprep.subr.bf16.mxu0 0
        %1027 = vmatpush1.bf16.xpose.msra.mxu0 0
        %1028 = vmatprep.subr.bf16.mxu0 0
        %1029 = vmatpush1.bf16.xpose.msra.mxu0 0
        %1030 = vmatprep.subr.bf16.mxu0 0
        %1031 = vmatpush1.bf16.xpose.msra.mxu0 0
        %1032 = vmatprep.subr.bf16.mxu0 0
        %1033 = vmatpush1.bf16.xpose.msra.mxu0 0
        %1034 = vmatprep.mubr.bf16.mxu0 0
        %1035 = vmatmul.mubr.bf16.gmra.mrb[0].mxu0 %v997
        %v1036 = vpop.f32.mrb[0].mxu0
        %v1037 = vadd.f32 %v991, %v1036
        %v1038 = vpop.f32.mrb[0].mxu0
        %v1039 = vpop.f32.mrb[0].mxu0
        %v1040 = vpop.f32.mrb[0].mxu0
        %1041 = vdwg.mxu0
        %v1042 = vadd.f32 %v1037, %v714
        %v1043 = vsel %vm663, %v1042, -inf
        %1044 = vmax.xlane.f32.xlu0 %v1043
        %v1045 = vpop.xlane.xlu0 %1044
        %v1046 = vsub.f32 %v1042, %v1045
        %v1047 = vmul.f32 %v1046, 1.442695
        %v1048 = vpow.pop %v1047
        %v1049 = vsel %vm663, %v1048, 0.0
        %1050 = vadd.xlane.f32.xlu0 %v1049
        %v1051 = vpop.xlane.xlu0 %1050
        %v1052 = vrcp.pop %v1051
        %v1053 = vmul.f32 %v1048, %v1052
        %v1054 = vpack.c.bf16 %v1053, %v1053
        %1055 = vrot.lane.b32.xlu0 %v660, 112
        %v1056 = vpop.permute.xlu0 %1055
        %v1058 = vsel %vm663, %v1054, 0
        %v1061 = vsel %vm732, %v1056, 0
        %1063 = vmatprep.subr.bf16.mxu0 0
        %1064 = vmatpush1.bf16.msra.mxu0 %v1061
        %1065 = vmatprep.subr.bf16.mxu0 0
        %1066 = vmatpush1.bf16.msra.mxu0 0
        %1067 = vmatprep.subr.bf16.mxu0 0
        %1068 = vmatpush1.bf16.msra.mxu0 0
        %1069 = vmatprep.subr.bf16.mxu0 0
        %1070 = vmatpush1.bf16.msra.mxu0 0
        %1071 = vmatprep.subr.bf16.mxu0 0
        %1072 = vmatpush1.bf16.msra.mxu0 0
        %1073 = vmatprep.subr.bf16.mxu0 0
        %1074 = vmatpush1.bf16.msra.mxu0 0
        %1075 = vmatprep.subr.bf16.mxu0 0
        %1076 = vmatpush1.bf16.msra.mxu0 0
        %1077 = vmatprep.subr.bf16.mxu0 0
        %1078 = vmatpush1.bf16.msra.mxu0 0
        %1079 = vmatprep.subr.bf16.mxu0 0
        %1080 = vmatpush1.bf16.msra.mxu0 0
        %1081 = vmatprep.subr.bf16.mxu0 0
        %1082 = vmatpush1.bf16.msra.mxu0 0
        %1083 = vmatprep.subr.bf16.mxu0 0
        %1084 = vmatpush1.bf16.msra.mxu0 0
        %1085 = vmatprep.subr.bf16.mxu0 0
        %1086 = vmatpush1.bf16.msra.mxu0 0
        %1087 = vmatprep.subr.bf16.mxu0 0
        %1088 = vmatpush1.bf16.msra.mxu0 0
        %1089 = vmatprep.subr.bf16.mxu0 0
        %1090 = vmatpush1.bf16.msra.mxu0 0
        %1091 = vmatprep.subr.bf16.mxu0 0
        %1092 = vmatpush1.bf16.msra.mxu0 0
        %1093 = vmatprep.subr.bf16.mxu0 0
        %1094 = vmatpush1.bf16.msra.mxu0 0
        %1095 = vmatprep.mubr.bf16.mxu0 0
        %1096 = vmatmul.mubr.bf16.gmra.mrb[0].mxu0 %v1058
        %v1097 = vpop.f32.mrb[0].mxu0
        %v1098 = vadd.f32 0.0, %v1097
        %v1099 = vpop.f32.mrb[0].mxu0
        %v1100 = vpop.f32.mrb[0].mxu0
        %v1101 = vpop.f32.mrb[0].mxu0
        %1102 = vdwg.mxu0
        %v1103 = vpack.c.bf16 %v1098, %v1098
        %v1104 = vld [vmem:[#allocation8 + $0x8] sm:$0xf]
        %v1106 = vsel %vm663, %v1103, 0
        %v1109 = vsel %vm732, %v1104, 0
        %1111 = vmatprep.subr.bf16.mxu0 0
        %1112 = vmatpush1.bf16.msra.mxu0 %v1109
        %1113 = vmatprep.subr.bf16.mxu0 0
        %1114 = vmatpush1.bf16.msra.mxu0 0
        %1115 = vmatprep.subr.bf16.mxu0 0
        %1116 = vmatpush1.bf16.msra.mxu0 0
        %1117 = vmatprep.subr.bf16.mxu0 0
        %1118 = vmatpush1.bf16.msra.mxu0 0
        %1119 = vmatprep.subr.bf16.mxu0 0
        %1120 = vmatpush1.bf16.msra.mxu0 0
        %1121 = vmatprep.subr.bf16.mxu0 0
        %1122 = vmatpush1.bf16.msra.mxu0 0
        %1123 = vmatprep.subr.bf16.mxu0 0
        %1124 = vmatpush1.bf16.msra.mxu0 0
        %1125 = vmatprep.subr.bf16.mxu0 0
        %1126 = vmatpush1.bf16.msra.mxu0 0
        %1127 = vmatprep.subr.bf16.mxu0 0
        %1128 = vmatpush1.bf16.msra.mxu0 0
        %1129 = vmatprep.subr.bf16.mxu0 0
        %1130 = vmatpush1.bf16.msra.mxu0 0
        %1131 = vmatprep.subr.bf16.mxu0 0
        %1132 = vmatpush1.bf16.msra.mxu0 0
        %1133 = vmatprep.subr.bf16.mxu0 0
        %1134 = vmatpush1.bf16.msra.mxu0 0
        %1135 = vmatprep.subr.bf16.mxu0 0
        %1136 = vmatpush1.bf16.msra.mxu0 0
        %1137 = vmatprep.subr.bf16.mxu0 0
        %1138 = vmatpush1.bf16.msra.mxu0 0
        %1139 = vmatprep.subr.bf16.mxu0 0
        %1140 = vmatpush1.bf16.msra.mxu0 0
        %1141 = vmatprep.subr.bf16.mxu0 0
        %1142 = vmatpush1.bf16.msra.mxu0 0
        %1143 = vmatprep.mubr.bf16.mxu0 0
        %1144 = vmatmul.mubr.bf16.gmra.mrb[0].mxu0 %v1106
        %v1145 = vpop.f32.mrb[0].mxu0
        %v1146 = vadd.f32 0.0, %v1145
        %v1147 = vpop.f32.mrb[0].mxu0
        %v1148 = vpop.f32.mrb[0].mxu0
        %v1149 = vpop.f32.mrb[0].mxu0
        %1150 = vdwg.mxu0
        %v1151 = vadd.f32 %v984, %v1146
        %s1152 = scalar_lea.vmem %s2, 12
        %v1153 = vld [vmem:[%s1152] sm:$0xf]
        %v1154 = vunpack.c.l.bf16 %v1153
        %1155 = vrot.lane.b32.xlu0 %v658, 104
        %v1156 = vpop.permute.xlu0 %1155
        %1157 = vrot.lane.b32.xlu0 %v659, 104
        %v1158 = vpop.permute.xlu0 %1157
        %v1160 = vsel %vm663, %v1156, 0
        %v1163 = vsel %vm663, %v1158, 0
        %1165 = vmatprep.subr.bf16.mxu0 0
        %1166 = vmatpush1.bf16.xpose.msra.mxu0 %v1163
        %1167 = vmatprep.subr.bf16.mxu0 0
        %1168 = vmatpush1.bf16.xpose.msra.mxu0 0
        %1169 = vmatprep.subr.bf16.mxu0 0
        %1170 = vmatpush1.bf16.xpose.msra.mxu0 0
        %1171 = vmatprep.subr.bf16.mxu0 0
        %1172 = vmatpush1.bf16.xpose.msra.mxu0 0
        %1173 = vmatprep.subr.bf16.mxu0 0
        %1174 = vmatpush1.bf16.xpose.msra.mxu0 0
        %1175 = vmatprep.subr.bf16.mxu0 0
        %1176 = vmatpush1.bf16.xpose.msra.mxu0 0
        %1177 = vmatprep.subr.bf16.mxu0 0
        %1178 = vmatpush1.bf16.xpose.msra.mxu0 0
        %1179 = vmatprep.subr.bf16.mxu0 0
        %1180 = vmatpush1.bf16.xpose.msra.mxu0 0
        %1181 = vmatprep.subr.bf16.mxu0 0
        %1182 = vmatpush1.bf16.xpose.msra.mxu0 0
        %1183 = vmatprep.subr.bf16.mxu0 0
        %1184 = vmatpush1.bf16.xpose.msra.mxu0 0
        %1185 = vmatprep.subr.bf16.mxu0 0
        %1186 = vmatpush1.bf16.xpose.msra.mxu0 0
        %1187 = vmatprep.subr.bf16.mxu0 0
        %1188 = vmatpush1.bf16.xpose.msra.mxu0 0
        %1189 = vmatprep.subr.bf16.mxu0 0
        %1190 = vmatpush1.bf16.xpose.msra.mxu0 0
        %1191 = vmatprep.subr.bf16.mxu0 0
        %1192 = vmatpush1.bf16.xpose.msra.mxu0 0
        %1193 = vmatprep.subr.bf16.mxu0 0
        %1194 = vmatpush1.bf16.xpose.msra.mxu0 0
        %1195 = vmatprep.subr.bf16.mxu0 0
        %1196 = vmatpush1.bf16.xpose.msra.mxu0 0
        %1197 = vmatprep.mubr.bf16.mxu0 0
        %1198 = vmatmul.mubr.bf16.gmra.mrb[0].mxu0 %v1160
        %v1199 = vpop.f32.mrb[0].mxu0
        %v1200 = vadd.f32 %v1154, %v1199
        %v1201 = vpop.f32.mrb[0].mxu0
        %v1202 = vpop.f32.mrb[0].mxu0
        %v1203 = vpop.f32.mrb[0].mxu0
        %1204 = vdwg.mxu0
        %v1205 = vadd.f32 %v1200, %v714
        %v1206 = vsel %vm663, %v1205, -inf
        %1207 = vmax.xlane.f32.xlu0 %v1206
        %v1208 = vpop.xlane.xlu0 %1207
        %v1209 = vsub.f32 %v1205, %v1208
        %v1210 = vmul.f32 %v1209, 1.442695
        %v1211 = vpow.pop %v1210
        %v1212 = vsel %vm663, %v1211, 0.0
        %1213 = vadd.xlane.f32.xlu0 %v1212
        %v1214 = vpop.xlane.xlu0 %1213
        %v1215 = vrcp.pop %v1214
        %v1216 = vmul.f32 %v1211, %v1215
        %v1217 = vpack.c.bf16 %v1216, %v1216
        %1218 = vrot.lane.b32.xlu0 %v660, 104
        %v1219 = vpop.permute.xlu0 %1218
        %v1221 = vsel %vm663, %v1217, 0
        %v1224 = vsel %vm732, %v1219, 0
        %1226 = vmatprep.subr.bf16.mxu0 0
        %1227 = vmatpush1.bf16.msra.mxu0 %v1224
        %1228 = vmatprep.subr.bf16.mxu0 0
        %1229 = vmatpush1.bf16.msra.mxu0 0
        %1230 = vmatprep.subr.bf16.mxu0 0
        %1231 = vmatpush1.bf16.msra.mxu0 0
        %1232 = vmatprep.subr.bf16.mxu0 0
        %1233 = vmatpush1.bf16.msra.mxu0 0
        %1234 = vmatprep.subr.bf16.mxu0 0
        %1235 = vmatpush1.bf16.msra.mxu0 0
        %1236 = vmatprep.subr.bf16.mxu0 0
        %1237 = vmatpush1.bf16.msra.mxu0 0
        %1238 = vmatprep.subr.bf16.mxu0 0
        %1239 = vmatpush1.bf16.msra.mxu0 0
        %1240 = vmatprep.subr.bf16.mxu0 0
        %1241 = vmatpush1.bf16.msra.mxu0 0
        %1242 = vmatprep.subr.bf16.mxu0 0
        %1243 = vmatpush1.bf16.msra.mxu0 0
        %1244 = vmatprep.subr.bf16.mxu0 0
        %1245 = vmatpush1.bf16.msra.mxu0 0
        %1246 = vmatprep.subr.bf16.mxu0 0
        %1247 = vmatpush1.bf16.msra.mxu0 0
        %1248 = vmatprep.subr.bf16.mxu0 0
        %1249 = vmatpush1.bf16.msra.mxu0 0
        %1250 = vmatprep.subr.bf16.mxu0 0
        %1251 = vmatpush1.bf16.msra.mxu0 0
        %1252 = vmatprep.subr.bf16.mxu0 0
        %1253 = vmatpush1.bf16.msra.mxu0 0
        %1254 = vmatprep.subr.bf16.mxu0 0
        %1255 = vmatpush1.bf16.msra.mxu0 0
        %1256 = vmatprep.subr.bf16.mxu0 0
        %1257 = vmatpush1.bf16.msra.mxu0 0
        %1258 = vmatprep.mubr.bf16.mxu0 0
        %1259 = vmatmul.mubr.bf16.gmra.mrb[0].mxu0 %v1221
        %v1260 = vpop.f32.mrb[0].mxu0
        %v1261 = vadd.f32 0.0, %v1260
        %v1262 = vpop.f32.mrb[0].mxu0
        %v1263 = vpop.f32.mrb[0].mxu0
        %v1264 = vpop.f32.mrb[0].mxu0
        %1265 = vdwg.mxu0
        %v1266 = vpack.c.bf16 %v1261, %v1261
        %v1267 = vld [vmem:[#allocation8 + $0xc] sm:$0xf]
        %v1269 = vsel %vm663, %v1266, 0
        %v1272 = vsel %vm732, %v1267, 0
        %1274 = vmatprep.subr.bf16.mxu0 0
        %1275 = vmatpush1.bf16.msra.mxu0 %v1272
        %1276 = vmatprep.subr.bf16.mxu0 0
        %1277 = vmatpush1.bf16.msra.mxu0 0
        %1278 = vmatprep.subr.bf16.mxu0 0
        %1279 = vmatpush1.bf16.msra.mxu0 0
        %1280 = vmatprep.subr.bf16.mxu0 0
        %1281 = vmatpush1.bf16.msra.mxu0 0
        %1282 = vmatprep.subr.bf16.mxu0 0
        %1283 = vmatpush1.bf16.msra.mxu0 0
        %1284 = vmatprep.subr.bf16.mxu0 0
        %1285 = vmatpush1.bf16.msra.mxu0 0
        %1286 = vmatprep.subr.bf16.mxu0 0
        %1287 = vmatpush1.bf16.msra.mxu0 0
        %1288 = vmatprep.subr.bf16.mxu0 0
        %1289 = vmatpush1.bf16.msra.mxu0 0
        %1290 = vmatprep.subr.bf16.mxu0 0
        %1291 = vmatpush1.bf16.msra.mxu0 0
        %1292 = vmatprep.subr.bf16.mxu0 0
        %1293 = vmatpush1.bf16.msra.mxu0 0
        %1294 = vmatprep.subr.bf16.mxu0 0
        %1295 = vmatpush1.bf16.msra.mxu0 0
        %1296 = vmatprep.subr.bf16.mxu0 0
        %1297 = vmatpush1.bf16.msra.mxu0 0
        %1298 = vmatprep.subr.bf16.mxu0 0
        %1299 = vmatpush1.bf16.msra.mxu0 0
        %1300 = vmatprep.subr.bf16.mxu0 0
        %1301 = vmatpush1.bf16.msra.mxu0 0
        %1302 = vmatprep.subr.bf16.mxu0 0
        %1303 = vmatpush1.bf16.msra.mxu0 0
        %1304 = vmatprep.subr.bf16.mxu0 0
        %1305 = vmatpush1.bf16.msra.mxu0 0
        %1306 = vmatprep.mubr.bf16.mxu0 0
        %1307 = vmatmul.mubr.bf16.gmra.mrb[0].mxu0 %v1269
        %v1308 = vpop.f32.mrb[0].mxu0
        %v1309 = vadd.f32 0.0, %v1308
        %v1310 = vpop.f32.mrb[0].mxu0
        %v1311 = vpop.f32.mrb[0].mxu0
        %v1312 = vpop.f32.mrb[0].mxu0
        %1313 = vdwg.mxu0
        %v1314 = vadd.f32 %v1151, %v1309
        %v1315 = vadd.f32 %v466, %v1314
        %v1316 = vmul.f32 %v1315, %v1315
        %v1317 = vsel %vm469, %v1316, 0.0
        %1318 = vadd.xlane.f32.xlu0 %v1317
        %v1319 = vpop.xlane.xlu0 %1318
        %v1320 = vmul.f32 %v1319, %v473
        %v1321 = vadd.f32 %v1320, 1e-06
        %v1322 = vrsqrt.pop %v1321
        %v1323 = vmul.f32 %v1315, %v1322
        %v1324 = vld [vmem:[#allocation10] sm:$0x1]
        %v1326 = vlaneseq
        %v1327 = vshrl.u32 %v1326, 7
        %v1328 = vsub.s32 0, %v1327
        %v1329 = vrot.slane %v1324, %v1328
        %v1331 = vmul.f32 %v1323, %v1329
        %v1332 = vpack.c.bf16 %v1331, %v1331
        %v1333 = vld [vmem:[%s9] sm:$0xf]
        %v1334 = vld [vmem:[%s9 + $0x4] sm:$0xf]
        %v1335 = vld [vmem:[%s9 + $0x8] sm:$0xf]
        %v1336 = vld [vmem:[%s9 + $0xc] sm:$0xf]
        %v1341 = vunpack.c.l.b16 %v1333
        %v1342 = vunpack.c.l.b16 %v1334
        %v1343 = vunpack.c.l.b16 %v1335
        %v1344 = vunpack.c.l.b16 %v1336
        %v1345 = vpack.c.b16 %v1342, %v1341
        %v1346 = vpack.c.b16 %v1344, %v1343
        %v1350 = vsel %vm469, %v1332, 0
        %1352 = vmatprep.subr.bf16.mxu0 0
        %1353 = vmatpush1.bf16.msra.mxu0 %v1345
        %1354 = vmatprep.subr.bf16.mxu0 0
        %1355 = vmatpush1.bf16.msra.mxu0 %v1346
        %1356 = vmatprep.subr.bf16.mxu0 0
        %1357 = vmatpush1.bf16.msra.mxu0 0
        %1358 = vmatprep.subr.bf16.mxu0 0
        %1359 = vmatpush1.bf16.msra.mxu0 0
        %1360 = vmatprep.subr.bf16.mxu0 0
        %1361 = vmatpush1.bf16.msra.mxu0 0
        %1362 = vmatprep.subr.bf16.mxu0 0
        %1363 = vmatpush1.bf16.msra.mxu0 0
        %1364 = vmatprep.subr.bf16.mxu0 0
        %1365 = vmatpush1.bf16.msra.mxu0 0
        %1366 = vmatprep.subr.bf16.mxu0 0
        %1367 = vmatpush1.bf16.msra.mxu0 0
        %1368 = vmatprep.subr.bf16.mxu0 0
        %1369 = vmatpush1.bf16.msra.mxu0 0
        %1370 = vmatprep.subr.bf16.mxu0 0
        %1371 = vmatpush1.bf16.msra.mxu0 0
        %1372 = vmatprep.subr.bf16.mxu0 0
        %1373 = vmatpush1.bf16.msra.mxu0 0
        %1374 = vmatprep.subr.bf16.mxu0 0
        %1375 = vmatpush1.bf16.msra.mxu0 0
        %1376 = vmatprep.subr.bf16.mxu0 0
        %1377 = vmatpush1.bf16.msra.mxu0 0
        %1378 = vmatprep.subr.bf16.mxu0 0
        %1379 = vmatpush1.bf16.msra.mxu0 0
        %1380 = vmatprep.subr.bf16.mxu0 0
        %1381 = vmatpush1.bf16.msra.mxu0 0
        %1382 = vmatprep.subr.bf16.mxu0 0
        %1383 = vmatpush1.bf16.msra.mxu0 0
        %1384 = vmatprep.mubr.bf16.mxu0 0
        %1385 = vmatmul.mubr.bf16.gmra.mrb[0].mxu0 %v1350
        %v1386 = vpop.f32.mrb[0].mxu0
        %v1387 = vadd.f32 0.0, %v1386
        %v1388 = vpop.f32.mrb[0].mxu0
        %v1389 = vpop.f32.mrb[0].mxu0
        %v1390 = vpop.f32.mrb[0].mxu0
        %1391 = vdwg.mxu0
        %v1392 = vmax.f32 %v1387, 0.0
        %v1393 = vpack.c.bf16 %v1392, %v1392
        %v1394 = vld [vmem:[%s10] sm:$0xf]
        %v1395 = vld [vmem:[%s10 + $0x4] sm:$0xf]
        %v1396 = vld [vmem:[%s10 + $0x8] sm:$0xf]
        %v1397 = vld [vmem:[%s10 + $0xc] sm:$0xf]
        %v1398 = vld [vmem:[%s10 + $0x10] sm:$0xf]
        %v1399 = vld [vmem:[%s10 + $0x14] sm:$0xf]
        %v1400 = vld [vmem:[%s10 + $0x18] sm:$0xf]
        %v1401 = vld [vmem:[%s10 + $0x1c] sm:$0xf]
        %v1410 = vunpack.c.l.b16 %v1394
        %v1411 = vunpack.c.l.b16 %v1395
        %v1412 = vunpack.c.l.b16 %v1396
        %v1413 = vunpack.c.l.b16 %v1397
        %v1414 = vunpack.c.l.b16 %v1398
        %v1415 = vunpack.c.l.b16 %v1399
        %v1416 = vunpack.c.l.b16 %v1400
        %v1417 = vunpack.c.l.b16 %v1401
        %v1418 = vpack.c.b16 %v1411, %v1410
        %v1419 = vpack.c.b16 %v1413, %v1412
        %v1420 = vpack.c.b16 %v1415, %v1414
        %v1421 = vpack.c.b16 %v1417, %v1416
        %vm1426 = vcmask 523264
        %v1428 = vsel %vm1426, %v1393, 0
        %1430 = vmatprep.subr.bf16.mxu0 0
        %1431 = vmatpush1.bf16.msra.mxu0 %v1418
        %1432 = vmatprep.subr.bf16.mxu0 0
        %1433 = vmatpush1.bf16.msra.mxu0 %v1419
        %1434 = vmatprep.subr.bf16.mxu0 0
        %1435 = vmatpush1.bf16.msra.mxu0 %v1420
        %1436 = vmatprep.subr.bf16.mxu0 0
        %1437 = vmatpush1.bf16.msra.mxu0 %v1421
        %1438 = vmatprep.subr.bf16.mxu0 0
        %1439 = vmatpush1.bf16.msra.mxu0 0
        %1440 = vmatprep.subr.bf16.mxu0 0
        %1441 = vmatpush1.bf16.msra.mxu0 0
        %1442 = vmatprep.subr.bf16.mxu0 0
        %1443 = vmatpush1.bf16.msra.mxu0 0
        %1444 = vmatprep.subr.bf16.mxu0 0
        %1445 = vmatpush1.bf16.msra.mxu0 0
        %1446 = vmatprep.subr.bf16.mxu0 0
        %1447 = vmatpush1.bf16.msra.mxu0 0
        %1448 = vmatprep.subr.bf16.mxu0 0
        %1449 = vmatpush1.bf16.msra.mxu0 0
        %1450 = vmatprep.subr.bf16.mxu0 0
        %1451 = vmatpush1.bf16.msra.mxu0 0
        %1452 = vmatprep.subr.bf16.mxu0 0
        %1453 = vmatpush1.bf16.msra.mxu0 0
        %1454 = vmatprep.subr.bf16.mxu0 0
        %1455 = vmatpush1.bf16.msra.mxu0 0
        %1456 = vmatprep.subr.bf16.mxu0 0
        %1457 = vmatpush1.bf16.msra.mxu0 0
        %1458 = vmatprep.subr.bf16.mxu0 0
        %1459 = vmatpush1.bf16.msra.mxu0 0
        %1460 = vmatprep.subr.bf16.mxu0 0
        %1461 = vmatpush1.bf16.msra.mxu0 0
        %1462 = vmatprep.mubr.bf16.mxu0 0
        %1463 = vmatmul.mubr.bf16.gmra.mrb[0].mxu0 %v1428
        %v1464 = vpop.f32.mrb[0].mxu0
        %v1465 = vadd.f32 0.0, %v1464
        %v1466 = vpop.f32.mrb[0].mxu0
        %v1467 = vpop.f32.mrb[0].mxu0
        %v1468 = vpop.f32.mrb[0].mxu0
        %1469 = vdwg.mxu0
        %v1470 = vadd.f32 %v1315, %v1465
        %1471 = vst.msk [vmem:[%s457] sm:$0xff] %vm469, %v1470
        %s1472 = sand.u32 %s277, 1
        %s1473 = scalar_lea.sflag [#allocation4], %s1472
        %s1474 = sand.u32 %s277, 1
        %s1475 = smul.addr %s1474, 8
        %s1476 = scalar_lea.vmem [#allocation11], %s1475
        // Predicated region
        $region85: #{tpu_custom_call.1} parent=63 // pred_check
          %p1477 = pneg %p287
        $region86: #{tpu_custom_call.1} parent=63 // pred_check_branch
          %1479 = sbr.rel (%p1477) target = $region88
        $region87: #{tpu_custom_call.1} parent=63 // pred_region
          %s1481 = ssub.s32 128, 128
          %1482 = vsyncadd %s1473, %s1481
          %s1483 = smul.addr %s28, 128
          %s1484 = scalar_lea.hbm %s11, %s1483
          %s1486 = sshll.u32 %s1476, 4
          %s1487 = int_to_ptr.vmem [resolvable:$true] %s1486
          %1489 = dma.vmem_to_hbm [thread:$0]  %s1487, 128, %s1484, %s1473
        $region88: #{tpu_custom_call.1} parent=63 // pred_fallthru
          _
      $region64: #{tpu_custom_call.1} parent=5 // pred_fallthru
        _
      %p1490 = scmp.le.s32.totalorder 2, %s23
      // Predicated region
      $region89: #{tpu_custom_call.1} parent=5 // pred_check
        %p1491 = pneg %p1490
      $region90: #{tpu_custom_call.1} parent=5 // pred_check_branch
        %1493 = sbr.rel (%p1491) target = $region92
      $region91: #{tpu_custom_call.1} parent=5 // pred_region
        %s1494 = ssub.s32 %s23, 2
        // Predicated region
        $region93: #{tpu_custom_call.1} parent=91 // pred_check
          %p1495 = pneg %p293
        $region94: #{tpu_custom_call.1} parent=91 // pred_check_branch
          %1497 = sbr.rel (%p1495) target = $region96
        $region95: #{tpu_custom_call.1} parent=91 // pred_region
          %s1498 = sand.u32 %s278, 1
          %s1499 = scalar_lea.sflag [#allocation4], %s1498
          %s1500 = sand.u32 %s278, 1
          %s1501 = smul.addr %s1500, 8
          %s1502 = scalar_lea.vmem [#allocation11], %s1501
          %1503 = dma.done %s1499, 128
        $region96: #{tpu_custom_call.1} parent=91 // pred_fallthru
          _
      $region92: #{tpu_custom_call.1} parent=5 // pred_fallthru
        _
    $region6: #{tpu_custom_call.1} parent=1 // loop_footer
      %s27 = sadd.s32 1, %s23
    $region7: #{tpu_custom_call.1} parent=1 // loop_footer_branch
      %22 = sbr.rel target = $region3
    $region8: #{tpu_custom_call.1} parent=1 // loop_exit
      _
    %1504 = vsyncpa [#allocation3], 1
    %s1505 = scalar_lea.sflag [#allocation3], 1
    %1506 = vsyncpa %s1505, 1
    %1507 = vsyncpa [#allocation6], 1
    %1508 = vsyncpa [#allocation9], 1
    %1509 = vsyncpa [#allocation4], 1
    %s1510 = scalar_lea.sflag [#allocation4], 1
    %1511 = vsyncpa %s1510, 1

</llo_original>
